<compile_context>
chip_gen: v6e
topology: v6e:2x2x1
jax: 0.10.0
libtpu: 0.0.40
codegen_flags: <defaults>
</compile_context>

<pallas_src>
import jax
import jax.numpy as jnp
import numpy as np
from jax.experimental import pallas as pl
from jax.experimental.pallas import tpu as pltpu

BN_EPS = 1e-5
# Set to jnp.bfloat16 on v6e/v7x for ~2x MXU throughput; epilogue math stays f32.
# Default f32 keeps numerics close to the PyTorch reference.
MXU_DTYPE = jnp.float32
VMEM_LIMIT = 32 * 1024 * 1024  # explicit budget, safe on v5e/v6e (128 MiB) and v7x (64 MiB)


# ------------------------------ small helpers ------------------------------ #

def _silu(x):
    # x * sigmoid(x); the reciprocal runs on the EUP slot (approx vrcp), not the VPU.
    return x * pl.reciprocal(1.0 + jnp.exp(-x), approx=True)


def _pick_tile(m, target=2048):
    """Largest multiple of 128 that divides m and is <= target (fallback: full m)."""
    best = m
    t = 128
    while t <= min(m, target):
        if m % t == 0:
            best = t
        t += 128
    return best


def _cparams(semantics):
    return pltpu.CompilerParams(dimension_semantics=semantics,
                                vmem_limit_bytes=VMEM_LIMIT)


def _bn_stats(psum, psumsq, count):
    """Reduce per-tile partials -> (mean, inv_std) per channel (biased variance)."""
    total = jnp.sum(psum[:, :, 0], axis=0)
    total_sq = jnp.sum(psumsq[:, :, 0], axis=0)
    mean = total / count
    var = jnp.maximum(total_sq / count - mean * mean, 0.0)
    inv = jax.lax.rsqrt(var + BN_EPS)
    return mean, inv


# ------------------------- P1: conv1 + conv4 matmuls ------------------------ #

def _conv14_kernel(x_ref, w1_ref, w4_ref, o1_ref, o4_ref, s1_ref, q1_ref, s4_ref, q4_ref):
    x = x_ref[...].astype(MXU_DTYPE)
    o1 = jnp.dot(w1_ref[...].astype(MXU_DTYPE), x, preferred_element_type=jnp.float32)
    o4 = jnp.dot(w4_ref[...].astype(MXU_DTYPE), x, preferred_element_type=jnp.float32)
    o1_ref[...] = o1
    o4_ref[...] = o4
    # per-tile BN partials (lane-axis reduces), reduced across tiles in the wrapper
    s1_ref[...] = jnp.sum(o1, axis=1, keepdims=True)[None]
    q1_ref[...] = jnp.sum(o1 * o1, axis=1, keepdims=True)[None]
    s4_ref[...] = jnp.sum(o4, axis=1, keepdims=True)[None]
    q4_ref[...] = jnp.sum(o4 * o4, axis=1, keepdims=True)[None]


def _conv1_conv4_pass(x2d, w1, w4, tile):
    cin, m = x2d.shape
    mid = w1.shape[0]
    cout = w4.shape[0]
    g = m // tile
    out_shapes = (
        jax.ShapeDtypeStruct((mid, m), jnp.float32),
        jax.ShapeDtypeStruct((cout, m), jnp.float32),
        jax.ShapeDtypeStruct((g, mid, 1), jnp.float32),
        jax.ShapeDtypeStruct((g, mid, 1), jnp.float32),
        jax.ShapeDtypeStruct((g, cout, 1), jnp.float32),
        jax.ShapeDtypeStruct((g, cout, 1), jnp.float32),
    )
    return pl.pallas_call(
        _conv14_kernel,
        out_shape=out_shapes,
        grid=(g,),
        in_specs=[
            pl.BlockSpec((cin, tile), lambda i: (0, i)),
            pl.BlockSpec((mid, cin), lambda i: (0, 0)),
            pl.BlockSpec((cout, cin), lambda i: (0, 0)),
        ],
        out_specs=(
            pl.BlockSpec((mid, tile), lambda i: (0, i)),
            pl.BlockSpec((cout, tile), lambda i: (0, i)),
            pl.BlockSpec((1, mid, 1), lambda i: (i, 0, 0)),
            pl.BlockSpec((1, mid, 1), lambda i: (i, 0, 0)),
            pl.BlockSpec((1, cout, 1), lambda i: (i, 0, 0)),
            pl.BlockSpec((1, cout, 1), lambda i: (i, 0, 0)),
        ),
        compiler_params=_cparams(("parallel",)),
    )(x2d, w1, w4)


# --------------- P2: conv2 as 18 shifted MACs over parity planes ------------ #

def _conv2_kernel(xp_ref, w2_ref, o2_ref, s_ref, q_ref):
    # xp_ref: (1, 8, mid, Ho+1, Wo+1)  BN1-normalized (no SiLU), zero-padded,
    #         parity-split slab; dim-1 index = kd*4 + (h parity)*2 + (w parity)
    # w2_ref: (2, 3, 3, mid, mid)      conv2 taps (kd, kh, kw, c_out, c_in)
    # o2_ref: (mid, 1, Ho, Wo)         conv2 raw output slab for this (n, d_out)
    # s_ref/q_ref: (1, mid, 1)         per-slab BN2 partial sum / sum-of-squares
    mid = o2_ref.shape[0]
    ho = o2_ref.shape[2]
    wo = o2_ref.shape[3]

    # conv1's SiLU fused here; SiLU(0)=0 so zero padding of the normalized tensor is exact.
    xa = _silu(xp_ref[0])                                     # (8, mid, Ho+1, Wo+1)

    acc = jnp.zeros((mid, ho, wo), jnp.float32)
    for kd in range(2):
        for kh in range(3):
            for kw in range(3):
                pi = kd * 4 + (kh % 2) * 2 + (kw % 2)         # parity/depth plane
                dh, dw = kh // 2, kw // 2                     # in-plane shift
                win = xa[pi, :, dh:dh + ho, dw:dw + wo]       # (mid, Ho, Wo)
                wk = w2_ref[kd, kh, kw]                       # (mid_out, mid_in)
                acc = acc + jnp.sum(wk[:, :, None, None] * win[None], axis=1)

    o2_ref[:, 0] = acc
    rs = jnp.sum(acc, axis=2)                                 # lane reduce -> (mid, Ho)
    s_ref[...] = jnp.sum(rs, axis=1, keepdims=True)[None]
    rq = jnp.sum(acc * acc, axis=2)
    q_ref[...] = jnp.sum(rq, axis=1, keepdims=True)[None]


def _conv2_pass(xpairs, w2t, nd, mid, ho, wo):
    out_shapes = (
        jax.ShapeDtypeStruct((mid, nd, ho, wo), jnp.float32),
        jax.ShapeDtypeStruct((nd, mid, 1), jnp.float32),
        jax.ShapeDtypeStruct((nd, mid, 1), jnp.float32),
    )
    return pl.pallas_call(
        _conv2_kernel,
        out_shape=out_shapes,
        grid=(nd,),
        in_specs=[
            pl.BlockSpec((1, 8, mid, ho + 1, wo + 1), lambda i: (i, 0, 0, 0, 0)),
            pl.BlockSpec((2, 3, 3, mid, mid), lambda i: (0, 0, 0, 0, 0)),
        ],
        out_specs=(
            pl.BlockSpec((mid, 1, ho, wo), lambda i: (0, i, 0, 0)),
            pl.BlockSpec((1, mid, 1), lambda i: (i, 0, 0)),
            pl.BlockSpec((1, mid, 1), lambda i: (i, 0, 0)),
        ),
        compiler_params=_cparams(("parallel",)),
    )(xpairs, w2t)


# --------------- P3: conv3 fused with conv2's BN+SiLU epilogue -------------- #

def _conv3_kernel(o2_ref, sc_ref, sh_ref, w3_ref, o3_ref, s_ref, q_ref):
    a2 = _silu(o2_ref[...] * sc_ref[...] + sh_ref[...])       # BN2 + SiLU in-register
    o3 = jnp.dot(w3_ref[...].astype(MXU_DTYPE), a2.astype(MXU_DTYPE),
                 preferred_element_type=jnp.float32)
    o3_ref[...] = o3
    s_ref[...] = jnp.sum(o3, axis=1, keepdims=True)[None]
    q_ref[...] = jnp.sum(o3 * o3, axis=1, keepdims=True)[None]


def _conv3_pass(o2_raw2d, sc2, sh2, w3, tile):
    mid, m2 = o2_raw2d.shape
    cout = w3.shape[0]
    g = m2 // tile
    out_shapes = (
        jax.ShapeDtypeStruct((cout, m2), jnp.float32),
        jax.ShapeDtypeStruct((g, cout, 1), jnp.float32),
        jax.ShapeDtypeStruct((g, cout, 1), jnp.float32),
    )
    return pl.pallas_call(
        _conv3_kernel,
        out_shape=out_shapes,
        grid=(g,),
        in_specs=[
            pl.BlockSpec((mid, tile), lambda i: (0, i)),
            pl.BlockSpec((mid, 1), lambda i: (0, 0)),
            pl.BlockSpec((mid, 1), lambda i: (0, 0)),
            pl.BlockSpec((cout, mid), lambda i: (0, 0)),
        ],
        out_specs=(
            pl.BlockSpec((cout, tile), lambda i: (0, i)),
            pl.BlockSpec((1, cout, 1), lambda i: (i, 0, 0)),
            pl.BlockSpec((1, cout, 1), lambda i: (i, 0, 0)),
        ),
        compiler_params=_cparams(("parallel",)),
    )(o2_raw2d, sc2, sh2, w3)


# ------- P4: BN3+SiLU, BN4+SiLU, (1,2,2) avg-pool and residual add, fused ---- #

def _residual_kernel(o3_ref, o4_ref, sc3_ref, sh3_ref, sc4_ref, sh4_ref, out_ref):
    y3 = _silu(o3_ref[...] * sc3_ref[...] + sh3_ref[...])     # conv3 epilogue
    # conv4 epilogue + (1,2,2) avg-pool: mean of SiLU(BN(o4)) over 4 parity planes
    y4 = _silu(o4_ref[...] * sc4_ref[...] + sh4_ref[...])     # (4, Cout, tile)
    out_ref[...] = y3 + 0.25 * jnp.sum(y4, axis=0)


def _residual_pass(o3_raw, o4ps, sc3, sh3, sc4, sh4, tile):
    cout, m2 = o3_raw.shape
    g = m2 // tile
    return pl.pallas_call(
        _residual_kernel,
        out_shape=jax.ShapeDtypeStruct((cout, m2), jnp.float32),
        grid=(g,),
        in_specs=[
            pl.BlockSpec((cout, tile), lambda i: (0, i)),
            pl.BlockSpec((4, cout, tile), lambda i: (0, 0, i)),
            pl.BlockSpec((cout, 1), lambda i: (0, 0)),
            pl.BlockSpec((cout, 1), lambda i: (0, 0)),
            pl.BlockSpec((cout, 1), lambda i: (0, 0)),
            pl.BlockSpec((cout, 1), lambda i: (0, 0)),
        ],
        out_specs=pl.BlockSpec((cout, tile), lambda i: (0, i)),
        compiler_params=_cparams(("parallel",)),
    )(o3_raw, o4ps, sc3, sh3, sc4, sh4)


# --------------------------------- params ----------------------------------- #

def init_params(key, in_channels, out_channels):
    """Deterministic kaiming_normal_(mode='fan_out', relu) init, bias-free convs.

    Channel-major weight layouts matching the (C, M) activation layout:
      w1: (mid, Cin)            1x1x1 conv
      w2: (2, 3, 3, mid, mid)   (kd, kh, kw, c_out, c_in)
      w3: (Cout, mid)           1x1x1 conv
      w4: (Cout, Cin)           1x1x1 conv
    """
    mid = in_channels // 2
    k1, k2, k3, k4 = jax.random.split(key, 4)

    def kaiming(k, shape, cout, kelems):
        std = (2.0 / (cout * kelems)) ** 0.5
        return jax.random.normal(k, shape, dtype=jnp.float32) * std

    w2 = kaiming(k2, (mid, mid, 2, 3, 3), mid, 2 * 3 * 3)     # PyTorch (Co, Ci, kd, kh, kw)
    return dict(
        w1=kaiming(k1, (mid, in_channels), mid, 1),
        w2=jnp.transpose(w2, (2, 3, 4, 0, 1)),
        w3=kaiming(k3, (out_channels, mid), out_channels, 1),
        w4=kaiming(k4, (out_channels, in_channels), out_channels, 1),
    )


# ------------------------------ forward pass -------------------------------- #

def residual_block_forward(x_ncdhw, params, shrink=True):
    assert shrink  # TODO(synk): shrink=False branch not implemented
    n, cin, d, h, w = x_ncdhw.shape
    assert h % 2 == 0 and w % 2 == 0
    mid = params["w1"].shape[0]
    cout = params["w3"].shape[0]
    ho, wo = h // 2, w // 2
    m = n * d * h * w
    m2 = n * d * ho * wo

    # NCDHW -> channel-major (C, M); C on sublanes, M lane-dense.
    x2d = jnp.transpose(x_ncdhw, (1, 0, 2, 3, 4)).reshape(cin, m).astype(jnp.float32)

    # P1: conv1 + conv4 raw matmuls + BN partial statistics (x read once).
    tile_m = _pick_tile(m)
    o1_raw, o4_raw, s1, q1, s4, q4 = _conv1_conv4_pass(
        x2d, params["w1"], params["w4"], tile_m)
    mean1, inv1 = _bn_stats(s1, q1, float(m))
    mean4, inv4 = _bn_stats(s4, q4, float(m))

    # BN1 (no SiLU) + zero-pad D(1,0) H(1,1) W(1,1) + space-to-depth parity split,
    # so conv2's stride-(1,2,2) taps become contiguous in-kernel slices.  The kd=0/1
    # padded-depth slabs are pre-paired per output depth so every P2 grid step is
    # fully independent (all-parallel grid, no output accumulation readback).
    o1c = (o1_raw.reshape(mid, n, d, h, w) - mean1.reshape(mid, 1, 1, 1, 1)) \
        * inv1.reshape(mid, 1, 1, 1, 1)
    o1p = jnp.pad(o1c, ((0, 0), (0, 0), (1, 0), (1, 1), (1, 1)))
    slabs = o1p.reshape(mid, n, d + 1, ho + 1, 2, wo + 1, 2)
    slabs = jnp.transpose(slabs, (1, 2, 4, 6, 0, 3, 5))       # (n, d+1, hp, wp, mid, Ho+1, Wo+1)
    slabs = slabs.reshape(n, d + 1, 4, mid, ho + 1, wo + 1)
    xpairs = jnp.concatenate([slabs[:, :d], slabs[:, 1:]], axis=2)   # kd=0 planes, kd=1 planes
    xpairs = xpairs.reshape(n * d, 8, mid, ho + 1, wo + 1)

    # P2: conv2 as 18 shifted multiply-accumulates per output slab.
    o2_raw, s2, q2 = _conv2_pass(xpairs, params["w2"], n * d, mid, ho, wo)
    mean2, inv2 = _bn_stats(s2, q2, float(m2))

    # P3: conv3 fused with conv2's BN+SiLU epilogue.
    o2_raw2d = o2_raw.reshape(mid, m2)
    tile_m2 = _pick_tile(m2)
    o3_raw, s3, q3 = _conv3_pass(
        o2_raw2d, inv2.reshape(mid, 1), (-mean2 * inv2).reshape(mid, 1),
        params["w3"], tile_m2)
    mean3, inv3 = _bn_stats(s3, q3, float(m2))

    # Parity-split conv4's raw output so the (1,2,2) average pool is a plain mean
    # of 4 aligned planes (no strided gathers, no separate pool kernel).
    o4ps = o4_raw.reshape(cout, n, d, ho, 2, wo, 2)
    o4ps = jnp.transpose(o4ps, (4, 6, 0, 1, 2, 3, 5)).reshape(4, cout, m2)

    # P4: BN3+SiLU, BN4+SiLU, pooling and residual add fused, lane-dense output.
    out2d = _residual_pass(
        o3_raw, o4ps,
        inv3.reshape(cout, 1), (-mean3 * inv3).reshape(cout, 1),
        inv4.reshape(cout, 1), (-mean4 * inv4).reshape(cout, 1),
        tile_m2,
    )

    out = out2d.reshape(cout, n, d, ho, wo)
    return jnp.transpose(out, (1, 0, 2, 3, 4))                # back to NCDHW


# --------------------- pure-JAX reference (for checking) --------------------- #

def reference_forward(x, params):
    """XLA reference of the PyTorch module (training-mode BN, gamma=1, beta=0)."""
    def bn_silu(y):
        mean = jnp.mean(y, axis=(0, 2, 3, 4), keepdims=True)
        var = jnp.mean((y - mean) ** 2, axis=(0, 2, 3, 4), keepdims=True)
        return jax.nn.silu((y - mean) * jax.lax.rsqrt(var + BN_EPS))

    def conv1x1(y, wt):
        return jnp.einsum("oc,ncdhw->nodhw", wt, y)

    a1 = bn_silu(conv1x1(x, params["w1"]))
    a1p = jnp.pad(a1, ((0, 0), (0, 0), (1, 0), (1, 1), (1, 1)))
    w2 = jnp.transpose(params["w2"], (3, 4, 0, 1, 2))         # (Co, Ci, kd, kh, kw)
    o2 = jax.lax.conv_general_dilated(
        a1p, w2, window_strides=(1, 2, 2), padding="VALID",
        dimension_numbers=("NCDHW", "OIDHW", "NCDHW"))
    a2 = bn_silu(o2)
    y3 = bn_silu(conv1x1(a2, params["w3"]))
    y4 = bn_silu(conv1x1(x, params["w4"]))
    n, co, d, h, w = y4.shape
    pool = y4.reshape(n, co, d, h // 2, 2, w // 2, 2).mean(axis=(4, 6))
    return y3 + pool


# ---------------------------------- main ------------------------------------ #

if __name__ == "__main__":
    key = jax.random.PRNGKey(0)
    kx, kp = jax.random.split(key)

    N, Cin, D, H, W = 2, 4, 4, 16, 16
    Cout = 8

    x = jax.random.normal(kx, (N, Cin, D, H, W), dtype=jnp.float32)
    params = init_params(kp, Cin, Cout)

    forward = jax.jit(residual_block_forward)
    out = jax.block_until_ready(forward(x, params))

    assert out.shape == (N, Cout, D, H // 2, W // 2), out.shape
    assert out.dtype == jnp.float32
    assert bool(jnp.all(jnp.isfinite(out)))

    # Numerical check against the XLA reference.  Tolerance is loose because the
    # kernel's SiLU uses the EUP approximate reciprocal (approx vrcp) for sigmoid.
    ref = jax.block_until_ready(jax.jit(reference_forward)(x, params))
    np.testing.assert_allclose(np.asarray(out), np.asarray(ref), rtol=5e-2, atol=5e-2)

    print("KERNEL_OK")
</pallas_src>

<mosaic_0001>
module attributes {stable_mosaic.version = 11 : i64} {
  func.func @_conv14_kernel(%arg0: i32, %arg1: memref<4x2048xf32, #tpu.memory_space<vmem>>, %arg2: memref<2x4xf32, #tpu.memory_space<vmem>>, %arg3: memref<8x4xf32, #tpu.memory_space<vmem>>, %arg4: memref<2x2048xf32, #tpu.memory_space<vmem>>, %arg5: memref<8x2048xf32, #tpu.memory_space<vmem>>, %arg6: memref<1x2x1xf32, #tpu.memory_space<vmem>>, %arg7: memref<1x2x1xf32, #tpu.memory_space<vmem>>, %arg8: memref<1x8x1xf32, #tpu.memory_space<vmem>>, %arg9: memref<1x8x1xf32, #tpu.memory_space<vmem>>) attributes {dimension_semantics = [#tpu.dimension_semantics<parallel>], iteration_bounds = array<i64: 1>, scalar_prefetch = 0 : i64, scratch_operands = 0 : i64, tpu.core_type = #tpu.core_type<tc>, window_params = [{transform_indices = @transform_0, window_bounds = array<i64: 4, 2048>}, {pipeline_mode = #tpu.pipeline_mode<synchronous>, transform_indices = @transform_1, window_bounds = array<i64: 2, 4>}, {pipeline_mode = #tpu.pipeline_mode<synchronous>, transform_indices = @transform_2, window_bounds = array<i64: 8, 4>}, {transform_indices = @transform_3, window_bounds = array<i64: 2, 2048>}, {transform_indices = @transform_4, window_bounds = array<i64: 8, 2048>}, {transform_indices = @transform_5, window_bounds = array<i64: 1, 2, 1>}, {transform_indices = @transform_6, window_bounds = array<i64: 1, 2, 1>}, {transform_indices = @transform_7, window_bounds = array<i64: 1, 8, 1>}, {transform_indices = @transform_8, window_bounds = array<i64: 1, 8, 1>}]} {
    %c0 = arith.constant 0 : index
    %c0_0 = arith.constant 0 : index
    %0 = vector.load %arg1[%c0, %c0_0] : memref<4x2048xf32, #tpu.memory_space<vmem>>, vector<4x2048xf32>
    %c0_1 = arith.constant 0 : index
    %c0_2 = arith.constant 0 : index
    %1 = vector.load %arg2[%c0_1, %c0_2] : memref<2x4xf32, #tpu.memory_space<vmem>>, vector<2x4xf32>
    %cst = arith.constant dense<0.000000e+00> : vector<2x2048xf32>
    %2 = tpu.matmul %1, %0, %cst {dimension_numbers = #tpu.dot_dimension_numbers<[1], [0], [0], [1], [0, 0, 1, 1], [], []>} : vector<2x4xf32>, vector<4x2048xf32>, vector<2x2048xf32> -> vector<2x2048xf32>
    %c0_3 = arith.constant 0 : index
    %c0_4 = arith.constant 0 : index
    %3 = vector.load %arg3[%c0_3, %c0_4] : memref<8x4xf32, #tpu.memory_space<vmem>>, vector<8x4xf32>
    %cst_5 = arith.constant dense<0.000000e+00> : vector<8x2048xf32>
    %4 = tpu.matmul %3, %0, %cst_5 {dimension_numbers = #tpu.dot_dimension_numbers<[1], [0], [0], [1], [0, 0, 1, 1], [], []>} : vector<8x4xf32>, vector<4x2048xf32>, vector<8x2048xf32> -> vector<8x2048xf32>
    %c0_6 = arith.constant 0 : index
    %c0_7 = arith.constant 0 : index
    %5 = vector.load %arg4[%c0_6, %c0_7] : memref<2x2048xf32, #tpu.memory_space<vmem>>, vector<2x2048xf32>
    tpu.vector_store %arg4[%c0_6, %c0_7], %2 {strides = array<i32>} : memref<2x2048xf32, #tpu.memory_space<vmem>>, vector<2x2048xf32>,
    %c0_8 = arith.constant 0 : index
    %c0_9 = arith.constant 0 : index
    %6 = vector.load %arg5[%c0_8, %c0_9] : memref<8x2048xf32, #tpu.memory_space<vmem>>, vector<8x2048xf32>
    tpu.vector_store %arg5[%c0_8, %c0_9], %4 {strides = array<i32>} : memref<8x2048xf32, #tpu.memory_space<vmem>>, vector<8x2048xf32>,
    %cst_10 = arith.constant dense<0.000000e+00> : vector<2xf32>
    %7 = vector.multi_reduction <add>, %2, %cst_10 [1] : vector<2x2048xf32> to vector<2xf32>
    %8 = vector.shape_cast %7 : vector<2xf32> to vector<2x1xf32>
    %9 = vector.shape_cast %8 : vector<2x1xf32> to vector<1x2x1xf32>
    %c0_11 = arith.constant 0 : index
    %c0_12 = arith.constant 0 : index
    %c0_13 = arith.constant 0 : index
    %10 = vector.load %arg6[%c0_11, %c0_12, %c0_13] : memref<1x2x1xf32, #tpu.memory_space<vmem>>, vector<1x2x1xf32>
    tpu.vector_store %arg6[%c0_11, %c0_12, %c0_13], %9 {strides = array<i32>} : memref<1x2x1xf32, #tpu.memory_space<vmem>>, vector<1x2x1xf32>,
    %11 = arith.mulf %2, %2 : vector<2x2048xf32>
    %cst_14 = arith.constant dense<0.000000e+00> : vector<2xf32>
    %12 = vector.multi_reduction <add>, %11, %cst_14 [1] : vector<2x2048xf32> to vector<2xf32>
    %13 = vector.shape_cast %12 : vector<2xf32> to vector<2x1xf32>
    %14 = vector.shape_cast %13 : vector<2x1xf32> to vector<1x2x1xf32>
    %c0_15 = arith.constant 0 : index
    %c0_16 = arith.constant 0 : index
    %c0_17 = arith.constant 0 : index
    %15 = vector.load %arg7[%c0_15, %c0_16, %c0_17] : memref<1x2x1xf32, #tpu.memory_space<vmem>>, vector<1x2x1xf32>
    tpu.vector_store %arg7[%c0_15, %c0_16, %c0_17], %14 {strides = array<i32>} : memref<1x2x1xf32, #tpu.memory_space<vmem>>, vector<1x2x1xf32>,
    %cst_18 = arith.constant dense<0.000000e+00> : vector<8xf32>
    %16 = vector.multi_reduction <add>, %4, %cst_18 [1] : vector<8x2048xf32> to vector<8xf32>
    %17 = vector.shape_cast %16 : vector<8xf32> to vector<8x1xf32>
    %18 = vector.shape_cast %17 : vector<8x1xf32> to vector<1x8x1xf32>
    %c0_19 = arith.constant 0 : index
    %c0_20 = arith.constant 0 : index
    %c0_21 = arith.constant 0 : index
    %19 = vector.load %arg8[%c0_19, %c0_20, %c0_21] : memref<1x8x1xf32, #tpu.memory_space<vmem>>, vector<1x8x1xf32>
    tpu.vector_store %arg8[%c0_19, %c0_20, %c0_21], %18 {strides = array<i32>} : memref<1x8x1xf32, #tpu.memory_space<vmem>>, vector<1x8x1xf32>,
    %20 = arith.mulf %4, %4 : vector<8x2048xf32>
    %cst_22 = arith.constant dense<0.000000e+00> : vector<8xf32>
    %21 = vector.multi_reduction <add>, %20, %cst_22 [1] : vector<8x2048xf32> to vector<8xf32>
    %22 = vector.shape_cast %21 : vector<8xf32> to vector<8x1xf32>
    %23 = vector.shape_cast %22 : vector<8x1xf32> to vector<1x8x1xf32>
    %c0_23 = arith.constant 0 : index
    %c0_24 = arith.constant 0 : index
    %c0_25 = arith.constant 0 : index
    %24 = vector.load %arg9[%c0_23, %c0_24, %c0_25] : memref<1x8x1xf32, #tpu.memory_space<vmem>>, vector<1x8x1xf32>
    tpu.vector_store %arg9[%c0_23, %c0_24, %c0_25], %23 {strides = array<i32>} : memref<1x8x1xf32, #tpu.memory_space<vmem>>, vector<1x8x1xf32>,
    return
  }
  func.func @transform_0(%arg0: i32) -> (i32, i32) {
    %c0_i32 = arith.constant 0 : i32
    %c0_i32_0 = arith.constant 0 : i32
    return %c0_i32, %arg0 : i32, i32
  }
  func.func @transform_1(%arg0: i32) -> (i32, i32) {
    %c0_i32 = arith.constant 0 : i32
    %c0_i32_0 = arith.constant 0 : i32
    %c0_i32_1 = arith.constant 0 : i32
    return %c0_i32, %c0_i32_0 : i32, i32
  }
  func.func @transform_2(%arg0: i32) -> (i32, i32) {
    %c0_i32 = arith.constant 0 : i32
    %c0_i32_0 = arith.constant 0 : i32
    %c0_i32_1 = arith.constant 0 : i32
    return %c0_i32, %c0_i32_0 : i32, i32
  }
  func.func @transform_3(%arg0: i32) -> (i32, i32) {
    %c0_i32 = arith.constant 0 : i32
    %c0_i32_0 = arith.constant 0 : i32
    return %c0_i32, %arg0 : i32, i32
  }
  func.func @transform_4(%arg0: i32) -> (i32, i32) {
    %c0_i32 = arith.constant 0 : i32
    %c0_i32_0 = arith.constant 0 : i32
    return %c0_i32, %arg0 : i32, i32
  }
  func.func @transform_5(%arg0: i32) -> (i32, i32, i32) {
    %c0_i32 = arith.constant 0 : i32
    %c0_i32_0 = arith.constant 0 : i32
    %c0_i32_1 = arith.constant 0 : i32
    return %arg0, %c0_i32, %c0_i32_0 : i32, i32, i32
  }
  func.func @transform_6(%arg0: i32) -> (i32, i32, i32) {
    %c0_i32 = arith.constant 0 : i32
    %c0_i32_0 = arith.constant 0 : i32
    %c0_i32_1 = arith.constant 0 : i32
    return %arg0, %c0_i32, %c0_i32_0 : i32, i32, i32
  }
  func.func @transform_7(%arg0: i32) -> (i32, i32, i32) {
    %c0_i32 = arith.constant 0 : i32
    %c0_i32_0 = arith.constant 0 : i32
    %c0_i32_1 = arith.constant 0 : i32
    return %arg0, %c0_i32, %c0_i32_0 : i32, i32, i32
  }
  func.func @transform_8(%arg0: i32) -> (i32, i32, i32) {
    %c0_i32 = arith.constant 0 : i32
    %c0_i32_0 = arith.constant 0 : i32
    %c0_i32_1 = arith.constant 0 : i32
    return %arg0, %c0_i32, %c0_i32_0 : i32, i32, i32
  }
}

module attributes {stable_mosaic.version = 11 : i64} {
  func.func @_conv2_kernel(%arg0: i32, %arg1: memref<1x8x2x9x9xf32, #tpu.memory_space<vmem>>, %arg2: memref<2x3x3x2x2xf32, #tpu.memory_space<vmem>>, %arg3: memref<2x1x8x8xf32, #tpu.memory_space<vmem>>, %arg4: memref<1x2x1xf32, #tpu.memory_space<vmem>>, %arg5: memref<1x2x1xf32, #tpu.memory_space<vmem>>) attributes {dimension_semantics = [#tpu.dimension_semantics<parallel>], iteration_bounds = array<i64: 8>, scalar_prefetch = 0 : i64, scratch_operands = 0 : i64, tpu.core_type = #tpu.core_type<tc>, window_params = [{transform_indices = @transform_0, window_bounds = array<i64: 1, 8, 2, 9, 9>}, {pipeline_mode = #tpu.pipeline_mode<synchronous>, transform_indices = @transform_1, window_bounds = array<i64: 2, 3, 3, 2, 2>}, {transform_indices = @transform_2, window_bounds = array<i64: 2, 1, 8, 8>}, {transform_indices = @transform_3, window_bounds = array<i64: 1, 2, 1>}, {transform_indices = @transform_4, window_bounds = array<i64: 1, 2, 1>}]} {
    %c0 = arith.constant 0 : index
    %c0_0 = arith.constant 0 : index
    %c0_1 = arith.constant 0 : index
    %c0_2 = arith.constant 0 : index
    %c0_3 = arith.constant 0 : index
    %0 = vector.load %arg1[%c0, %c0_0, %c0_1, %c0_2, %c0_3] : memref<1x8x2x9x9xf32, #tpu.memory_space<vmem>>, vector<1x8x2x9x9xf32>
    %1 = vector.shape_cast %0 : vector<1x8x2x9x9xf32> to vector<8x2x9x9xf32>
    %cst = arith.constant 0.000000e+00 : f32
    %2 = vector.broadcast %cst : f32 to vector<8x2x9x9xf32>
    %3 = arith.subf %2, %1 : vector<8x2x9x9xf32>
    %4 = math.exp %3 : vector<8x2x9x9xf32>
    %cst_4 = arith.constant 1.000000e+00 : f32
    %5 = vector.broadcast %cst_4 : f32 to vector<8x2x9x9xf32>
    %6 = arith.addf %5, %4 : vector<8x2x9x9xf32>
    %7 = tpu.reciprocal %6 {approx = true} : vector<8x2x9x9xf32> -> vector<8x2x9x9xf32>
    %8 = arith.mulf %1, %7 : vector<8x2x9x9xf32>
    %cst_5 = arith.constant 0.000000e+00 : f32
    %9 = vector.broadcast %cst_5 : f32 to vector<2x8x8xf32>
    %10 = vector.extract_strided_slice %8 {offsets = [0, 0, 0, 0], sizes = [1, 2, 8, 8], strides = [1, 1, 1, 1]} : vector<8x2x9x9xf32> to vector<1x2x8x8xf32>
    %11 = vector.shape_cast %10 : vector<1x2x8x8xf32> to vector<2x8x8xf32>
    %c0_6 = arith.constant 0 : index
    %c0_7 = arith.constant 0 : index
    %c0_8 = arith.constant 0 : index
    %c0_9 = arith.constant 0 : index
    %c0_10 = arith.constant 0 : index
    %12 = vector.load %arg2[%c0_6, %c0_7, %c0_8, %c0_9, %c0_10] : memref<2x3x3x2x2xf32, #tpu.memory_space<vmem>>, vector<1x1x1x2x2xf32>
    %13 = vector.shape_cast %12 : vector<1x1x1x2x2xf32> to vector<2x2xf32>
    %14 = vector.shape_cast %13 : vector<2x2xf32> to vector<2x2x1x1xf32>
    %15 = vector.shape_cast %11 : vector<2x8x8xf32> to vector<1x2x8x8xf32>
    %16 = vector.broadcast %14 : vector<2x2x1x1xf32> to vector<2x2x8x8xf32>
    %17 = vector.broadcast %15 : vector<1x2x8x8xf32> to vector<2x2x8x8xf32>
    %18 = arith.mulf %16, %17 : vector<2x2x8x8xf32>
    %cst_11 = arith.constant dense<0.000000e+00> : vector<2x8x8xf32>
    %19 = vector.multi_reduction <add>, %18, %cst_11 [1] : vector<2x2x8x8xf32> to vector<2x8x8xf32>
    %20 = arith.addf %9, %19 : vector<2x8x8xf32>
    %21 = vector.extract_strided_slice %8 {offsets = [1, 0, 0, 0], sizes = [1, 2, 8, 8], strides = [1, 1, 1, 1]} : vector<8x2x9x9xf32> to vector<1x2x8x8xf32>
    %22 = vector.shape_cast %21 : vector<1x2x8x8xf32> to vector<2x8x8xf32>
    %c0_12 = arith.constant 0 : index
    %c0_13 = arith.constant 0 : index
    %c1 = arith.constant 1 : index
    %c0_14 = arith.constant 0 : index
    %c0_15 = arith.constant 0 : index
    %23 = vector.load %arg2[%c0_12, %c0_13, %c1, %c0_14, %c0_15] : memref<2x3x3x2x2xf32, #tpu.memory_space<vmem>>, vector<1x1x1x2x2xf32>
    %24 = vector.shape_cast %23 : vector<1x1x1x2x2xf32> to vector<2x2xf32>
    %25 = vector.shape_cast %24 : vector<2x2xf32> to vector<2x2x1x1xf32>
    %26 = vector.shape_cast %22 : vector<2x8x8xf32> to vector<1x2x8x8xf32>
    %27 = vector.broadcast %25 : vector<2x2x1x1xf32> to vector<2x2x8x8xf32>
    %28 = vector.broadcast %26 : vector<1x2x8x8xf32> to vector<2x2x8x8xf32>
    %29 = arith.mulf %27, %28 : vector<2x2x8x8xf32>
    %cst_16 = arith.constant dense<0.000000e+00> : vector<2x8x8xf32>
    %30 = vector.multi_reduction <add>, %29, %cst_16 [1] : vector<2x2x8x8xf32> to vector<2x8x8xf32>
    %31 = arith.addf %20, %30 : vector<2x8x8xf32>
    %32 = vector.extract_strided_slice %8 {offsets = [0, 0, 0, 1], sizes = [1, 2, 8, 8], strides = [1, 1, 1, 1]} : vector<8x2x9x9xf32> to vector<1x2x8x8xf32>
    %33 = vector.shape_cast %32 : vector<1x2x8x8xf32> to vector<2x8x8xf32>
    %c0_17 = arith.constant 0 : index
    %c0_18 = arith.constant 0 : index
    %c2 = arith.constant 2 : index
    %c0_19 = arith.constant 0 : index
    %c0_20 = arith.constant 0 : index
    %34 = vector.load %arg2[%c0_17, %c0_18, %c2, %c0_19, %c0_20] : memref<2x3x3x2x2xf32, #tpu.memory_space<vmem>>, vector<1x1x1x2x2xf32>
    %35 = vector.shape_cast %34 : vector<1x1x1x2x2xf32> to vector<2x2xf32>
    %36 = vector.shape_cast %35 : vector<2x2xf32> to vector<2x2x1x1xf32>
    %37 = vector.shape_cast %33 : vector<2x8x8xf32> to vector<1x2x8x8xf32>
    %38 = vector.broadcast %36 : vector<2x2x1x1xf32> to vector<2x2x8x8xf32>
    %39 = vector.broadcast %37 : vector<1x2x8x8xf32> to vector<2x2x8x8xf32>
    %40 = arith.mulf %38, %39 : vector<2x2x8x8xf32>
    %cst_21 = arith.constant dense<0.000000e+00> : vector<2x8x8xf32>
    %41 = vector.multi_reduction <add>, %40, %cst_21 [1] : vector<2x2x8x8xf32> to vector<2x8x8xf32>
    %42 = arith.addf %31, %41 : vector<2x8x8xf32>
    %43 = vector.extract_strided_slice %8 {offsets = [2, 0, 0, 0], sizes = [1, 2, 8, 8], strides = [1, 1, 1, 1]} : vector<8x2x9x9xf32> to vector<1x2x8x8xf32>
    %44 = vector.shape_cast %43 : vector<1x2x8x8xf32> to vector<2x8x8xf32>
    %c0_22 = arith.constant 0 : index
    %c1_23 = arith.constant 1 : index
    %c0_24 = arith.constant 0 : index
    %c0_25 = arith.constant 0 : index
    %c0_26 = arith.constant 0 : index
    %45 = vector.load %arg2[%c0_22, %c1_23, %c0_24, %c0_25, %c0_26] : memref<2x3x3x2x2xf32, #tpu.memory_space<vmem>>, vector<1x1x1x2x2xf32>
    %46 = vector.shape_cast %45 : vector<1x1x1x2x2xf32> to vector<2x2xf32>
    %47 = vector.shape_cast %46 : vector<2x2xf32> to vector<2x2x1x1xf32>
    %48 = vector.shape_cast %44 : vector<2x8x8xf32> to vector<1x2x8x8xf32>
    %49 = vector.broadcast %47 : vector<2x2x1x1xf32> to vector<2x2x8x8xf32>
    %50 = vector.broadcast %48 : vector<1x2x8x8xf32> to vector<2x2x8x8xf32>
    %51 = arith.mulf %49, %50 : vector<2x2x8x8xf32>
    %cst_27 = arith.constant dense<0.000000e+00> : vector<2x8x8xf32>
    %52 = vector.multi_reduction <add>, %51, %cst_27 [1] : vector<2x2x8x8xf32> to vector<2x8x8xf32>
    %53 = arith.addf %42, %52 : vector<2x8x8xf32>
    %54 = vector.extract_strided_slice %8 {offsets = [3, 0, 0, 0], sizes = [1, 2, 8, 8], strides = [1, 1, 1, 1]} : vector<8x2x9x9xf32> to vector<1x2x8x8xf32>
    %55 = vector.shape_cast %54 : vector<1x2x8x8xf32> to vector<2x8x8xf32>
    %c0_28 = arith.constant 0 : index
    %c1_29 = arith.constant 1 : index
    %c1_30 = arith.constant 1 : index
    %c0_31 = arith.constant 0 : index
    %c0_32 = arith.constant 0 : index
    %56 = vector.load %arg2[%c0_28, %c1_29, %c1_30, %c0_31, %c0_32] : memref<2x3x3x2x2xf32, #tpu.memory_space<vmem>>, vector<1x1x1x2x2xf32>
    %57 = vector.shape_cast %56 : vector<1x1x1x2x2xf32> to vector<2x2xf32>
    %58 = vector.shape_cast %57 : vector<2x2xf32> to vector<2x2x1x1xf32>
    %59 = vector.shape_cast %55 : vector<2x8x8xf32> to vector<1x2x8x8xf32>
    %60 = vector.broadcast %58 : vector<2x2x1x1xf32> to vector<2x2x8x8xf32>
    %61 = vector.broadcast %59 : vector<1x2x8x8xf32> to vector<2x2x8x8xf32>
    %62 = arith.mulf %60, %61 : vector<2x2x8x8xf32>
    %cst_33 = arith.constant dense<0.000000e+00> : vector<2x8x8xf32>
    %63 = vector.multi_reduction <add>, %62, %cst_33 [1] : vector<2x2x8x8xf32> to vector<2x8x8xf32>
    %64 = arith.addf %53, %63 : vector<2x8x8xf32>
    %65 = vector.extract_strided_slice %8 {offsets = [2, 0, 0, 1], sizes = [1, 2, 8, 8], strides = [1, 1, 1, 1]} : vector<8x2x9x9xf32> to vector<1x2x8x8xf32>
    %66 = vector.shape_cast %65 : vector<1x2x8x8xf32> to vector<2x8x8xf32>
    %c0_34 = arith.constant 0 : index
    %c1_35 = arith.constant 1 : index
    %c2_36 = arith.constant 2 : index
    %c0_37 = arith.constant 0 : index
    %c0_38 = arith.constant 0 : index
    %67 = vector.load %arg2[%c0_34, %c1_35, %c2_36, %c0_37, %c0_38] : memref<2x3x3x2x2xf32, #tpu.memory_space<vmem>>, vector<1x1x1x2x2xf32>
    %68 = vector.shape_cast %67 : vector<1x1x1x2x2xf32> to vector<2x2xf32>
    %69 = vector.shape_cast %68 : vector<2x2xf32> to vector<2x2x1x1xf32>
    %70 = vector.shape_cast %66 : vector<2x8x8xf32> to vector<1x2x8x8xf32>
    %71 = vector.broadcast %69 : vector<2x2x1x1xf32> to vector<2x2x8x8xf32>
    %72 = vector.broadcast %70 : vector<1x2x8x8xf32> to vector<2x2x8x8xf32>
    %73 = arith.mulf %71, %72 : vector<2x2x8x8xf32>
    %cst_39 = arith.constant dense<0.000000e+00> : vector<2x8x8xf32>
    %74 = vector.multi_reduction <add>, %73, %cst_39 [1] : vector<2x2x8x8xf32> to vector<2x8x8xf32>
    %75 = arith.addf %64, %74 : vector<2x8x8xf32>
    %76 = vector.extract_strided_slice %8 {offsets = [0, 0, 1, 0], sizes = [1, 2, 8, 8], strides = [1, 1, 1, 1]} : vector<8x2x9x9xf32> to vector<1x2x8x8xf32>
    %77 = vector.shape_cast %76 : vector<1x2x8x8xf32> to vector<2x8x8xf32>
    %c0_40 = arith.constant 0 : index
    %c2_41 = arith.constant 2 : index
    %c0_42 = arith.constant 0 : index
    %c0_43 = arith.constant 0 : index
    %c0_44 = arith.constant 0 : index
    %78 = vector.load %arg2[%c0_40, %c2_41, %c0_42, %c0_43, %c0_44] : memref<2x3x3x2x2xf32, #tpu.memory_space<vmem>>, vector<1x1x1x2x2xf32>
    %79 = vector.shape_cast %78 : vector<1x1x1x2x2xf32> to vector<2x2xf32>
    %80 = vector.shape_cast %79 : vector<2x2xf32> to vector<2x2x1x1xf32>
    %81 = vector.shape_cast %77 : vector<2x8x8xf32> to vector<1x2x8x8xf32>
    %82 = vector.broadcast %80 : vector<2x2x1x1xf32> to vector<2x2x8x8xf32>
    %83 = vector.broadcast %81 : vector<1x2x8x8xf32> to vector<2x2x8x8xf32>
    %84 = arith.mulf %82, %83 : vector<2x2x8x8xf32>
    %cst_45 = arith.constant dense<0.000000e+00> : vector<2x8x8xf32>
    %85 = vector.multi_reduction <add>, %84, %cst_45 [1] : vector<2x2x8x8xf32> to vector<2x8x8xf32>
    %86 = arith.addf %75, %85 : vector<2x8x8xf32>
    %87 = vector.extract_strided_slice %8 {offsets = [1, 0, 1, 0], sizes = [1, 2, 8, 8], strides = [1, 1, 1, 1]} : vector<8x2x9x9xf32> to vector<1x2x8x8xf32>
    %88 = vector.shape_cast %87 : vector<1x2x8x8xf32> to vector<2x8x8xf32>
    %c0_46 = arith.constant 0 : index
    %c2_47 = arith.constant 2 : index
    %c1_48 = arith.constant 1 : index
    %c0_49 = arith.constant 0 : index
    %c0_50 = arith.constant 0 : index
    %89 = vector.load %arg2[%c0_46, %c2_47, %c1_48, %c0_49, %c0_50] : memref<2x3x3x2x2xf32, #tpu.memory_space<vmem>>, vector<1x1x1x2x2xf32>
    %90 = vector.shape_cast %89 : vector<1x1x1x2x2xf32> to vector<2x2xf32>
    %91 = vector.shape_cast %90 : vector<2x2xf32> to vector<2x2x1x1xf32>
    %92 = vector.shape_cast %88 : vector<2x8x8xf32> to vector<1x2x8x8xf32>
    %93 = vector.broadcast %91 : vector<2x2x1x1xf32> to vector<2x2x8x8xf32>
    %94 = vector.broadcast %92 : vector<1x2x8x8xf32> to vector<2x2x8x8xf32>
    %95 = arith.mulf %93, %94 : vector<2x2x8x8xf32>
    %cst_51 = arith.constant dense<0.000000e+00> : vector<2x8x8xf32>
    %96 = vector.multi_reduction <add>, %95, %cst_51 [1] : vector<2x2x8x8xf32> to vector<2x8x8xf32>
    %97 = arith.addf %86, %96 : vector<2x8x8xf32>
    %98 = vector.extract_strided_slice %8 {offsets = [0, 0, 1, 1], sizes = [1, 2, 8, 8], strides = [1, 1, 1, 1]} : vector<8x2x9x9xf32> to vector<1x2x8x8xf32>
    %99 = vector.shape_cast %98 : vector<1x2x8x8xf32> to vector<2x8x8xf32>
    %c0_52 = arith.constant 0 : index
    %c2_53 = arith.constant 2 : index
    %c2_54 = arith.constant 2 : index
    %c0_55 = arith.constant 0 : index
    %c0_56 = arith.constant 0 : index
    %100 = vector.load %arg2[%c0_52, %c2_53, %c2_54, %c0_55, %c0_56] : memref<2x3x3x2x2xf32, #tpu.memory_space<vmem>>, vector<1x1x1x2x2xf32>
    %101 = vector.shape_cast %100 : vector<1x1x1x2x2xf32> to vector<2x2xf32>
    %102 = vector.shape_cast %101 : vector<2x2xf32> to vector<2x2x1x1xf32>
    %103 = vector.shape_cast %99 : vector<2x8x8xf32> to vector<1x2x8x8xf32>
    %104 = vector.broadcast %102 : vector<2x2x1x1xf32> to vector<2x2x8x8xf32>
    %105 = vector.broadcast %103 : vector<1x2x8x8xf32> to vector<2x2x8x8xf32>
    %106 = arith.mulf %104, %105 : vector<2x2x8x8xf32>
    %cst_57 = arith.constant dense<0.000000e+00> : vector<2x8x8xf32>
    %107 = vector.multi_reduction <add>, %106, %cst_57 [1] : vector<2x2x8x8xf32> to vector<2x8x8xf32>
    %108 = arith.addf %97, %107 : vector<2x8x8xf32>
    %109 = vector.extract_strided_slice %8 {offsets = [4, 0, 0, 0], sizes = [1, 2, 8, 8], strides = [1, 1, 1, 1]} : vector<8x2x9x9xf32> to vector<1x2x8x8xf32>
    %110 = vector.shape_cast %109 : vector<1x2x8x8xf32> to vector<2x8x8xf32>
    %c1_58 = arith.constant 1 : index
    %c0_59 = arith.constant 0 : index
    %c0_60 = arith.constant 0 : index
    %c0_61 = arith.constant 0 : index
    %c0_62 = arith.constant 0 : index
    %111 = vector.load %arg2[%c1_58, %c0_59, %c0_60, %c0_61, %c0_62] : memref<2x3x3x2x2xf32, #tpu.memory_space<vmem>>, vector<1x1x1x2x2xf32>
    %112 = vector.shape_cast %111 : vector<1x1x1x2x2xf32> to vector<2x2xf32>
    %113 = vector.shape_cast %112 : vector<2x2xf32> to vector<2x2x1x1xf32>
    %114 = vector.shape_cast %110 : vector<2x8x8xf32> to vector<1x2x8x8xf32>
    %115 = vector.broadcast %113 : vector<2x2x1x1xf32> to vector<2x2x8x8xf32>
    %116 = vector.broadcast %114 : vector<1x2x8x8xf32> to vector<2x2x8x8xf32>
    %117 = arith.mulf %115, %116 : vector<2x2x8x8xf32>
    %cst_63 = arith.constant dense<0.000000e+00> : vector<2x8x8xf32>
    %118 = vector.multi_reduction <add>, %117, %cst_63 [1] : vector<2x2x8x8xf32> to vector<2x8x8xf32>
    %119 = arith.addf %108, %118 : vector<2x8x8xf32>
    %120 = vector.extract_strided_slice %8 {offsets = [5, 0, 0, 0], sizes = [1, 2, 8, 8], strides = [1, 1, 1, 1]} : vector<8x2x9x9xf32> to vector<1x2x8x8xf32>
    %121 = vector.shape_cast %120 : vector<1x2x8x8xf32> to vector<2x8x8xf32>
    %c1_64 = arith.constant 1 : index
    %c0_65 = arith.constant 0 : index
    %c1_66 = arith.constant 1 : index
    %c0_67 = arith.constant 0 : index
    %c0_68 = arith.constant 0 : index
    %122 = vector.load %arg2[%c1_64, %c0_65, %c1_66, %c0_67, %c0_68] : memref<2x3x3x2x2xf32, #tpu.memory_space<vmem>>, vector<1x1x1x2x2xf32>
    %123 = vector.shape_cast %122 : vector<1x1x1x2x2xf32> to vector<2x2xf32>
    %124 = vector.shape_cast %123 : vector<2x2xf32> to vector<2x2x1x1xf32>
    %125 = vector.shape_cast %121 : vector<2x8x8xf32> to vector<1x2x8x8xf32>
    %126 = vector.broadcast %124 : vector<2x2x1x1xf32> to vector<2x2x8x8xf32>
    %127 = vector.broadcast %125 : vector<1x2x8x8xf32> to vector<2x2x8x8xf32>
    %128 = arith.mulf %126, %127 : vector<2x2x8x8xf32>
    %cst_69 = arith.constant dense<0.000000e+00> : vector<2x8x8xf32>
    %129 = vector.multi_reduction <add>, %128, %cst_69 [1] : vector<2x2x8x8xf32> to vector<2x8x8xf32>
    %130 = arith.addf %119, %129 : vector<2x8x8xf32>
    %131 = vector.extract_strided_slice %8 {offsets = [4, 0, 0, 1], sizes = [1, 2, 8, 8], strides = [1, 1, 1, 1]} : vector<8x2x9x9xf32> to vector<1x2x8x8xf32>
    %132 = vector.shape_cast %131 : vector<1x2x8x8xf32> to vector<2x8x8xf32>
    %c1_70 = arith.constant 1 : index
    %c0_71 = arith.constant 0 : index
    %c2_72 = arith.constant 2 : index
    %c0_73 = arith.constant 0 : index
    %c0_74 = arith.constant 0 : index
    %133 = vector.load %arg2[%c1_70, %c0_71, %c2_72, %c0_73, %c0_74] : memref<2x3x3x2x2xf32, #tpu.memory_space<vmem>>, vector<1x1x1x2x2xf32>
    %134 = vector.shape_cast %133 : vector<1x1x1x2x2xf32> to vector<2x2xf32>
    %135 = vector.shape_cast %134 : vector<2x2xf32> to vector<2x2x1x1xf32>
    %136 = vector.shape_cast %132 : vector<2x8x8xf32> to vector<1x2x8x8xf32>
    %137 = vector.broadcast %135 : vector<2x2x1x1xf32> to vector<2x2x8x8xf32>
    %138 = vector.broadcast %136 : vector<1x2x8x8xf32> to vector<2x2x8x8xf32>
    %139 = arith.mulf %137, %138 : vector<2x2x8x8xf32>
    %cst_75 = arith.constant dense<0.000000e+00> : vector<2x8x8xf32>
    %140 = vector.multi_reduction <add>, %139, %cst_75 [1] : vector<2x2x8x8xf32> to vector<2x8x8xf32>
    %141 = arith.addf %130, %140 : vector<2x8x8xf32>
    %142 = vector.extract_strided_slice %8 {offsets = [6, 0, 0, 0], sizes = [1, 2, 8, 8], strides = [1, 1, 1, 1]} : vector<8x2x9x9xf32> to vector<1x2x8x8xf32>
    %143 = vector.shape_cast %142 : vector<1x2x8x8xf32> to vector<2x8x8xf32>
    %c1_76 = arith.constant 1 : index
    %c1_77 = arith.constant 1 : index
    %c0_78 = arith.constant 0 : index
    %c0_79 = arith.constant 0 : index
    %c0_80 = arith.constant 0 : index
    %144 = vector.load %arg2[%c1_76, %c1_77, %c0_78, %c0_79, %c0_80] : memref<2x3x3x2x2xf32, #tpu.memory_space<vmem>>, vector<1x1x1x2x2xf32>
    %145 = vector.shape_cast %144 : vector<1x1x1x2x2xf32> to vector<2x2xf32>
    %146 = vector.shape_cast %145 : vector<2x2xf32> to vector<2x2x1x1xf32>
    %147 = vector.shape_cast %143 : vector<2x8x8xf32> to vector<1x2x8x8xf32>
    %148 = vector.broadcast %146 : vector<2x2x1x1xf32> to vector<2x2x8x8xf32>
    %149 = vector.broadcast %147 : vector<1x2x8x8xf32> to vector<2x2x8x8xf32>
    %150 = arith.mulf %148, %149 : vector<2x2x8x8xf32>
    %cst_81 = arith.constant dense<0.000000e+00> : vector<2x8x8xf32>
    %151 = vector.multi_reduction <add>, %150, %cst_81 [1] : vector<2x2x8x8xf32> to vector<2x8x8xf32>
    %152 = arith.addf %141, %151 : vector<2x8x8xf32>
    %153 = vector.extract_strided_slice %8 {offsets = [7, 0, 0, 0], sizes = [1, 2, 8, 8], strides = [1, 1, 1, 1]} : vector<8x2x9x9xf32> to vector<1x2x8x8xf32>
    %154 = vector.shape_cast %153 : vector<1x2x8x8xf32> to vector<2x8x8xf32>
    %c1_82 = arith.constant 1 : index
    %c1_83 = arith.constant 1 : index
    %c1_84 = arith.constant 1 : index
    %c0_85 = arith.constant 0 : index
    %c0_86 = arith.constant 0 : index
    %155 = vector.load %arg2[%c1_82, %c1_83, %c1_84, %c0_85, %c0_86] : memref<2x3x3x2x2xf32, #tpu.memory_space<vmem>>, vector<1x1x1x2x2xf32>
    %156 = vector.shape_cast %155 : vector<1x1x1x2x2xf32> to vector<2x2xf32>
    %157 = vector.shape_cast %156 : vector<2x2xf32> to vector<2x2x1x1xf32>
    %158 = vector.shape_cast %154 : vector<2x8x8xf32> to vector<1x2x8x8xf32>
    %159 = vector.broadcast %157 : vector<2x2x1x1xf32> to vector<2x2x8x8xf32>
    %160 = vector.broadcast %158 : vector<1x2x8x8xf32> to vector<2x2x8x8xf32>
    %161 = arith.mulf %159, %160 : vector<2x2x8x8xf32>
    %cst_87 = arith.constant dense<0.000000e+00> : vector<2x8x8xf32>
    %162 = vector.multi_reduction <add>, %161, %cst_87 [1] : vector<2x2x8x8xf32> to vector<2x8x8xf32>
    %163 = arith.addf %152, %162 : vector<2x8x8xf32>
    %164 = vector.extract_strided_slice %8 {offsets = [6, 0, 0, 1], sizes = [1, 2, 8, 8], strides = [1, 1, 1, 1]} : vector<8x2x9x9xf32> to vector<1x2x8x8xf32>
    %165 = vector.shape_cast %164 : vector<1x2x8x8xf32> to vector<2x8x8xf32>
    %c1_88 = arith.constant 1 : index
    %c1_89 = arith.constant 1 : index
    %c2_90 = arith.constant 2 : index
    %c0_91 = arith.constant 0 : index
    %c0_92 = arith.constant 0 : index
    %166 = vector.load %arg2[%c1_88, %c1_89, %c2_90, %c0_91, %c0_92] : memref<2x3x3x2x2xf32, #tpu.memory_space<vmem>>, vector<1x1x1x2x2xf32>
    %167 = vector.shape_cast %166 : vector<1x1x1x2x2xf32> to vector<2x2xf32>
    %168 = vector.shape_cast %167 : vector<2x2xf32> to vector<2x2x1x1xf32>
    %169 = vector.shape_cast %165 : vector<2x8x8xf32> to vector<1x2x8x8xf32>
    %170 = vector.broadcast %168 : vector<2x2x1x1xf32> to vector<2x2x8x8xf32>
    %171 = vector.broadcast %169 : vector<1x2x8x8xf32> to vector<2x2x8x8xf32>
    %172 = arith.mulf %170, %171 : vector<2x2x8x8xf32>
    %cst_93 = arith.constant dense<0.000000e+00> : vector<2x8x8xf32>
    %173 = vector.multi_reduction <add>, %172, %cst_93 [1] : vector<2x2x8x8xf32> to vector<2x8x8xf32>
    %174 = arith.addf %163, %173 : vector<2x8x8xf32>
    %175 = vector.extract_strided_slice %8 {offsets = [4, 0, 1, 0], sizes = [1, 2, 8, 8], strides = [1, 1, 1, 1]} : vector<8x2x9x9xf32> to vector<1x2x8x8xf32>
    %176 = vector.shape_cast %175 : vector<1x2x8x8xf32> to vector<2x8x8xf32>
    %c1_94 = arith.constant 1 : index
    %c2_95 = arith.constant 2 : index
    %c0_96 = arith.constant 0 : index
    %c0_97 = arith.constant 0 : index
    %c0_98 = arith.constant 0 : index
    %177 = vector.load %arg2[%c1_94, %c2_95, %c0_96, %c0_97, %c0_98] : memref<2x3x3x2x2xf32, #tpu.memory_space<vmem>>, vector<1x1x1x2x2xf32>
    %178 = vector.shape_cast %177 : vector<1x1x1x2x2xf32> to vector<2x2xf32>
    %179 = vector.shape_cast %178 : vector<2x2xf32> to vector<2x2x1x1xf32>
    %180 = vector.shape_cast %176 : vector<2x8x8xf32> to vector<1x2x8x8xf32>
    %181 = vector.broadcast %179 : vector<2x2x1x1xf32> to vector<2x2x8x8xf32>
    %182 = vector.broadcast %180 : vector<1x2x8x8xf32> to vector<2x2x8x8xf32>
    %183 = arith.mulf %181, %182 : vector<2x2x8x8xf32>
    %cst_99 = arith.constant dense<0.000000e+00> : vector<2x8x8xf32>
    %184 = vector.multi_reduction <add>, %183, %cst_99 [1] : vector<2x2x8x8xf32> to vector<2x8x8xf32>
    %185 = arith.addf %174, %184 : vector<2x8x8xf32>
    %186 = vector.extract_strided_slice %8 {offsets = [5, 0, 1, 0], sizes = [1, 2, 8, 8], strides = [1, 1, 1, 1]} : vector<8x2x9x9xf32> to vector<1x2x8x8xf32>
    %187 = vector.shape_cast %186 : vector<1x2x8x8xf32> to vector<2x8x8xf32>
    %c1_100 = arith.constant 1 : index
    %c2_101 = arith.constant 2 : index
    %c1_102 = arith.constant 1 : index
    %c0_103 = arith.constant 0 : index
    %c0_104 = arith.constant 0 : index
    %188 = vector.load %arg2[%c1_100, %c2_101, %c1_102, %c0_103, %c0_104] : memref<2x3x3x2x2xf32, #tpu.memory_space<vmem>>, vector<1x1x1x2x2xf32>
    %189 = vector.shape_cast %188 : vector<1x1x1x2x2xf32> to vector<2x2xf32>
    %190 = vector.shape_cast %189 : vector<2x2xf32> to vector<2x2x1x1xf32>
    %191 = vector.shape_cast %187 : vector<2x8x8xf32> to vector<1x2x8x8xf32>
    %192 = vector.broadcast %190 : vector<2x2x1x1xf32> to vector<2x2x8x8xf32>
    %193 = vector.broadcast %191 : vector<1x2x8x8xf32> to vector<2x2x8x8xf32>
    %194 = arith.mulf %192, %193 : vector<2x2x8x8xf32>
    %cst_105 = arith.constant dense<0.000000e+00> : vector<2x8x8xf32>
    %195 = vector.multi_reduction <add>, %194, %cst_105 [1] : vector<2x2x8x8xf32> to vector<2x8x8xf32>
    %196 = arith.addf %185, %195 : vector<2x8x8xf32>
    %197 = vector.extract_strided_slice %8 {offsets = [4, 0, 1, 1], sizes = [1, 2, 8, 8], strides = [1, 1, 1, 1]} : vector<8x2x9x9xf32> to vector<1x2x8x8xf32>
    %198 = vector.shape_cast %197 : vector<1x2x8x8xf32> to vector<2x8x8xf32>
    %c1_106 = arith.constant 1 : index
    %c2_107 = arith.constant 2 : index
    %c2_108 = arith.constant 2 : index
    %c0_109 = arith.constant 0 : index
    %c0_110 = arith.constant 0 : index
    %199 = vector.load %arg2[%c1_106, %c2_107, %c2_108, %c0_109, %c0_110] : memref<2x3x3x2x2xf32, #tpu.memory_space<vmem>>, vector<1x1x1x2x2xf32>
    %200 = vector.shape_cast %199 : vector<1x1x1x2x2xf32> to vector<2x2xf32>
    %201 = vector.shape_cast %200 : vector<2x2xf32> to vector<2x2x1x1xf32>
    %202 = vector.shape_cast %198 : vector<2x8x8xf32> to vector<1x2x8x8xf32>
    %203 = vector.broadcast %201 : vector<2x2x1x1xf32> to vector<2x2x8x8xf32>
    %204 = vector.broadcast %202 : vector<1x2x8x8xf32> to vector<2x2x8x8xf32>
    %205 = arith.mulf %203, %204 : vector<2x2x8x8xf32>
    %cst_111 = arith.constant dense<0.000000e+00> : vector<2x8x8xf32>
    %206 = vector.multi_reduction <add>, %205, %cst_111 [1] : vector<2x2x8x8xf32> to vector<2x8x8xf32>
    %207 = arith.addf %196, %206 : vector<2x8x8xf32>
    %c0_112 = arith.constant 0 : index
    %c0_113 = arith.constant 0 : index
    %c0_114 = arith.constant 0 : index
    %c0_115 = arith.constant 0 : index
    %208 = vector.load %arg3[%c0_112, %c0_113, %c0_114, %c0_115] : memref<2x1x8x8xf32, #tpu.memory_space<vmem>>, vector<2x1x8x8xf32>
    %209 = vector.shape_cast %208 : vector<2x1x8x8xf32> to vector<2x8x8xf32>
    %210 = vector.shape_cast %207 : vector<2x8x8xf32> to vector<2x1x8x8xf32>
    tpu.vector_store %arg3[%c0_112, %c0_113, %c0_114, %c0_115], %210 {strides = array<i32>} : memref<2x1x8x8xf32, #tpu.memory_space<vmem>>, vector<2x1x8x8xf32>,
    %cst_116 = arith.constant dense<0.000000e+00> : vector<2x8xf32>
    %211 = vector.multi_reduction <add>, %207, %cst_116 [2] : vector<2x8x8xf32> to vector<2x8xf32>
    %cst_117 = arith.constant dense<0.000000e+00> : vector<2xf32>
    %212 = vector.multi_reduction <add>, %211, %cst_117 [1] : vector<2x8xf32> to vector<2xf32>
    %213 = vector.shape_cast %212 : vector<2xf32> to vector<2x1xf32>
    %214 = vector.shape_cast %213 : vector<2x1xf32> to vector<1x2x1xf32>
    %c0_118 = arith.constant 0 : index
    %c0_119 = arith.constant 0 : index
    %c0_120 = arith.constant 0 : index
    %215 = vector.load %arg4[%c0_118, %c0_119, %c0_120] : memref<1x2x1xf32, #tpu.memory_space<vmem>>, vector<1x2x1xf32>
    tpu.vector_store %arg4[%c0_118, %c0_119, %c0_120], %214 {strides = array<i32>} : memref<1x2x1xf32, #tpu.memory_space<vmem>>, vector<1x2x1xf32>,
    %216 = arith.mulf %207, %207 : vector<2x8x8xf32>
    %cst_121 = arith.constant dense<0.000000e+00> : vector<2x8xf32>
    %217 = vector.multi_reduction <add>, %216, %cst_121 [2] : vector<2x8x8xf32> to vector<2x8xf32>
    %cst_122 = arith.constant dense<0.000000e+00> : vector<2xf32>
    %218 = vector.multi_reduction <add>, %217, %cst_122 [1] : vector<2x8xf32> to vector<2xf32>
    %219 = vector.shape_cast %218 : vector<2xf32> to vector<2x1xf32>
    %220 = vector.shape_cast %219 : vector<2x1xf32> to vector<1x2x1xf32>
    %c0_123 = arith.constant 0 : index
    %c0_124 = arith.constant 0 : index
    %c0_125 = arith.constant 0 : index
    %221 = vector.load %arg5[%c0_123, %c0_124, %c0_125] : memref<1x2x1xf32, #tpu.memory_space<vmem>>, vector<1x2x1xf32>
    tpu.vector_store %arg5[%c0_123, %c0_124, %c0_125], %220 {strides = array<i32>} : memref<1x2x1xf32, #tpu.memory_space<vmem>>, vector<1x2x1xf32>,
    return
  }
  func.func @transform_0(%arg0: i32) -> (i32, i32, i32, i32, i32) {
    %c0_i32 = arith.constant 0 : i32
    %c0_i32_0 = arith.constant 0 : i32
    %c0_i32_1 = arith.constant 0 : i32
    %c0_i32_2 = arith.constant 0 : i32
    %c0_i32_3 = arith.constant 0 : i32
    return %arg0, %c0_i32, %c0_i32_0, %c0_i32_1, %c0_i32_2 : i32, i32, i32, i32, i32
  }
  func.func @transform_1(%arg0: i32) -> (i32, i32, i32, i32, i32) {
    %c0_i32 = arith.constant 0 : i32
    %c0_i32_0 = arith.constant 0 : i32
    %c0_i32_1 = arith.constant 0 : i32
    %c0_i32_2 = arith.constant 0 : i32
    %c0_i32_3 = arith.constant 0 : i32
    %c0_i32_4 = arith.constant 0 : i32
    return %c0_i32, %c0_i32_0, %c0_i32_1, %c0_i32_2, %c0_i32_3 : i32, i32, i32, i32, i32
  }
  func.func @transform_2(%arg0: i32) -> (i32, i32, i32, i32) {
    %c0_i32 = arith.constant 0 : i32
    %c0_i32_0 = arith.constant 0 : i32
    %c0_i32_1 = arith.constant 0 : i32
    %c0_i32_2 = arith.constant 0 : i32
    return %c0_i32, %arg0, %c0_i32_0, %c0_i32_1 : i32, i32, i32, i32
  }
  func.func @transform_3(%arg0: i32) -> (i32, i32, i32) {
    %c0_i32 = arith.constant 0 : i32
    %c0_i32_0 = arith.constant 0 : i32
    %c0_i32_1 = arith.constant 0 : i32
    return %arg0, %c0_i32, %c0_i32_0 : i32, i32, i32
  }
  func.func @transform_4(%arg0: i32) -> (i32, i32, i32) {
    %c0_i32 = arith.constant 0 : i32
    %c0_i32_0 = arith.constant 0 : i32
    %c0_i32_1 = arith.constant 0 : i32
    return %arg0, %c0_i32, %c0_i32_0 : i32, i32, i32
  }
}

module attributes {stable_mosaic.version = 11 : i64} {
  func.func @_conv3_kernel(%arg0: i32, %arg1: memref<2x512xf32, #tpu.memory_space<vmem>>, %arg2: memref<2x1xf32, #tpu.memory_space<vmem>>, %arg3: memref<2x1xf32, #tpu.memory_space<vmem>>, %arg4: memref<8x2xf32, #tpu.memory_space<vmem>>, %arg5: memref<8x512xf32, #tpu.memory_space<vmem>>, %arg6: memref<1x8x1xf32, #tpu.memory_space<vmem>>, %arg7: memref<1x8x1xf32, #tpu.memory_space<vmem>>) attributes {dimension_semantics = [#tpu.dimension_semantics<parallel>], iteration_bounds = array<i64: 1>, scalar_prefetch = 0 : i64, scratch_operands = 0 : i64, tpu.core_type = #tpu.core_type<tc>, window_params = [{transform_indices = @transform_0, window_bounds = array<i64: 2, 512>}, {pipeline_mode = #tpu.pipeline_mode<synchronous>, transform_indices = @transform_1, window_bounds = array<i64: 2, 1>}, {pipeline_mode = #tpu.pipeline_mode<synchronous>, transform_indices = @transform_2, window_bounds = array<i64: 2, 1>}, {pipeline_mode = #tpu.pipeline_mode<synchronous>, transform_indices = @transform_3, window_bounds = array<i64: 8, 2>}, {transform_indices = @transform_4, window_bounds = array<i64: 8, 512>}, {transform_indices = @transform_5, window_bounds = array<i64: 1, 8, 1>}, {transform_indices = @transform_6, window_bounds = array<i64: 1, 8, 1>}]} {
    %c0 = arith.constant 0 : index
    %c0_0 = arith.constant 0 : index
    %0 = vector.load %arg1[%c0, %c0_0] : memref<2x512xf32, #tpu.memory_space<vmem>>, vector<2x512xf32>
    %c0_1 = arith.constant 0 : index
    %c0_2 = arith.constant 0 : index
    %1 = vector.load %arg2[%c0_1, %c0_2] : memref<2x1xf32, #tpu.memory_space<vmem>>, vector<2x1xf32>
    %2 = vector.broadcast %1 : vector<2x1xf32> to vector<2x512xf32>
    %3 = arith.mulf %0, %2 : vector<2x512xf32>
    %c0_3 = arith.constant 0 : index
    %c0_4 = arith.constant 0 : index
    %4 = vector.load %arg3[%c0_3, %c0_4] : memref<2x1xf32, #tpu.memory_space<vmem>>, vector<2x1xf32>
    %5 = vector.broadcast %4 : vector<2x1xf32> to vector<2x512xf32>
    %6 = arith.addf %3, %5 : vector<2x512xf32>
    %cst = arith.constant 0.000000e+00 : f32
    %7 = vector.broadcast %cst : f32 to vector<2x512xf32>
    %8 = arith.subf %7, %6 : vector<2x512xf32>
    %9 = math.exp %8 : vector<2x512xf32>
    %cst_5 = arith.constant 1.000000e+00 : f32
    %10 = vector.broadcast %cst_5 : f32 to vector<2x512xf32>
    %11 = arith.addf %10, %9 : vector<2x512xf32>
    %12 = tpu.reciprocal %11 {approx = true} : vector<2x512xf32> -> vector<2x512xf32>
    %13 = arith.mulf %6, %12 : vector<2x512xf32>
    %c0_6 = arith.constant 0 : index
    %c0_7 = arith.constant 0 : index
    %14 = vector.load %arg4[%c0_6, %c0_7] : memref<8x2xf32, #tpu.memory_space<vmem>>, vector<8x2xf32>
    %cst_8 = arith.constant dense<0.000000e+00> : vector<8x512xf32>
    %15 = tpu.matmul %14, %13, %cst_8 {dimension_numbers = #tpu.dot_dimension_numbers<[1], [0], [0], [1], [0, 0, 1, 1], [], []>} : vector<8x2xf32>, vector<2x512xf32>, vector<8x512xf32> -> vector<8x512xf32>
    %c0_9 = arith.constant 0 : index
    %c0_10 = arith.constant 0 : index
    %16 = vector.load %arg5[%c0_9, %c0_10] : memref<8x512xf32, #tpu.memory_space<vmem>>, vector<8x512xf32>
    tpu.vector_store %arg5[%c0_9, %c0_10], %15 {strides = array<i32>} : memref<8x512xf32, #tpu.memory_space<vmem>>, vector<8x512xf32>,
    %cst_11 = arith.constant dense<0.000000e+00> : vector<8xf32>
    %17 = vector.multi_reduction <add>, %15, %cst_11 [1] : vector<8x512xf32> to vector<8xf32>
    %18 = vector.shape_cast %17 : vector<8xf32> to vector<8x1xf32>
    %19 = vector.shape_cast %18 : vector<8x1xf32> to vector<1x8x1xf32>
    %c0_12 = arith.constant 0 : index
    %c0_13 = arith.constant 0 : index
    %c0_14 = arith.constant 0 : index
    %20 = vector.load %arg6[%c0_12, %c0_13, %c0_14] : memref<1x8x1xf32, #tpu.memory_space<vmem>>, vector<1x8x1xf32>
    tpu.vector_store %arg6[%c0_12, %c0_13, %c0_14], %19 {strides = array<i32>} : memref<1x8x1xf32, #tpu.memory_space<vmem>>, vector<1x8x1xf32>,
    %21 = arith.mulf %15, %15 : vector<8x512xf32>
    %cst_15 = arith.constant dense<0.000000e+00> : vector<8xf32>
    %22 = vector.multi_reduction <add>, %21, %cst_15 [1] : vector<8x512xf32> to vector<8xf32>
    %23 = vector.shape_cast %22 : vector<8xf32> to vector<8x1xf32>
    %24 = vector.shape_cast %23 : vector<8x1xf32> to vector<1x8x1xf32>
    %c0_16 = arith.constant 0 : index
    %c0_17 = arith.constant 0 : index
    %c0_18 = arith.constant 0 : index
    %25 = vector.load %arg7[%c0_16, %c0_17, %c0_18] : memref<1x8x1xf32, #tpu.memory_space<vmem>>, vector<1x8x1xf32>
    tpu.vector_store %arg7[%c0_16, %c0_17, %c0_18], %24 {strides = array<i32>} : memref<1x8x1xf32, #tpu.memory_space<vmem>>, vector<1x8x1xf32>,
    return
  }
  func.func @transform_0(%arg0: i32) -> (i32, i32) {
    %c0_i32 = arith.constant 0 : i32
    %c0_i32_0 = arith.constant 0 : i32
    return %c0_i32, %arg0 : i32, i32
  }
  func.func @transform_1(%arg0: i32) -> (i32, i32) {
    %c0_i32 = arith.constant 0 : i32
    %c0_i32_0 = arith.constant 0 : i32
    %c0_i32_1 = arith.constant 0 : i32
    return %c0_i32, %c0_i32_0 : i32, i32
  }
  func.func @transform_2(%arg0: i32) -> (i32, i32) {
    %c0_i32 = arith.constant 0 : i32
    %c0_i32_0 = arith.constant 0 : i32
    %c0_i32_1 = arith.constant 0 : i32
    return %c0_i32, %c0_i32_0 : i32, i32
  }
  func.func @transform_3(%arg0: i32) -> (i32, i32) {
    %c0_i32 = arith.constant 0 : i32
    %c0_i32_0 = arith.constant 0 : i32
    %c0_i32_1 = arith.constant 0 : i32
    return %c0_i32, %c0_i32_0 : i32, i32
  }
  func.func @transform_4(%arg0: i32) -> (i32, i32) {
    %c0_i32 = arith.constant 0 : i32
    %c0_i32_0 = arith.constant 0 : i32
    return %c0_i32, %arg0 : i32, i32
  }
  func.func @transform_5(%arg0: i32) -> (i32, i32, i32) {
    %c0_i32 = arith.constant 0 : i32
    %c0_i32_0 = arith.constant 0 : i32
    %c0_i32_1 = arith.constant 0 : i32
    return %arg0, %c0_i32, %c0_i32_0 : i32, i32, i32
  }
  func.func @transform_6(%arg0: i32) -> (i32, i32, i32) {
    %c0_i32 = arith.constant 0 : i32
    %c0_i32_0 = arith.constant 0 : i32
    %c0_i32_1 = arith.constant 0 : i32
    return %arg0, %c0_i32, %c0_i32_0 : i32, i32, i32
  }
}

module attributes {stable_mosaic.version = 11 : i64} {
  func.func @_residual_kernel(%arg0: i32, %arg1: memref<8x512xf32, #tpu.memory_space<vmem>>, %arg2: memref<4x8x512xf32, #tpu.memory_space<vmem>>, %arg3: memref<8x1xf32, #tpu.memory_space<vmem>>, %arg4: memref<8x1xf32, #tpu.memory_space<vmem>>, %arg5: memref<8x1xf32, #tpu.memory_space<vmem>>, %arg6: memref<8x1xf32, #tpu.memory_space<vmem>>, %arg7: memref<8x512xf32, #tpu.memory_space<vmem>>) attributes {dimension_semantics = [#tpu.dimension_semantics<parallel>], iteration_bounds = array<i64: 1>, scalar_prefetch = 0 : i64, scratch_operands = 0 : i64, tpu.core_type = #tpu.core_type<tc>, window_params = [{transform_indices = @transform_0, window_bounds = array<i64: 8, 512>}, {transform_indices = @transform_1, window_bounds = array<i64: 4, 8, 512>}, {pipeline_mode = #tpu.pipeline_mode<synchronous>, transform_indices = @transform_2, window_bounds = array<i64: 8, 1>}, {pipeline_mode = #tpu.pipeline_mode<synchronous>, transform_indices = @transform_3, window_bounds = array<i64: 8, 1>}, {pipeline_mode = #tpu.pipeline_mode<synchronous>, transform_indices = @transform_4, window_bounds = array<i64: 8, 1>}, {pipeline_mode = #tpu.pipeline_mode<synchronous>, transform_indices = @transform_5, window_bounds = array<i64: 8, 1>}, {transform_indices = @transform_6, window_bounds = array<i64: 8, 512>}]} {
    %c0 = arith.constant 0 : index
    %c0_0 = arith.constant 0 : index
    %0 = vector.load %arg1[%c0, %c0_0] : memref<8x512xf32, #tpu.memory_space<vmem>>, vector<8x512xf32>
    %c0_1 = arith.constant 0 : index
    %c0_2 = arith.constant 0 : index
    %1 = vector.load %arg3[%c0_1, %c0_2] : memref<8x1xf32, #tpu.memory_space<vmem>>, vector<8x1xf32>
    %2 = vector.broadcast %1 : vector<8x1xf32> to vector<8x512xf32>
    %3 = arith.mulf %0, %2 : vector<8x512xf32>
    %c0_3 = arith.constant 0 : index
    %c0_4 = arith.constant 0 : index
    %4 = vector.load %arg4[%c0_3, %c0_4] : memref<8x1xf32, #tpu.memory_space<vmem>>, vector<8x1xf32>
    %5 = vector.broadcast %4 : vector<8x1xf32> to vector<8x512xf32>
    %6 = arith.addf %3, %5 : vector<8x512xf32>
    %cst = arith.constant 0.000000e+00 : f32
    %7 = vector.broadcast %cst : f32 to vector<8x512xf32>
    %8 = arith.subf %7, %6 : vector<8x512xf32>
    %9 = math.exp %8 : vector<8x512xf32>
    %cst_5 = arith.constant 1.000000e+00 : f32
    %10 = vector.broadcast %cst_5 : f32 to vector<8x512xf32>
    %11 = arith.addf %10, %9 : vector<8x512xf32>
    %12 = tpu.reciprocal %11 {approx = true} : vector<8x512xf32> -> vector<8x512xf32>
    %13 = arith.mulf %6, %12 : vector<8x512xf32>
    %c0_6 = arith.constant 0 : index
    %c0_7 = arith.constant 0 : index
    %c0_8 = arith.constant 0 : index
    %14 = vector.load %arg2[%c0_6, %c0_7, %c0_8] : memref<4x8x512xf32, #tpu.memory_space<vmem>>, vector<4x8x512xf32>
    %c0_9 = arith.constant 0 : index
    %c0_10 = arith.constant 0 : index
    %15 = vector.load %arg5[%c0_9, %c0_10] : memref<8x1xf32, #tpu.memory_space<vmem>>, vector<8x1xf32>
    %16 = vector.shape_cast %15 : vector<8x1xf32> to vector<1x8x1xf32>
    %17 = vector.broadcast %16 : vector<1x8x1xf32> to vector<4x8x512xf32>
    %18 = arith.mulf %14, %17 : vector<4x8x512xf32>
    %c0_11 = arith.constant 0 : index
    %c0_12 = arith.constant 0 : index
    %19 = vector.load %arg6[%c0_11, %c0_12] : memref<8x1xf32, #tpu.memory_space<vmem>>, vector<8x1xf32>
    %20 = vector.shape_cast %19 : vector<8x1xf32> to vector<1x8x1xf32>
    %21 = vector.broadcast %20 : vector<1x8x1xf32> to vector<4x8x512xf32>
    %22 = arith.addf %18, %21 : vector<4x8x512xf32>
    %cst_13 = arith.constant 0.000000e+00 : f32
    %23 = vector.broadcast %cst_13 : f32 to vector<4x8x512xf32>
    %24 = arith.subf %23, %22 : vector<4x8x512xf32>
    %25 = math.exp %24 : vector<4x8x512xf32>
    %cst_14 = arith.constant 1.000000e+00 : f32
    %26 = vector.broadcast %cst_14 : f32 to vector<4x8x512xf32>
    %27 = arith.addf %26, %25 : vector<4x8x512xf32>
    %28 = tpu.reciprocal %27 {approx = true} : vector<4x8x512xf32> -> vector<4x8x512xf32>
    %29 = arith.mulf %22, %28 : vector<4x8x512xf32>
    %cst_15 = arith.constant dense<0.000000e+00> : vector<8x512xf32>
    %30 = vector.multi_reduction <add>, %29, %cst_15 [0] : vector<4x8x512xf32> to vector<8x512xf32>
    %cst_16 = arith.constant 2.500000e-01 : f32
    %31 = vector.broadcast %cst_16 : f32 to vector<8x512xf32>
    %32 = arith.mulf %31, %30 : vector<8x512xf32>
    %33 = arith.addf %13, %32 : vector<8x512xf32>
    %c0_17 = arith.constant 0 : index
    %c0_18 = arith.constant 0 : index
    %34 = vector.load %arg7[%c0_17, %c0_18] : memref<8x512xf32, #tpu.memory_space<vmem>>, vector<8x512xf32>
    tpu.vector_store %arg7[%c0_17, %c0_18], %33 {strides = array<i32>} : memref<8x512xf32, #tpu.memory_space<vmem>>, vector<8x512xf32>,
    return
  }
  func.func @transform_0(%arg0: i32) -> (i32, i32) {
    %c0_i32 = arith.constant 0 : i32
    %c0_i32_0 = arith.constant 0 : i32
    return %c0_i32, %arg0 : i32, i32
  }
  func.func @transform_1(%arg0: i32) -> (i32, i32, i32) {
    %c0_i32 = arith.constant 0 : i32
    %c0_i32_0 = arith.constant 0 : i32
    %c0_i32_1 = arith.constant 0 : i32
    return %c0_i32, %c0_i32_0, %arg0 : i32, i32, i32
  }
  func.func @transform_2(%arg0: i32) -> (i32, i32) {
    %c0_i32 = arith.constant 0 : i32
    %c0_i32_0 = arith.constant 0 : i32
    %c0_i32_1 = arith.constant 0 : i32
    return %c0_i32, %c0_i32_0 : i32, i32
  }
  func.func @transform_3(%arg0: i32) -> (i32, i32) {
    %c0_i32 = arith.constant 0 : i32
    %c0_i32_0 = arith.constant 0 : i32
    %c0_i32_1 = arith.constant 0 : i32
    return %c0_i32, %c0_i32_0 : i32, i32
  }
  func.func @transform_4(%arg0: i32) -> (i32, i32) {
    %c0_i32 = arith.constant 0 : i32
    %c0_i32_0 = arith.constant 0 : i32
    %c0_i32_1 = arith.constant 0 : i32
    return %c0_i32, %c0_i32_0 : i32, i32
  }
  func.func @transform_5(%arg0: i32) -> (i32, i32) {
    %c0_i32 = arith.constant 0 : i32
    %c0_i32_0 = arith.constant 0 : i32
    %c0_i32_1 = arith.constant 0 : i32
    return %c0_i32, %c0_i32_0 : i32, i32
  }
  func.func @transform_6(%arg0: i32) -> (i32, i32) {
    %c0_i32 = arith.constant 0 : i32
    %c0_i32_0 = arith.constant 0 : i32
    return %c0_i32, %arg0 : i32, i32
  }
}

</mosaic_0001>

<llo_original>
// kernel: residual_block_forward.4
$region0: #{residual_block_forward.4}
  #allocation0 [shape = 'u32[]', space=smem, size = 0x4, offset = 0x4, fixed_abs, tag = 'smem constant byte address 0x4 - core index']
  #allocation1 [shape = 'u32[144,128]{1,0:T(1,128)}', space=vmem, size = 0x12000, scoped, tag = 'internal scratch']
  %s0 = inlined_call_operand.vmem [shape: f32[4,2048], index: 0, kind: input, shape index: {}]
  %s1 = inlined_call_operand.vmem [shape: f32[2,4], index: 1, kind: input, shape index: {}]
  %s2 = inlined_call_operand.vmem [shape: f32[8,4], index: 2, kind: input, shape index: {}]
  %s3 = inlined_call_operand.vmem [shape: f32[2,2048], index: 3, kind: output, shape index: {0}]
  %s4 = inlined_call_operand.vmem [shape: f32[8,2048], index: 4, kind: output, shape index: {1}]
  %s5 = inlined_call_operand.vmem [shape: f32[1,2,1], index: 5, kind: output, shape index: {2}]
  %s6 = inlined_call_operand.vmem [shape: f32[1,2,1], index: 6, kind: output, shape index: {3}]
  %s7 = inlined_call_operand.vmem [shape: f32[1,8,1], index: 7, kind: output, shape index: {4}]
  %s8 = inlined_call_operand.vmem [shape: f32[1,8,1], index: 8, kind: output, shape index: {5}]
  %9 = xla_tuple %s3, %s4, %s5, %s6, %s7, %s8
  %s10 = sld [smem:[#allocation0]]
  $region62: #{residual_block_forward.4} parent=0
    _
  %s12 = ssub.s32 1, %s10
  %s13 = scalar_select 0, %s12, %s10
  // Predicated region
  $region2: #{residual_block_forward.4} parent=0 // pred_check
    _
  $region3: #{residual_block_forward.4} parent=0 // pred_check_branch
    %15 = sbr.rel (0) target = $region5
  $region4: #{residual_block_forward.4} parent=0 // pred_region
    _
  $region5: #{residual_block_forward.4} parent=0 // pred_fallthru
    _
  // Predicated region
  $region6: #{residual_block_forward.4} parent=0 // pred_check
    _
  $region7: #{residual_block_forward.4} parent=0 // pred_check_branch
    %17 = sbr.rel (0) target = $region9
  $region8: #{residual_block_forward.4} parent=0 // pred_region
    _
  $region9: #{residual_block_forward.4} parent=0 // pred_fallthru
    _
  // Predicated region
  $region10: #{residual_block_forward.4} parent=0 // pred_check
    _
  $region11: #{residual_block_forward.4} parent=0 // pred_check_branch
    %19 = sbr.rel (0) target = $region13
  $region12: #{residual_block_forward.4} parent=0 // pred_region
    _
  $region13: #{residual_block_forward.4} parent=0 // pred_fallthru
    _
  %v20 = vld [vmem:[%s0] sm:$0xff]
  %v21 = vld [vmem:[%s0 + $0x8] sm:$0xff]
  %v22 = vld [vmem:[%s0 + $0x10] sm:$0xff]
  %v23 = vld [vmem:[%s0 + $0x18] sm:$0xff]
  %v24 = vld [vmem:[%s0 + $0x20] sm:$0xff]
  %v25 = vld [vmem:[%s0 + $0x28] sm:$0xff]
  %v26 = vld [vmem:[%s0 + $0x30] sm:$0xff]
  %v27 = vld [vmem:[%s0 + $0x38] sm:$0xff]
  %v28 = vld [vmem:[%s1] sm:$0x3]
  %v37 = vcombine.high %v20, %v20
  %v38 = vcombine.high %v21, %v21
  %v39 = vcombine.high %v22, %v22
  %v40 = vcombine.high %v23, %v23
  %v41 = vcombine.high %v24, %v24
  %v42 = vcombine.high %v25, %v25
  %v43 = vcombine.high %v26, %v26
  %v44 = vcombine.high %v27, %v27
  %vm45 = vcmask 31744
  %v47 = vsel %vm45, %v28, 0
  %vm49 = vcmask 1043456
  %v50 = vsel %vm49, %v20, 0
  %v52 = vsel %vm49, %v37, 0
  %v54 = vsel %vm49, %v21, 0
  %v56 = vsel %vm49, %v38, 0
  %v58 = vsel %vm49, %v22, 0
  %v60 = vsel %vm49, %v39, 0
  %v62 = vsel %vm49, %v23, 0
  %v64 = vsel %vm49, %v40, 0
  %v66 = vsel %vm49, %v24, 0
  %v68 = vsel %vm49, %v41, 0
  %v70 = vsel %vm49, %v25, 0
  %v72 = vsel %vm49, %v42, 0
  %v74 = vsel %vm49, %v26, 0
  %v76 = vsel %vm49, %v43, 0
  %v78 = vsel %vm49, %v27, 0
  %v80 = vsel %vm49, %v44, 0
  %82 = vmatprep.subr.mxu0 0.0
  %83 = vmatpush1.msra.mxu0 0.0
  %84 = vmatprep.subr.mxu0 0.0
  %85 = vmatpush1.msra.mxu0 0.0
  %86 = vmatprep.subr.mxu0 0.0
  %87 = vmatpush1.msra.mxu0 0.0
  %88 = vmatprep.subr.mxu0 0.0
  %89 = vmatpush1.msra.mxu0 0.0
  %90 = vmatprep.subr.mxu0 0.0
  %91 = vmatpush1.msra.mxu0 0.0
  %92 = vmatprep.subr.mxu0 0.0
  %93 = vmatpush1.msra.mxu0 0.0
  %94 = vmatprep.subr.mxu0 0.0
  %95 = vmatpush1.msra.mxu0 0.0
  %96 = vmatprep.subr.mxu0 0.0
  %97 = vmatpush1.msra.mxu0 0.0
  %98 = vmatprep.subr.mxu0 0.0
  %99 = vmatpush1.msra.mxu0 0.0
  %100 = vmatprep.subr.mxu0 0.0
  %101 = vmatpush1.msra.mxu0 0.0
  %102 = vmatprep.subr.mxu0 0.0
  %103 = vmatpush1.msra.mxu0 0.0
  %104 = vmatprep.subr.mxu0 0.0
  %105 = vmatpush1.msra.mxu0 0.0
  %106 = vmatprep.subr.mxu0 0.0
  %107 = vmatpush1.msra.mxu0 0.0
  %108 = vmatprep.subr.mxu0 0.0
  %109 = vmatpush1.msra.mxu0 0.0
  %110 = vmatprep.subr.mxu0 0.0
  %111 = vmatpush1.msra.mxu0 0.0
  %112 = vmatprep.subr.mxu0 %v52
  %113 = vmatpush1.msra.mxu0 %v50
  %114 = vmatprep.subr.mxu0 0.0
  %115 = vmatpush2.msra.mxu0 0.0
  %116 = vmatprep.subr.mxu0 0.0
  %117 = vmatpush2.msra.mxu0 0.0
  %118 = vmatprep.subr.mxu0 0.0
  %119 = vmatpush2.msra.mxu0 0.0
  %120 = vmatprep.subr.mxu0 0.0
  %121 = vmatpush2.msra.mxu0 0.0
  %122 = vmatprep.subr.mxu0 0.0
  %123 = vmatpush2.msra.mxu0 0.0
  %124 = vmatprep.subr.mxu0 0.0
  %125 = vmatpush2.msra.mxu0 0.0
  %126 = vmatprep.subr.mxu0 0.0
  %127 = vmatpush2.msra.mxu0 0.0
  %128 = vmatprep.subr.mxu0 0.0
  %129 = vmatpush2.msra.mxu0 0.0
  %130 = vmatprep.subr.mxu0 0.0
  %131 = vmatpush2.msra.mxu0 0.0
  %132 = vmatprep.subr.mxu0 0.0
  %133 = vmatpush2.msra.mxu0 0.0
  %134 = vmatprep.subr.mxu0 0.0
  %135 = vmatpush2.msra.mxu0 0.0
  %136 = vmatprep.subr.mxu0 0.0
  %137 = vmatpush2.msra.mxu0 0.0
  %138 = vmatprep.subr.mxu0 0.0
  %139 = vmatpush2.msra.mxu0 0.0
  %140 = vmatprep.subr.mxu0 0.0
  %141 = vmatpush2.msra.mxu0 0.0
  %142 = vmatprep.subr.mxu0 0.0
  %143 = vmatpush2.msra.mxu0 0.0
  %144 = vmatprep.subr.mxu0 0.0
  %145 = vmatpush2.msra.mxu0 0.0
  %146 = vmatprep.mubr.f32.mxu0 0.0
  %147 = vmatmul.mubr.f32.gmra.mxu0 %v47
  %v148 = vpop.f32.mrf.mxu0
  %v149 = vadd.f32 0.0, %v148
  %v150 = vpop.f32.mrf.mxu0
  %v151 = vadd.f32 0.0, %v150
  %152 = vdwg.mxu0
  %153 = vmatprep.subr.mxu0 0.0
  %154 = vmatpush1.msra.mxu0 0.0
  %155 = vmatprep.subr.mxu0 0.0
  %156 = vmatpush1.msra.mxu0 0.0
  %157 = vmatprep.subr.mxu0 0.0
  %158 = vmatpush1.msra.mxu0 0.0
  %159 = vmatprep.subr.mxu0 0.0
  %160 = vmatpush1.msra.mxu0 0.0
  %161 = vmatprep.subr.mxu0 0.0
  %162 = vmatpush1.msra.mxu0 0.0
  %163 = vmatprep.subr.mxu0 0.0
  %164 = vmatpush1.msra.mxu0 0.0
  %165 = vmatprep.subr.mxu0 0.0
  %166 = vmatpush1.msra.mxu0 0.0
  %167 = vmatprep.subr.mxu0 0.0
  %168 = vmatpush1.msra.mxu0 0.0
  %169 = vmatprep.subr.mxu0 0.0
  %170 = vmatpush1.msra.mxu0 0.0
  %171 = vmatprep.subr.mxu0 0.0
  %172 = vmatpush1.msra.mxu0 0.0
  %173 = vmatprep.subr.mxu0 0.0
  %174 = vmatpush1.msra.mxu0 0.0
  %175 = vmatprep.subr.mxu0 0.0
  %176 = vmatpush1.msra.mxu0 0.0
  %177 = vmatprep.subr.mxu0 0.0
  %178 = vmatpush1.msra.mxu0 0.0
  %179 = vmatprep.subr.mxu0 0.0
  %180 = vmatpush1.msra.mxu0 0.0
  %181 = vmatprep.subr.mxu0 0.0
  %182 = vmatpush1.msra.mxu0 0.0
  %183 = vmatprep.subr.mxu0 %v56
  %184 = vmatpush1.msra.mxu0 %v54
  %185 = vmatprep.subr.mxu0 0.0
  %186 = vmatpush2.msra.mxu0 0.0
  %187 = vmatprep.subr.mxu0 0.0
  %188 = vmatpush2.msra.mxu0 0.0
  %189 = vmatprep.subr.mxu0 0.0
  %190 = vmatpush2.msra.mxu0 0.0
  %191 = vmatprep.subr.mxu0 0.0
  %192 = vmatpush2.msra.mxu0 0.0
  %193 = vmatprep.subr.mxu0 0.0
  %194 = vmatpush2.msra.mxu0 0.0
  %195 = vmatprep.subr.mxu0 0.0
  %196 = vmatpush2.msra.mxu0 0.0
  %197 = vmatprep.subr.mxu0 0.0
  %198 = vmatpush2.msra.mxu0 0.0
  %199 = vmatprep.subr.mxu0 0.0
  %200 = vmatpush2.msra.mxu0 0.0
  %201 = vmatprep.subr.mxu0 0.0
  %202 = vmatpush2.msra.mxu0 0.0
  %203 = vmatprep.subr.mxu0 0.0
  %204 = vmatpush2.msra.mxu0 0.0
  %205 = vmatprep.subr.mxu0 0.0
  %206 = vmatpush2.msra.mxu0 0.0
  %207 = vmatprep.subr.mxu0 0.0
  %208 = vmatpush2.msra.mxu0 0.0
  %209 = vmatprep.subr.mxu0 0.0
  %210 = vmatpush2.msra.mxu0 0.0
  %211 = vmatprep.subr.mxu0 0.0
  %212 = vmatpush2.msra.mxu0 0.0
  %213 = vmatprep.subr.mxu0 0.0
  %214 = vmatpush2.msra.mxu0 0.0
  %215 = vmatprep.subr.mxu0 0.0
  %216 = vmatpush2.msra.mxu0 0.0
  %217 = vmatprep.mubr.f32.mxu0 0.0
  %218 = vmatmul.mubr.f32.gmra.mxu0 %v47
  %v219 = vpop.f32.mrf.mxu0
  %v220 = vadd.f32 0.0, %v219
  %v221 = vpop.f32.mrf.mxu0
  %v222 = vadd.f32 0.0, %v221
  %223 = vdwg.mxu0
  %224 = vmatprep.subr.mxu0 0.0
  %225 = vmatpush1.msra.mxu0 0.0
  %226 = vmatprep.subr.mxu0 0.0
  %227 = vmatpush1.msra.mxu0 0.0
  %228 = vmatprep.subr.mxu0 0.0
  %229 = vmatpush1.msra.mxu0 0.0
  %230 = vmatprep.subr.mxu0 0.0
  %231 = vmatpush1.msra.mxu0 0.0
  %232 = vmatprep.subr.mxu0 0.0
  %233 = vmatpush1.msra.mxu0 0.0
  %234 = vmatprep.subr.mxu0 0.0
  %235 = vmatpush1.msra.mxu0 0.0
  %236 = vmatprep.subr.mxu0 0.0
  %237 = vmatpush1.msra.mxu0 0.0
  %238 = vmatprep.subr.mxu0 0.0
  %239 = vmatpush1.msra.mxu0 0.0
  %240 = vmatprep.subr.mxu0 0.0
  %241 = vmatpush1.msra.mxu0 0.0
  %242 = vmatprep.subr.mxu0 0.0
  %243 = vmatpush1.msra.mxu0 0.0
  %244 = vmatprep.subr.mxu0 0.0
  %245 = vmatpush1.msra.mxu0 0.0
  %246 = vmatprep.subr.mxu0 0.0
  %247 = vmatpush1.msra.mxu0 0.0
  %248 = vmatprep.subr.mxu0 0.0
  %249 = vmatpush1.msra.mxu0 0.0
  %250 = vmatprep.subr.mxu0 0.0
  %251 = vmatpush1.msra.mxu0 0.0
  %252 = vmatprep.subr.mxu0 0.0
  %253 = vmatpush1.msra.mxu0 0.0
  %254 = vmatprep.subr.mxu0 %v60
  %255 = vmatpush1.msra.mxu0 %v58
  %256 = vmatprep.subr.mxu0 0.0
  %257 = vmatpush2.msra.mxu0 0.0
  %258 = vmatprep.subr.mxu0 0.0
  %259 = vmatpush2.msra.mxu0 0.0
  %260 = vmatprep.subr.mxu0 0.0
  %261 = vmatpush2.msra.mxu0 0.0
  %262 = vmatprep.subr.mxu0 0.0
  %263 = vmatpush2.msra.mxu0 0.0
  %264 = vmatprep.subr.mxu0 0.0
  %265 = vmatpush2.msra.mxu0 0.0
  %266 = vmatprep.subr.mxu0 0.0
  %267 = vmatpush2.msra.mxu0 0.0
  %268 = vmatprep.subr.mxu0 0.0
  %269 = vmatpush2.msra.mxu0 0.0
  %270 = vmatprep.subr.mxu0 0.0
  %271 = vmatpush2.msra.mxu0 0.0
  %272 = vmatprep.subr.mxu0 0.0
  %273 = vmatpush2.msra.mxu0 0.0
  %274 = vmatprep.subr.mxu0 0.0
  %275 = vmatpush2.msra.mxu0 0.0
  %276 = vmatprep.subr.mxu0 0.0
  %277 = vmatpush2.msra.mxu0 0.0
  %278 = vmatprep.subr.mxu0 0.0
  %279 = vmatpush2.msra.mxu0 0.0
  %280 = vmatprep.subr.mxu0 0.0
  %281 = vmatpush2.msra.mxu0 0.0
  %282 = vmatprep.subr.mxu0 0.0
  %283 = vmatpush2.msra.mxu0 0.0
  %284 = vmatprep.subr.mxu0 0.0
  %285 = vmatpush2.msra.mxu0 0.0
  %286 = vmatprep.subr.mxu0 0.0
  %287 = vmatpush2.msra.mxu0 0.0
  %288 = vmatprep.mubr.f32.mxu0 0.0
  %289 = vmatmul.mubr.f32.gmra.mxu0 %v47
  %v290 = vpop.f32.mrf.mxu0
  %v291 = vadd.f32 0.0, %v290
  %v292 = vpop.f32.mrf.mxu0
  %v293 = vadd.f32 0.0, %v292
  %294 = vdwg.mxu0
  %295 = vmatprep.subr.mxu0 0.0
  %296 = vmatpush1.msra.mxu0 0.0
  %297 = vmatprep.subr.mxu0 0.0
  %298 = vmatpush1.msra.mxu0 0.0
  %299 = vmatprep.subr.mxu0 0.0
  %300 = vmatpush1.msra.mxu0 0.0
  %301 = vmatprep.subr.mxu0 0.0
  %302 = vmatpush1.msra.mxu0 0.0
  %303 = vmatprep.subr.mxu0 0.0
  %304 = vmatpush1.msra.mxu0 0.0
  %305 = vmatprep.subr.mxu0 0.0
  %306 = vmatpush1.msra.mxu0 0.0
  %307 = vmatprep.subr.mxu0 0.0
  %308 = vmatpush1.msra.mxu0 0.0
  %309 = vmatprep.subr.mxu0 0.0
  %310 = vmatpush1.msra.mxu0 0.0
  %311 = vmatprep.subr.mxu0 0.0
  %312 = vmatpush1.msra.mxu0 0.0
  %313 = vmatprep.subr.mxu0 0.0
  %314 = vmatpush1.msra.mxu0 0.0
  %315 = vmatprep.subr.mxu0 0.0
  %316 = vmatpush1.msra.mxu0 0.0
  %317 = vmatprep.subr.mxu0 0.0
  %318 = vmatpush1.msra.mxu0 0.0
  %319 = vmatprep.subr.mxu0 0.0
  %320 = vmatpush1.msra.mxu0 0.0
  %321 = vmatprep.subr.mxu0 0.0
  %322 = vmatpush1.msra.mxu0 0.0
  %323 = vmatprep.subr.mxu0 0.0
  %324 = vmatpush1.msra.mxu0 0.0
  %325 = vmatprep.subr.mxu0 %v64
  %326 = vmatpush1.msra.mxu0 %v62
  %327 = vmatprep.subr.mxu0 0.0
  %328 = vmatpush2.msra.mxu0 0.0
  %329 = vmatprep.subr.mxu0 0.0
  %330 = vmatpush2.msra.mxu0 0.0
  %331 = vmatprep.subr.mxu0 0.0
  %332 = vmatpush2.msra.mxu0 0.0
  %333 = vmatprep.subr.mxu0 0.0
  %334 = vmatpush2.msra.mxu0 0.0
  %335 = vmatprep.subr.mxu0 0.0
  %336 = vmatpush2.msra.mxu0 0.0
  %337 = vmatprep.subr.mxu0 0.0
  %338 = vmatpush2.msra.mxu0 0.0
  %339 = vmatprep.subr.mxu0 0.0
  %340 = vmatpush2.msra.mxu0 0.0
  %341 = vmatprep.subr.mxu0 0.0
  %342 = vmatpush2.msra.mxu0 0.0
  %343 = vmatprep.subr.mxu0 0.0
  %344 = vmatpush2.msra.mxu0 0.0
  %345 = vmatprep.subr.mxu0 0.0
  %346 = vmatpush2.msra.mxu0 0.0
  %347 = vmatprep.subr.mxu0 0.0
  %348 = vmatpush2.msra.mxu0 0.0
  %349 = vmatprep.subr.mxu0 0.0
  %350 = vmatpush2.msra.mxu0 0.0
  %351 = vmatprep.subr.mxu0 0.0
  %352 = vmatpush2.msra.mxu0 0.0
  %353 = vmatprep.subr.mxu0 0.0
  %354 = vmatpush2.msra.mxu0 0.0
  %355 = vmatprep.subr.mxu0 0.0
  %356 = vmatpush2.msra.mxu0 0.0
  %357 = vmatprep.subr.mxu0 0.0
  %358 = vmatpush2.msra.mxu0 0.0
  %359 = vmatprep.mubr.f32.mxu0 0.0
  %360 = vmatmul.mubr.f32.gmra.mxu0 %v47
  %v361 = vpop.f32.mrf.mxu0
  %v362 = vadd.f32 0.0, %v361
  %v363 = vpop.f32.mrf.mxu0
  %v364 = vadd.f32 0.0, %v363
  %365 = vdwg.mxu0
  %366 = vmatprep.subr.mxu0 0.0
  %367 = vmatpush1.msra.mxu0 0.0
  %368 = vmatprep.subr.mxu0 0.0
  %369 = vmatpush1.msra.mxu0 0.0
  %370 = vmatprep.subr.mxu0 0.0
  %371 = vmatpush1.msra.mxu0 0.0
  %372 = vmatprep.subr.mxu0 0.0
  %373 = vmatpush1.msra.mxu0 0.0
  %374 = vmatprep.subr.mxu0 0.0
  %375 = vmatpush1.msra.mxu0 0.0
  %376 = vmatprep.subr.mxu0 0.0
  %377 = vmatpush1.msra.mxu0 0.0
  %378 = vmatprep.subr.mxu0 0.0
  %379 = vmatpush1.msra.mxu0 0.0
  %380 = vmatprep.subr.mxu0 0.0
  %381 = vmatpush1.msra.mxu0 0.0
  %382 = vmatprep.subr.mxu0 0.0
  %383 = vmatpush1.msra.mxu0 0.0
  %384 = vmatprep.subr.mxu0 0.0
  %385 = vmatpush1.msra.mxu0 0.0
  %386 = vmatprep.subr.mxu0 0.0
  %387 = vmatpush1.msra.mxu0 0.0
  %388 = vmatprep.subr.mxu0 0.0
  %389 = vmatpush1.msra.mxu0 0.0
  %390 = vmatprep.subr.mxu0 0.0
  %391 = vmatpush1.msra.mxu0 0.0
  %392 = vmatprep.subr.mxu0 0.0
  %393 = vmatpush1.msra.mxu0 0.0
  %394 = vmatprep.subr.mxu0 0.0
  %395 = vmatpush1.msra.mxu0 0.0
  %396 = vmatprep.subr.mxu0 %v68
  %397 = vmatpush1.msra.mxu0 %v66
  %398 = vmatprep.subr.mxu0 0.0
  %399 = vmatpush2.msra.mxu0 0.0
  %400 = vmatprep.subr.mxu0 0.0
  %401 = vmatpush2.msra.mxu0 0.0
  %402 = vmatprep.subr.mxu0 0.0
  %403 = vmatpush2.msra.mxu0 0.0
  %404 = vmatprep.subr.mxu0 0.0
  %405 = vmatpush2.msra.mxu0 0.0
  %406 = vmatprep.subr.mxu0 0.0
  %407 = vmatpush2.msra.mxu0 0.0
  %408 = vmatprep.subr.mxu0 0.0
  %409 = vmatpush2.msra.mxu0 0.0
  %410 = vmatprep.subr.mxu0 0.0
  %411 = vmatpush2.msra.mxu0 0.0
  %412 = vmatprep.subr.mxu0 0.0
  %413 = vmatpush2.msra.mxu0 0.0
  %414 = vmatprep.subr.mxu0 0.0
  %415 = vmatpush2.msra.mxu0 0.0
  %416 = vmatprep.subr.mxu0 0.0
  %417 = vmatpush2.msra.mxu0 0.0
  %418 = vmatprep.subr.mxu0 0.0
  %419 = vmatpush2.msra.mxu0 0.0
  %420 = vmatprep.subr.mxu0 0.0
  %421 = vmatpush2.msra.mxu0 0.0
  %422 = vmatprep.subr.mxu0 0.0
  %423 = vmatpush2.msra.mxu0 0.0
  %424 = vmatprep.subr.mxu0 0.0
  %425 = vmatpush2.msra.mxu0 0.0
  %426 = vmatprep.subr.mxu0 0.0
  %427 = vmatpush2.msra.mxu0 0.0
  %428 = vmatprep.subr.mxu0 0.0
  %429 = vmatpush2.msra.mxu0 0.0
  %430 = vmatprep.mubr.f32.mxu0 0.0
  %431 = vmatmul.mubr.f32.gmra.mxu0 %v47
  %v432 = vpop.f32.mrf.mxu0
  %v433 = vadd.f32 0.0, %v432
  %v434 = vpop.f32.mrf.mxu0
  %v435 = vadd.f32 0.0, %v434
  %436 = vdwg.mxu0
  %437 = vmatprep.subr.mxu0 0.0
  %438 = vmatpush1.msra.mxu0 0.0
  %439 = vmatprep.subr.mxu0 0.0
  %440 = vmatpush1.msra.mxu0 0.0
  %441 = vmatprep.subr.mxu0 0.0
  %442 = vmatpush1.msra.mxu0 0.0
  %443 = vmatprep.subr.mxu0 0.0
  %444 = vmatpush1.msra.mxu0 0.0
  %445 = vmatprep.subr.mxu0 0.0
  %446 = vmatpush1.msra.mxu0 0.0
  %447 = vmatprep.subr.mxu0 0.0
  %448 = vmatpush1.msra.mxu0 0.0
  %449 = vmatprep.subr.mxu0 0.0
  %450 = vmatpush1.msra.mxu0 0.0
  %451 = vmatprep.subr.mxu0 0.0
  %452 = vmatpush1.msra.mxu0 0.0
  %453 = vmatprep.subr.mxu0 0.0
  %454 = vmatpush1.msra.mxu0 0.0
  %455 = vmatprep.subr.mxu0 0.0
  %456 = vmatpush1.msra.mxu0 0.0
  %457 = vmatprep.subr.mxu0 0.0
  %458 = vmatpush1.msra.mxu0 0.0
  %459 = vmatprep.subr.mxu0 0.0
  %460 = vmatpush1.msra.mxu0 0.0
  %461 = vmatprep.subr.mxu0 0.0
  %462 = vmatpush1.msra.mxu0 0.0
  %463 = vmatprep.subr.mxu0 0.0
  %464 = vmatpush1.msra.mxu0 0.0
  %465 = vmatprep.subr.mxu0 0.0
  %466 = vmatpush1.msra.mxu0 0.0
  %467 = vmatprep.subr.mxu0 %v72
  %468 = vmatpush1.msra.mxu0 %v70
  %469 = vmatprep.subr.mxu0 0.0
  %470 = vmatpush2.msra.mxu0 0.0
  %471 = vmatprep.subr.mxu0 0.0
  %472 = vmatpush2.msra.mxu0 0.0
  %473 = vmatprep.subr.mxu0 0.0
  %474 = vmatpush2.msra.mxu0 0.0
  %475 = vmatprep.subr.mxu0 0.0
  %476 = vmatpush2.msra.mxu0 0.0
  %477 = vmatprep.subr.mxu0 0.0
  %478 = vmatpush2.msra.mxu0 0.0
  %479 = vmatprep.subr.mxu0 0.0
  %480 = vmatpush2.msra.mxu0 0.0
  %481 = vmatprep.subr.mxu0 0.0
  %482 = vmatpush2.msra.mxu0 0.0
  %483 = vmatprep.subr.mxu0 0.0
  %484 = vmatpush2.msra.mxu0 0.0
  %485 = vmatprep.subr.mxu0 0.0
  %486 = vmatpush2.msra.mxu0 0.0
  %487 = vmatprep.subr.mxu0 0.0
  %488 = vmatpush2.msra.mxu0 0.0
  %489 = vmatprep.subr.mxu0 0.0
  %490 = vmatpush2.msra.mxu0 0.0
  %491 = vmatprep.subr.mxu0 0.0
  %492 = vmatpush2.msra.mxu0 0.0
  %493 = vmatprep.subr.mxu0 0.0
  %494 = vmatpush2.msra.mxu0 0.0
  %495 = vmatprep.subr.mxu0 0.0
  %496 = vmatpush2.msra.mxu0 0.0
  %497 = vmatprep.subr.mxu0 0.0
  %498 = vmatpush2.msra.mxu0 0.0
  %499 = vmatprep.subr.mxu0 0.0
  %500 = vmatpush2.msra.mxu0 0.0
  %501 = vmatprep.mubr.f32.mxu0 0.0
  %502 = vmatmul.mubr.f32.gmra.mxu0 %v47
  %v503 = vpop.f32.mrf.mxu0
  %v504 = vadd.f32 0.0, %v503
  %v505 = vpop.f32.mrf.mxu0
  %v506 = vadd.f32 0.0, %v505
  %507 = vdwg.mxu0
  %508 = vmatprep.subr.mxu0 0.0
  %509 = vmatpush1.msra.mxu0 0.0
  %510 = vmatprep.subr.mxu0 0.0
  %511 = vmatpush1.msra.mxu0 0.0
  %512 = vmatprep.subr.mxu0 0.0
  %513 = vmatpush1.msra.mxu0 0.0
  %514 = vmatprep.subr.mxu0 0.0
  %515 = vmatpush1.msra.mxu0 0.0
  %516 = vmatprep.subr.mxu0 0.0
  %517 = vmatpush1.msra.mxu0 0.0
  %518 = vmatprep.subr.mxu0 0.0
  %519 = vmatpush1.msra.mxu0 0.0
  %520 = vmatprep.subr.mxu0 0.0
  %521 = vmatpush1.msra.mxu0 0.0
  %522 = vmatprep.subr.mxu0 0.0
  %523 = vmatpush1.msra.mxu0 0.0
  %524 = vmatprep.subr.mxu0 0.0
  %525 = vmatpush1.msra.mxu0 0.0
  %526 = vmatprep.subr.mxu0 0.0
  %527 = vmatpush1.msra.mxu0 0.0
  %528 = vmatprep.subr.mxu0 0.0
  %529 = vmatpush1.msra.mxu0 0.0
  %530 = vmatprep.subr.mxu0 0.0
  %531 = vmatpush1.msra.mxu0 0.0
  %532 = vmatprep.subr.mxu0 0.0
  %533 = vmatpush1.msra.mxu0 0.0
  %534 = vmatprep.subr.mxu0 0.0
  %535 = vmatpush1.msra.mxu0 0.0
  %536 = vmatprep.subr.mxu0 0.0
  %537 = vmatpush1.msra.mxu0 0.0
  %538 = vmatprep.subr.mxu0 %v76
  %539 = vmatpush1.msra.mxu0 %v74
  %540 = vmatprep.subr.mxu0 0.0
  %541 = vmatpush2.msra.mxu0 0.0
  %542 = vmatprep.subr.mxu0 0.0
  %543 = vmatpush2.msra.mxu0 0.0
  %544 = vmatprep.subr.mxu0 0.0
  %545 = vmatpush2.msra.mxu0 0.0
  %546 = vmatprep.subr.mxu0 0.0
  %547 = vmatpush2.msra.mxu0 0.0
  %548 = vmatprep.subr.mxu0 0.0
  %549 = vmatpush2.msra.mxu0 0.0
  %550 = vmatprep.subr.mxu0 0.0
  %551 = vmatpush2.msra.mxu0 0.0
  %552 = vmatprep.subr.mxu0 0.0
  %553 = vmatpush2.msra.mxu0 0.0
  %554 = vmatprep.subr.mxu0 0.0
  %555 = vmatpush2.msra.mxu0 0.0
  %556 = vmatprep.subr.mxu0 0.0
  %557 = vmatpush2.msra.mxu0 0.0
  %558 = vmatprep.subr.mxu0 0.0
  %559 = vmatpush2.msra.mxu0 0.0
  %560 = vmatprep.subr.mxu0 0.0
  %561 = vmatpush2.msra.mxu0 0.0
  %562 = vmatprep.subr.mxu0 0.0
  %563 = vmatpush2.msra.mxu0 0.0
  %564 = vmatprep.subr.mxu0 0.0
  %565 = vmatpush2.msra.mxu0 0.0
  %566 = vmatprep.subr.mxu0 0.0
  %567 = vmatpush2.msra.mxu0 0.0
  %568 = vmatprep.subr.mxu0 0.0
  %569 = vmatpush2.msra.mxu0 0.0
  %570 = vmatprep.subr.mxu0 0.0
  %571 = vmatpush2.msra.mxu0 0.0
  %572 = vmatprep.mubr.f32.mxu0 0.0
  %573 = vmatmul.mubr.f32.gmra.mxu0 %v47
  %v574 = vpop.f32.mrf.mxu0
  %v575 = vadd.f32 0.0, %v574
  %v576 = vpop.f32.mrf.mxu0
  %v577 = vadd.f32 0.0, %v576
  %578 = vdwg.mxu0
  %579 = vmatprep.subr.mxu0 0.0
  %580 = vmatpush1.msra.mxu0 0.0
  %581 = vmatprep.subr.mxu0 0.0
  %582 = vmatpush1.msra.mxu0 0.0
  %583 = vmatprep.subr.mxu0 0.0
  %584 = vmatpush1.msra.mxu0 0.0
  %585 = vmatprep.subr.mxu0 0.0
  %586 = vmatpush1.msra.mxu0 0.0
  %587 = vmatprep.subr.mxu0 0.0
  %588 = vmatpush1.msra.mxu0 0.0
  %589 = vmatprep.subr.mxu0 0.0
  %590 = vmatpush1.msra.mxu0 0.0
  %591 = vmatprep.subr.mxu0 0.0
  %592 = vmatpush1.msra.mxu0 0.0
  %593 = vmatprep.subr.mxu0 0.0
  %594 = vmatpush1.msra.mxu0 0.0
  %595 = vmatprep.subr.mxu0 0.0
  %596 = vmatpush1.msra.mxu0 0.0
  %597 = vmatprep.subr.mxu0 0.0
  %598 = vmatpush1.msra.mxu0 0.0
  %599 = vmatprep.subr.mxu0 0.0
  %600 = vmatpush1.msra.mxu0 0.0
  %601 = vmatprep.subr.mxu0 0.0
  %602 = vmatpush1.msra.mxu0 0.0
  %603 = vmatprep.subr.mxu0 0.0
  %604 = vmatpush1.msra.mxu0 0.0
  %605 = vmatprep.subr.mxu0 0.0
  %606 = vmatpush1.msra.mxu0 0.0
  %607 = vmatprep.subr.mxu0 0.0
  %608 = vmatpush1.msra.mxu0 0.0
  %609 = vmatprep.subr.mxu0 %v80
  %610 = vmatpush1.msra.mxu0 %v78
  %611 = vmatprep.subr.mxu0 0.0
  %612 = vmatpush2.msra.mxu0 0.0
  %613 = vmatprep.subr.mxu0 0.0
  %614 = vmatpush2.msra.mxu0 0.0
  %615 = vmatprep.subr.mxu0 0.0
  %616 = vmatpush2.msra.mxu0 0.0
  %617 = vmatprep.subr.mxu0 0.0
  %618 = vmatpush2.msra.mxu0 0.0
  %619 = vmatprep.subr.mxu0 0.0
  %620 = vmatpush2.msra.mxu0 0.0
  %621 = vmatprep.subr.mxu0 0.0
  %622 = vmatpush2.msra.mxu0 0.0
  %623 = vmatprep.subr.mxu0 0.0
  %624 = vmatpush2.msra.mxu0 0.0
  %625 = vmatprep.subr.mxu0 0.0
  %626 = vmatpush2.msra.mxu0 0.0
  %627 = vmatprep.subr.mxu0 0.0
  %628 = vmatpush2.msra.mxu0 0.0
  %629 = vmatprep.subr.mxu0 0.0
  %630 = vmatpush2.msra.mxu0 0.0
  %631 = vmatprep.subr.mxu0 0.0
  %632 = vmatpush2.msra.mxu0 0.0
  %633 = vmatprep.subr.mxu0 0.0
  %634 = vmatpush2.msra.mxu0 0.0
  %635 = vmatprep.subr.mxu0 0.0
  %636 = vmatpush2.msra.mxu0 0.0
  %637 = vmatprep.subr.mxu0 0.0
  %638 = vmatpush2.msra.mxu0 0.0
  %639 = vmatprep.subr.mxu0 0.0
  %640 = vmatpush2.msra.mxu0 0.0
  %641 = vmatprep.subr.mxu0 0.0
  %642 = vmatpush2.msra.mxu0 0.0
  %643 = vmatprep.mubr.f32.mxu0 0.0
  %644 = vmatmul.mubr.f32.gmra.mxu0 %v47
  %v645 = vpop.f32.mrf.mxu0
  %v646 = vadd.f32 0.0, %v645
  %v647 = vpop.f32.mrf.mxu0
  %v648 = vadd.f32 0.0, %v647
  %649 = vdwg.mxu0
  %v650 = vld [vmem:[%s2] sm:$0xff]
  %v652 = vsel %vm45, %v650, 0
  %654 = vmatprep.subr.mxu0 0.0
  %655 = vmatpush1.msra.mxu0 0.0
  %656 = vmatprep.subr.mxu0 0.0
  %657 = vmatpush1.msra.mxu0 0.0
  %658 = vmatprep.subr.mxu0 0.0
  %659 = vmatpush1.msra.mxu0 0.0
  %660 = vmatprep.subr.mxu0 0.0
  %661 = vmatpush1.msra.mxu0 0.0
  %662 = vmatprep.subr.mxu0 0.0
  %663 = vmatpush1.msra.mxu0 0.0
  %664 = vmatprep.subr.mxu0 0.0
  %665 = vmatpush1.msra.mxu0 0.0
  %666 = vmatprep.subr.mxu0 0.0
  %667 = vmatpush1.msra.mxu0 0.0
  %668 = vmatprep.subr.mxu0 0.0
  %669 = vmatpush1.msra.mxu0 0.0
  %670 = vmatprep.subr.mxu0 0.0
  %671 = vmatpush1.msra.mxu0 0.0
  %672 = vmatprep.subr.mxu0 0.0
  %673 = vmatpush1.msra.mxu0 0.0
  %674 = vmatprep.subr.mxu0 0.0
  %675 = vmatpush1.msra.mxu0 0.0
  %676 = vmatprep.subr.mxu0 0.0
  %677 = vmatpush1.msra.mxu0 0.0
  %678 = vmatprep.subr.mxu0 0.0
  %679 = vmatpush1.msra.mxu0 0.0
  %680 = vmatprep.subr.mxu0 0.0
  %681 = vmatpush1.msra.mxu0 0.0
  %682 = vmatprep.subr.mxu0 0.0
  %683 = vmatpush1.msra.mxu0 0.0
  %684 = vmatprep.subr.mxu0 %v52
  %685 = vmatpush1.msra.mxu0 %v50
  %686 = vmatprep.subr.mxu0 0.0
  %687 = vmatpush2.msra.mxu0 0.0
  %688 = vmatprep.subr.mxu0 0.0
  %689 = vmatpush2.msra.mxu0 0.0
  %690 = vmatprep.subr.mxu0 0.0
  %691 = vmatpush2.msra.mxu0 0.0
  %692 = vmatprep.subr.mxu0 0.0
  %693 = vmatpush2.msra.mxu0 0.0
  %694 = vmatprep.subr.mxu0 0.0
  %695 = vmatpush2.msra.mxu0 0.0
  %696 = vmatprep.subr.mxu0 0.0
  %697 = vmatpush2.msra.mxu0 0.0
  %698 = vmatprep.subr.mxu0 0.0
  %699 = vmatpush2.msra.mxu0 0.0
  %700 = vmatprep.subr.mxu0 0.0
  %701 = vmatpush2.msra.mxu0 0.0
  %702 = vmatprep.subr.mxu0 0.0
  %703 = vmatpush2.msra.mxu0 0.0
  %704 = vmatprep.subr.mxu0 0.0
  %705 = vmatpush2.msra.mxu0 0.0
  %706 = vmatprep.subr.mxu0 0.0
  %707 = vmatpush2.msra.mxu0 0.0
  %708 = vmatprep.subr.mxu0 0.0
  %709 = vmatpush2.msra.mxu0 0.0
  %710 = vmatprep.subr.mxu0 0.0
  %711 = vmatpush2.msra.mxu0 0.0
  %712 = vmatprep.subr.mxu0 0.0
  %713 = vmatpush2.msra.mxu0 0.0
  %714 = vmatprep.subr.mxu0 0.0
  %715 = vmatpush2.msra.mxu0 0.0
  %716 = vmatprep.subr.mxu0 0.0
  %717 = vmatpush2.msra.mxu0 0.0
  %718 = vmatprep.mubr.f32.mxu0 0.0
  %719 = vmatmul.mubr.f32.gmra.mxu0 %v652
  %v720 = vpop.f32.mrf.mxu0
  %v721 = vadd.f32 0.0, %v720
  %v722 = vpop.f32.mrf.mxu0
  %v723 = vadd.f32 0.0, %v722
  %724 = vdwg.mxu0
  %725 = vmatprep.subr.mxu0 0.0
  %726 = vmatpush1.msra.mxu0 0.0
  %727 = vmatprep.subr.mxu0 0.0
  %728 = vmatpush1.msra.mxu0 0.0
  %729 = vmatprep.subr.mxu0 0.0
  %730 = vmatpush1.msra.mxu0 0.0
  %731 = vmatprep.subr.mxu0 0.0
  %732 = vmatpush1.msra.mxu0 0.0
  %733 = vmatprep.subr.mxu0 0.0
  %734 = vmatpush1.msra.mxu0 0.0
  %735 = vmatprep.subr.mxu0 0.0
  %736 = vmatpush1.msra.mxu0 0.0
  %737 = vmatprep.subr.mxu0 0.0
  %738 = vmatpush1.msra.mxu0 0.0
  %739 = vmatprep.subr.mxu0 0.0
  %740 = vmatpush1.msra.mxu0 0.0
  %741 = vmatprep.subr.mxu0 0.0
  %742 = vmatpush1.msra.mxu0 0.0
  %743 = vmatprep.subr.mxu0 0.0
  %744 = vmatpush1.msra.mxu0 0.0
  %745 = vmatprep.subr.mxu0 0.0
  %746 = vmatpush1.msra.mxu0 0.0
  %747 = vmatprep.subr.mxu0 0.0
  %748 = vmatpush1.msra.mxu0 0.0
  %749 = vmatprep.subr.mxu0 0.0
  %750 = vmatpush1.msra.mxu0 0.0
  %751 = vmatprep.subr.mxu0 0.0
  %752 = vmatpush1.msra.mxu0 0.0
  %753 = vmatprep.subr.mxu0 0.0
  %754 = vmatpush1.msra.mxu0 0.0
  %755 = vmatprep.subr.mxu0 %v56
  %756 = vmatpush1.msra.mxu0 %v54
  %757 = vmatprep.subr.mxu0 0.0
  %758 = vmatpush2.msra.mxu0 0.0
  %759 = vmatprep.subr.mxu0 0.0
  %760 = vmatpush2.msra.mxu0 0.0
  %761 = vmatprep.subr.mxu0 0.0
  %762 = vmatpush2.msra.mxu0 0.0
  %763 = vmatprep.subr.mxu0 0.0
  %764 = vmatpush2.msra.mxu0 0.0
  %765 = vmatprep.subr.mxu0 0.0
  %766 = vmatpush2.msra.mxu0 0.0
  %767 = vmatprep.subr.mxu0 0.0
  %768 = vmatpush2.msra.mxu0 0.0
  %769 = vmatprep.subr.mxu0 0.0
  %770 = vmatpush2.msra.mxu0 0.0
  %771 = vmatprep.subr.mxu0 0.0
  %772 = vmatpush2.msra.mxu0 0.0
  %773 = vmatprep.subr.mxu0 0.0
  %774 = vmatpush2.msra.mxu0 0.0
  %775 = vmatprep.subr.mxu0 0.0
  %776 = vmatpush2.msra.mxu0 0.0
  %777 = vmatprep.subr.mxu0 0.0
  %778 = vmatpush2.msra.mxu0 0.0
  %779 = vmatprep.subr.mxu0 0.0
  %780 = vmatpush2.msra.mxu0 0.0
  %781 = vmatprep.subr.mxu0 0.0
  %782 = vmatpush2.msra.mxu0 0.0
  %783 = vmatprep.subr.mxu0 0.0
  %784 = vmatpush2.msra.mxu0 0.0
  %785 = vmatprep.subr.mxu0 0.0
  %786 = vmatpush2.msra.mxu0 0.0
  %787 = vmatprep.subr.mxu0 0.0
  %788 = vmatpush2.msra.mxu0 0.0
  %789 = vmatprep.mubr.f32.mxu0 0.0
  %790 = vmatmul.mubr.f32.gmra.mxu0 %v652
  %v791 = vpop.f32.mrf.mxu0
  %v792 = vadd.f32 0.0, %v791
  %v793 = vpop.f32.mrf.mxu0
  %v794 = vadd.f32 0.0, %v793
  %795 = vdwg.mxu0
  %796 = vmatprep.subr.mxu0 0.0
  %797 = vmatpush1.msra.mxu0 0.0
  %798 = vmatprep.subr.mxu0 0.0
  %799 = vmatpush1.msra.mxu0 0.0
  %800 = vmatprep.subr.mxu0 0.0
  %801 = vmatpush1.msra.mxu0 0.0
  %802 = vmatprep.subr.mxu0 0.0
  %803 = vmatpush1.msra.mxu0 0.0
  %804 = vmatprep.subr.mxu0 0.0
  %805 = vmatpush1.msra.mxu0 0.0
  %806 = vmatprep.subr.mxu0 0.0
  %807 = vmatpush1.msra.mxu0 0.0
  %808 = vmatprep.subr.mxu0 0.0
  %809 = vmatpush1.msra.mxu0 0.0
  %810 = vmatprep.subr.mxu0 0.0
  %811 = vmatpush1.msra.mxu0 0.0
  %812 = vmatprep.subr.mxu0 0.0
  %813 = vmatpush1.msra.mxu0 0.0
  %814 = vmatprep.subr.mxu0 0.0
  %815 = vmatpush1.msra.mxu0 0.0
  %816 = vmatprep.subr.mxu0 0.0
  %817 = vmatpush1.msra.mxu0 0.0
  %818 = vmatprep.subr.mxu0 0.0
  %819 = vmatpush1.msra.mxu0 0.0
  %820 = vmatprep.subr.mxu0 0.0
  %821 = vmatpush1.msra.mxu0 0.0
  %822 = vmatprep.subr.mxu0 0.0
  %823 = vmatpush1.msra.mxu0 0.0
  %824 = vmatprep.subr.mxu0 0.0
  %825 = vmatpush1.msra.mxu0 0.0
  %826 = vmatprep.subr.mxu0 %v60
  %827 = vmatpush1.msra.mxu0 %v58
  %828 = vmatprep.subr.mxu0 0.0
  %829 = vmatpush2.msra.mxu0 0.0
  %830 = vmatprep.subr.mxu0 0.0
  %831 = vmatpush2.msra.mxu0 0.0
  %832 = vmatprep.subr.mxu0 0.0
  %833 = vmatpush2.msra.mxu0 0.0
  %834 = vmatprep.subr.mxu0 0.0
  %835 = vmatpush2.msra.mxu0 0.0
  %836 = vmatprep.subr.mxu0 0.0
  %837 = vmatpush2.msra.mxu0 0.0
  %838 = vmatprep.subr.mxu0 0.0
  %839 = vmatpush2.msra.mxu0 0.0
  %840 = vmatprep.subr.mxu0 0.0
  %841 = vmatpush2.msra.mxu0 0.0
  %842 = vmatprep.subr.mxu0 0.0
  %843 = vmatpush2.msra.mxu0 0.0
  %844 = vmatprep.subr.mxu0 0.0
  %845 = vmatpush2.msra.mxu0 0.0
  %846 = vmatprep.subr.mxu0 0.0
  %847 = vmatpush2.msra.mxu0 0.0
  %848 = vmatprep.subr.mxu0 0.0
  %849 = vmatpush2.msra.mxu0 0.0
  %850 = vmatprep.subr.mxu0 0.0
  %851 = vmatpush2.msra.mxu0 0.0
  %852 = vmatprep.subr.mxu0 0.0
  %853 = vmatpush2.msra.mxu0 0.0
  %854 = vmatprep.subr.mxu0 0.0
  %855 = vmatpush2.msra.mxu0 0.0
  %856 = vmatprep.subr.mxu0 0.0
  %857 = vmatpush2.msra.mxu0 0.0
  %858 = vmatprep.subr.mxu0 0.0
  %859 = vmatpush2.msra.mxu0 0.0
  %860 = vmatprep.mubr.f32.mxu0 0.0
  %861 = vmatmul.mubr.f32.gmra.mxu0 %v652
  %v862 = vpop.f32.mrf.mxu0
  %v863 = vadd.f32 0.0, %v862
  %v864 = vpop.f32.mrf.mxu0
  %v865 = vadd.f32 0.0, %v864
  %866 = vdwg.mxu0
  %867 = vmatprep.subr.mxu0 0.0
  %868 = vmatpush1.msra.mxu0 0.0
  %869 = vmatprep.subr.mxu0 0.0
  %870 = vmatpush1.msra.mxu0 0.0
  %871 = vmatprep.subr.mxu0 0.0
  %872 = vmatpush1.msra.mxu0 0.0
  %873 = vmatprep.subr.mxu0 0.0
  %874 = vmatpush1.msra.mxu0 0.0
  %875 = vmatprep.subr.mxu0 0.0
  %876 = vmatpush1.msra.mxu0 0.0
  %877 = vmatprep.subr.mxu0 0.0
  %878 = vmatpush1.msra.mxu0 0.0
  %879 = vmatprep.subr.mxu0 0.0
  %880 = vmatpush1.msra.mxu0 0.0
  %881 = vmatprep.subr.mxu0 0.0
  %882 = vmatpush1.msra.mxu0 0.0
  %883 = vmatprep.subr.mxu0 0.0
  %884 = vmatpush1.msra.mxu0 0.0
  %885 = vmatprep.subr.mxu0 0.0
  %886 = vmatpush1.msra.mxu0 0.0
  %887 = vmatprep.subr.mxu0 0.0
  %888 = vmatpush1.msra.mxu0 0.0
  %889 = vmatprep.subr.mxu0 0.0
  %890 = vmatpush1.msra.mxu0 0.0
  %891 = vmatprep.subr.mxu0 0.0
  %892 = vmatpush1.msra.mxu0 0.0
  %893 = vmatprep.subr.mxu0 0.0
  %894 = vmatpush1.msra.mxu0 0.0
  %895 = vmatprep.subr.mxu0 0.0
  %896 = vmatpush1.msra.mxu0 0.0
  %897 = vmatprep.subr.mxu0 %v64
  %898 = vmatpush1.msra.mxu0 %v62
  %899 = vmatprep.subr.mxu0 0.0
  %900 = vmatpush2.msra.mxu0 0.0
  %901 = vmatprep.subr.mxu0 0.0
  %902 = vmatpush2.msra.mxu0 0.0
  %903 = vmatprep.subr.mxu0 0.0
  %904 = vmatpush2.msra.mxu0 0.0
  %905 = vmatprep.subr.mxu0 0.0
  %906 = vmatpush2.msra.mxu0 0.0
  %907 = vmatprep.subr.mxu0 0.0
  %908 = vmatpush2.msra.mxu0 0.0
  %909 = vmatprep.subr.mxu0 0.0
  %910 = vmatpush2.msra.mxu0 0.0
  %911 = vmatprep.subr.mxu0 0.0
  %912 = vmatpush2.msra.mxu0 0.0
  %913 = vmatprep.subr.mxu0 0.0
  %914 = vmatpush2.msra.mxu0 0.0
  %915 = vmatprep.subr.mxu0 0.0
  %916 = vmatpush2.msra.mxu0 0.0
  %917 = vmatprep.subr.mxu0 0.0
  %918 = vmatpush2.msra.mxu0 0.0
  %919 = vmatprep.subr.mxu0 0.0
  %920 = vmatpush2.msra.mxu0 0.0
  %921 = vmatprep.subr.mxu0 0.0
  %922 = vmatpush2.msra.mxu0 0.0
  %923 = vmatprep.subr.mxu0 0.0
  %924 = vmatpush2.msra.mxu0 0.0
  %925 = vmatprep.subr.mxu0 0.0
  %926 = vmatpush2.msra.mxu0 0.0
  %927 = vmatprep.subr.mxu0 0.0
  %928 = vmatpush2.msra.mxu0 0.0
  %929 = vmatprep.subr.mxu0 0.0
  %930 = vmatpush2.msra.mxu0 0.0
  %931 = vmatprep.mubr.f32.mxu0 0.0
  %932 = vmatmul.mubr.f32.gmra.mxu0 %v652
  %v933 = vpop.f32.mrf.mxu0
  %v934 = vadd.f32 0.0, %v933
  %v935 = vpop.f32.mrf.mxu0
  %v936 = vadd.f32 0.0, %v935
  %937 = vdwg.mxu0
  %938 = vmatprep.subr.mxu0 0.0
  %939 = vmatpush1.msra.mxu0 0.0
  %940 = vmatprep.subr.mxu0 0.0
  %941 = vmatpush1.msra.mxu0 0.0
  %942 = vmatprep.subr.mxu0 0.0
  %943 = vmatpush1.msra.mxu0 0.0
  %944 = vmatprep.subr.mxu0 0.0
  %945 = vmatpush1.msra.mxu0 0.0
  %946 = vmatprep.subr.mxu0 0.0
  %947 = vmatpush1.msra.mxu0 0.0
  %948 = vmatprep.subr.mxu0 0.0
  %949 = vmatpush1.msra.mxu0 0.0
  %950 = vmatprep.subr.mxu0 0.0
  %951 = vmatpush1.msra.mxu0 0.0
  %952 = vmatprep.subr.mxu0 0.0
  %953 = vmatpush1.msra.mxu0 0.0
  %954 = vmatprep.subr.mxu0 0.0
  %955 = vmatpush1.msra.mxu0 0.0
  %956 = vmatprep.subr.mxu0 0.0
  %957 = vmatpush1.msra.mxu0 0.0
  %958 = vmatprep.subr.mxu0 0.0
  %959 = vmatpush1.msra.mxu0 0.0
  %960 = vmatprep.subr.mxu0 0.0
  %961 = vmatpush1.msra.mxu0 0.0
  %962 = vmatprep.subr.mxu0 0.0
  %963 = vmatpush1.msra.mxu0 0.0
  %964 = vmatprep.subr.mxu0 0.0
  %965 = vmatpush1.msra.mxu0 0.0
  %966 = vmatprep.subr.mxu0 0.0
  %967 = vmatpush1.msra.mxu0 0.0
  %968 = vmatprep.subr.mxu0 %v68
  %969 = vmatpush1.msra.mxu0 %v66
  %970 = vmatprep.subr.mxu0 0.0
  %971 = vmatpush2.msra.mxu0 0.0
  %972 = vmatprep.subr.mxu0 0.0
  %973 = vmatpush2.msra.mxu0 0.0
  %974 = vmatprep.subr.mxu0 0.0
  %975 = vmatpush2.msra.mxu0 0.0
  %976 = vmatprep.subr.mxu0 0.0
  %977 = vmatpush2.msra.mxu0 0.0
  %978 = vmatprep.subr.mxu0 0.0
  %979 = vmatpush2.msra.mxu0 0.0
  %980 = vmatprep.subr.mxu0 0.0
  %981 = vmatpush2.msra.mxu0 0.0
  %982 = vmatprep.subr.mxu0 0.0
  %983 = vmatpush2.msra.mxu0 0.0
  %984 = vmatprep.subr.mxu0 0.0
  %985 = vmatpush2.msra.mxu0 0.0
  %986 = vmatprep.subr.mxu0 0.0
  %987 = vmatpush2.msra.mxu0 0.0
  %988 = vmatprep.subr.mxu0 0.0
  %989 = vmatpush2.msra.mxu0 0.0
  %990 = vmatprep.subr.mxu0 0.0
  %991 = vmatpush2.msra.mxu0 0.0
  %992 = vmatprep.subr.mxu0 0.0
  %993 = vmatpush2.msra.mxu0 0.0
  %994 = vmatprep.subr.mxu0 0.0
  %995 = vmatpush2.msra.mxu0 0.0
  %996 = vmatprep.subr.mxu0 0.0
  %997 = vmatpush2.msra.mxu0 0.0
  %998 = vmatprep.subr.mxu0 0.0
  %999 = vmatpush2.msra.mxu0 0.0
  %1000 = vmatprep.subr.mxu0 0.0
  %1001 = vmatpush2.msra.mxu0 0.0
  %1002 = vmatprep.mubr.f32.mxu0 0.0
  %1003 = vmatmul.mubr.f32.gmra.mxu0 %v652
  %v1004 = vpop.f32.mrf.mxu0
  %v1005 = vadd.f32 0.0, %v1004
  %v1006 = vpop.f32.mrf.mxu0
  %v1007 = vadd.f32 0.0, %v1006
  %1008 = vdwg.mxu0
  %1009 = vmatprep.subr.mxu0 0.0
  %1010 = vmatpush1.msra.mxu0 0.0
  %1011 = vmatprep.subr.mxu0 0.0
  %1012 = vmatpush1.msra.mxu0 0.0
  %1013 = vmatprep.subr.mxu0 0.0
  %1014 = vmatpush1.msra.mxu0 0.0
  %1015 = vmatprep.subr.mxu0 0.0
  %1016 = vmatpush1.msra.mxu0 0.0
  %1017 = vmatprep.subr.mxu0 0.0
  %1018 = vmatpush1.msra.mxu0 0.0
  %1019 = vmatprep.subr.mxu0 0.0
  %1020 = vmatpush1.msra.mxu0 0.0
  %1021 = vmatprep.subr.mxu0 0.0
  %1022 = vmatpush1.msra.mxu0 0.0
  %1023 = vmatprep.subr.mxu0 0.0
  %1024 = vmatpush1.msra.mxu0 0.0
  %1025 = vmatprep.subr.mxu0 0.0
  %1026 = vmatpush1.msra.mxu0 0.0
  %1027 = vmatprep.subr.mxu0 0.0
  %1028 = vmatpush1.msra.mxu0 0.0
  %1029 = vmatprep.subr.mxu0 0.0
  %1030 = vmatpush1.msra.mxu0 0.0
  %1031 = vmatprep.subr.mxu0 0.0
  %1032 = vmatpush1.msra.mxu0 0.0
  %1033 = vmatprep.subr.mxu0 0.0
  %1034 = vmatpush1.msra.mxu0 0.0
  %1035 = vmatprep.subr.mxu0 0.0
  %1036 = vmatpush1.msra.mxu0 0.0
  %1037 = vmatprep.subr.mxu0 0.0
  %1038 = vmatpush1.msra.mxu0 0.0
  %1039 = vmatprep.subr.mxu0 %v72
  %1040 = vmatpush1.msra.mxu0 %v70
  %1041 = vmatprep.subr.mxu0 0.0
  %1042 = vmatpush2.msra.mxu0 0.0
  %1043 = vmatprep.subr.mxu0 0.0
  %1044 = vmatpush2.msra.mxu0 0.0
  %1045 = vmatprep.subr.mxu0 0.0
  %1046 = vmatpush2.msra.mxu0 0.0
  %1047 = vmatprep.subr.mxu0 0.0
  %1048 = vmatpush2.msra.mxu0 0.0
  %1049 = vmatprep.subr.mxu0 0.0
  %1050 = vmatpush2.msra.mxu0 0.0
  %1051 = vmatprep.subr.mxu0 0.0
  %1052 = vmatpush2.msra.mxu0 0.0
  %1053 = vmatprep.subr.mxu0 0.0
  %1054 = vmatpush2.msra.mxu0 0.0
  %1055 = vmatprep.subr.mxu0 0.0
  %1056 = vmatpush2.msra.mxu0 0.0
  %1057 = vmatprep.subr.mxu0 0.0
  %1058 = vmatpush2.msra.mxu0 0.0
  %1059 = vmatprep.subr.mxu0 0.0
  %1060 = vmatpush2.msra.mxu0 0.0
  %1061 = vmatprep.subr.mxu0 0.0
  %1062 = vmatpush2.msra.mxu0 0.0
  %1063 = vmatprep.subr.mxu0 0.0
  %1064 = vmatpush2.msra.mxu0 0.0
  %1065 = vmatprep.subr.mxu0 0.0
  %1066 = vmatpush2.msra.mxu0 0.0
  %1067 = vmatprep.subr.mxu0 0.0
  %1068 = vmatpush2.msra.mxu0 0.0
  %1069 = vmatprep.subr.mxu0 0.0
  %1070 = vmatpush2.msra.mxu0 0.0
  %1071 = vmatprep.subr.mxu0 0.0
  %1072 = vmatpush2.msra.mxu0 0.0
  %1073 = vmatprep.mubr.f32.mxu0 0.0
  %1074 = vmatmul.mubr.f32.gmra.mxu0 %v652
  %v1075 = vpop.f32.mrf.mxu0
  %v1076 = vadd.f32 0.0, %v1075
  %v1077 = vpop.f32.mrf.mxu0
  %v1078 = vadd.f32 0.0, %v1077
  %1079 = vdwg.mxu0
  %1080 = vmatprep.subr.mxu0 0.0
  %1081 = vmatpush1.msra.mxu0 0.0
  %1082 = vmatprep.subr.mxu0 0.0
  %1083 = vmatpush1.msra.mxu0 0.0
  %1084 = vmatprep.subr.mxu0 0.0
  %1085 = vmatpush1.msra.mxu0 0.0
  %1086 = vmatprep.subr.mxu0 0.0
  %1087 = vmatpush1.msra.mxu0 0.0
  %1088 = vmatprep.subr.mxu0 0.0
  %1089 = vmatpush1.msra.mxu0 0.0
  %1090 = vmatprep.subr.mxu0 0.0
  %1091 = vmatpush1.msra.mxu0 0.0
  %1092 = vmatprep.subr.mxu0 0.0
  %1093 = vmatpush1.msra.mxu0 0.0
  %1094 = vmatprep.subr.mxu0 0.0
  %1095 = vmatpush1.msra.mxu0 0.0
  %1096 = vmatprep.subr.mxu0 0.0
  %1097 = vmatpush1.msra.mxu0 0.0
  %1098 = vmatprep.subr.mxu0 0.0
  %1099 = vmatpush1.msra.mxu0 0.0
  %1100 = vmatprep.subr.mxu0 0.0
  %1101 = vmatpush1.msra.mxu0 0.0
  %1102 = vmatprep.subr.mxu0 0.0
  %1103 = vmatpush1.msra.mxu0 0.0
  %1104 = vmatprep.subr.mxu0 0.0
  %1105 = vmatpush1.msra.mxu0 0.0
  %1106 = vmatprep.subr.mxu0 0.0
  %1107 = vmatpush1.msra.mxu0 0.0
  %1108 = vmatprep.subr.mxu0 0.0
  %1109 = vmatpush1.msra.mxu0 0.0
  %1110 = vmatprep.subr.mxu0 %v76
  %1111 = vmatpush1.msra.mxu0 %v74
  %1112 = vmatprep.subr.mxu0 0.0
  %1113 = vmatpush2.msra.mxu0 0.0
  %1114 = vmatprep.subr.mxu0 0.0
  %1115 = vmatpush2.msra.mxu0 0.0
  %1116 = vmatprep.subr.mxu0 0.0
  %1117 = vmatpush2.msra.mxu0 0.0
  %1118 = vmatprep.subr.mxu0 0.0
  %1119 = vmatpush2.msra.mxu0 0.0
  %1120 = vmatprep.subr.mxu0 0.0
  %1121 = vmatpush2.msra.mxu0 0.0
  %1122 = vmatprep.subr.mxu0 0.0
  %1123 = vmatpush2.msra.mxu0 0.0
  %1124 = vmatprep.subr.mxu0 0.0
  %1125 = vmatpush2.msra.mxu0 0.0
  %1126 = vmatprep.subr.mxu0 0.0
  %1127 = vmatpush2.msra.mxu0 0.0
  %1128 = vmatprep.subr.mxu0 0.0
  %1129 = vmatpush2.msra.mxu0 0.0
  %1130 = vmatprep.subr.mxu0 0.0
  %1131 = vmatpush2.msra.mxu0 0.0
  %1132 = vmatprep.subr.mxu0 0.0
  %1133 = vmatpush2.msra.mxu0 0.0
  %1134 = vmatprep.subr.mxu0 0.0
  %1135 = vmatpush2.msra.mxu0 0.0
  %1136 = vmatprep.subr.mxu0 0.0
  %1137 = vmatpush2.msra.mxu0 0.0
  %1138 = vmatprep.subr.mxu0 0.0
  %1139 = vmatpush2.msra.mxu0 0.0
  %1140 = vmatprep.subr.mxu0 0.0
  %1141 = vmatpush2.msra.mxu0 0.0
  %1142 = vmatprep.subr.mxu0 0.0
  %1143 = vmatpush2.msra.mxu0 0.0
  %1144 = vmatprep.mubr.f32.mxu0 0.0
  %1145 = vmatmul.mubr.f32.gmra.mxu0 %v652
  %v1146 = vpop.f32.mrf.mxu0
  %v1147 = vadd.f32 0.0, %v1146
  %v1148 = vpop.f32.mrf.mxu0
  %v1149 = vadd.f32 0.0, %v1148
  %1150 = vdwg.mxu0
  %1151 = vmatprep.subr.mxu0 0.0
  %1152 = vmatpush1.msra.mxu0 0.0
  %1153 = vmatprep.subr.mxu0 0.0
  %1154 = vmatpush1.msra.mxu0 0.0
  %1155 = vmatprep.subr.mxu0 0.0
  %1156 = vmatpush1.msra.mxu0 0.0
  %1157 = vmatprep.subr.mxu0 0.0
  %1158 = vmatpush1.msra.mxu0 0.0
  %1159 = vmatprep.subr.mxu0 0.0
  %1160 = vmatpush1.msra.mxu0 0.0
  %1161 = vmatprep.subr.mxu0 0.0
  %1162 = vmatpush1.msra.mxu0 0.0
  %1163 = vmatprep.subr.mxu0 0.0
  %1164 = vmatpush1.msra.mxu0 0.0
  %1165 = vmatprep.subr.mxu0 0.0
  %1166 = vmatpush1.msra.mxu0 0.0
  %1167 = vmatprep.subr.mxu0 0.0
  %1168 = vmatpush1.msra.mxu0 0.0
  %1169 = vmatprep.subr.mxu0 0.0
  %1170 = vmatpush1.msra.mxu0 0.0
  %1171 = vmatprep.subr.mxu0 0.0
  %1172 = vmatpush1.msra.mxu0 0.0
  %1173 = vmatprep.subr.mxu0 0.0
  %1174 = vmatpush1.msra.mxu0 0.0
  %1175 = vmatprep.subr.mxu0 0.0
  %1176 = vmatpush1.msra.mxu0 0.0
  %1177 = vmatprep.subr.mxu0 0.0
  %1178 = vmatpush1.msra.mxu0 0.0
  %1179 = vmatprep.subr.mxu0 0.0
  %1180 = vmatpush1.msra.mxu0 0.0
  %1181 = vmatprep.subr.mxu0 %v80
  %1182 = vmatpush1.msra.mxu0 %v78
  %1183 = vmatprep.subr.mxu0 0.0
  %1184 = vmatpush2.msra.mxu0 0.0
  %1185 = vmatprep.subr.mxu0 0.0
  %1186 = vmatpush2.msra.mxu0 0.0
  %1187 = vmatprep.subr.mxu0 0.0
  %1188 = vmatpush2.msra.mxu0 0.0
  %1189 = vmatprep.subr.mxu0 0.0
  %1190 = vmatpush2.msra.mxu0 0.0
  %1191 = vmatprep.subr.mxu0 0.0
  %1192 = vmatpush2.msra.mxu0 0.0
  %1193 = vmatprep.subr.mxu0 0.0
  %1194 = vmatpush2.msra.mxu0 0.0
  %1195 = vmatprep.subr.mxu0 0.0
  %1196 = vmatpush2.msra.mxu0 0.0
  %1197 = vmatprep.subr.mxu0 0.0
  %1198 = vmatpush2.msra.mxu0 0.0
  %1199 = vmatprep.subr.mxu0 0.0
  %1200 = vmatpush2.msra.mxu0 0.0
  %1201 = vmatprep.subr.mxu0 0.0
  %1202 = vmatpush2.msra.mxu0 0.0
  %1203 = vmatprep.subr.mxu0 0.0
  %1204 = vmatpush2.msra.mxu0 0.0
  %1205 = vmatprep.subr.mxu0 0.0
  %1206 = vmatpush2.msra.mxu0 0.0
  %1207 = vmatprep.subr.mxu0 0.0
  %1208 = vmatpush2.msra.mxu0 0.0
  %1209 = vmatprep.subr.mxu0 0.0
  %1210 = vmatpush2.msra.mxu0 0.0
  %1211 = vmatprep.subr.mxu0 0.0
  %1212 = vmatpush2.msra.mxu0 0.0
  %1213 = vmatprep.subr.mxu0 0.0
  %1214 = vmatpush2.msra.mxu0 0.0
  %1215 = vmatprep.mubr.f32.mxu0 0.0
  %1216 = vmatmul.mubr.f32.gmra.mxu0 %v652
  %v1217 = vpop.f32.mrf.mxu0
  %v1218 = vadd.f32 0.0, %v1217
  %v1219 = vpop.f32.mrf.mxu0
  %v1220 = vadd.f32 0.0, %v1219
  %1221 = vdwg.mxu0
  %v1238 = vcombine.low %v149, %v151
  %v1239 = vcombine.low %v220, %v222
  %v1241 = vunpack.c.l.s4 1983009808
  %v1242 = vunpack.c.0.s8 %v1241
  %v1243 = vlaneseq
  %v1244 = vshrl.u32 %v1243, 7
  %v1245 = vsub.s32 %v1242, %v1244
  %v1246 = vrot.slane %v1238, %v1245
  %v1248 = vunpack.c.l.s4 1983009808
  %v1249 = vunpack.c.0.s8 %v1248
  %v1250 = vlaneseq
  %v1251 = vshrl.u32 %v1250, 7
  %v1252 = vsub.s32 %v1249, %v1251
  %v1253 = vrot.slane %v1239, %v1252
  %v1254 = vcombine.low %v1246, %v1253
  %v1255 = vcombine.low %v291, %v293
  %v1256 = vcombine.low %v362, %v364
  %v1258 = vunpack.c.l.s4 1983009808
  %v1259 = vunpack.c.0.s8 %v1258
  %v1260 = vlaneseq
  %v1261 = vshrl.u32 %v1260, 7
  %v1262 = vsub.s32 %v1259, %v1261
  %v1263 = vrot.slane %v1255, %v1262
  %v1265 = vunpack.c.l.s4 1983009808
  %v1266 = vunpack.c.0.s8 %v1265
  %v1267 = vlaneseq
  %v1268 = vshrl.u32 %v1267, 7
  %v1269 = vsub.s32 %v1266, %v1268
  %v1270 = vrot.slane %v1256, %v1269
  %v1271 = vcombine.low %v1263, %v1270
  %v1272 = vcombine.low %v433, %v435
  %v1273 = vcombine.low %v504, %v506
  %v1275 = vunpack.c.l.s4 1983009808
  %v1276 = vunpack.c.0.s8 %v1275
  %v1277 = vlaneseq
  %v1278 = vshrl.u32 %v1277, 7
  %v1279 = vsub.s32 %v1276, %v1278
  %v1280 = vrot.slane %v1272, %v1279
  %v1282 = vunpack.c.l.s4 1983009808
  %v1283 = vunpack.c.0.s8 %v1282
  %v1284 = vlaneseq
  %v1285 = vshrl.u32 %v1284, 7
  %v1286 = vsub.s32 %v1283, %v1285
  %v1287 = vrot.slane %v1273, %v1286
  %v1288 = vcombine.low %v1280, %v1287
  %v1289 = vcombine.low %v575, %v577
  %v1290 = vcombine.low %v646, %v648
  %v1292 = vunpack.c.l.s4 1983009808
  %v1293 = vunpack.c.0.s8 %v1292
  %v1294 = vlaneseq
  %v1295 = vshrl.u32 %v1294, 7
  %v1296 = vsub.s32 %v1293, %v1295
  %v1297 = vrot.slane %v1289, %v1296
  %v1299 = vunpack.c.l.s4 1983009808
  %v1300 = vunpack.c.0.s8 %v1299
  %v1301 = vlaneseq
  %v1302 = vshrl.u32 %v1301, 7
  %v1303 = vsub.s32 %v1300, %v1302
  %v1304 = vrot.slane %v1290, %v1303
  %v1305 = vcombine.low %v1297, %v1304
  %1310 = vst [vmem:[%s3] sm:$0xff] %v1254
  %1311 = vst [vmem:[%s3 + $0x8] sm:$0xff] %v1271
  %1312 = vst [vmem:[%s3 + $0x10] sm:$0xff] %v1288
  %1313 = vst [vmem:[%s3 + $0x18] sm:$0xff] %v1305
  %1314 = vst [vmem:[%s4] sm:$0xff] %v721
  %1315 = vst [vmem:[%s4 + $0x8] sm:$0xff] %v723
  %1316 = vst [vmem:[%s4 + $0x10] sm:$0xff] %v792
  %1317 = vst [vmem:[%s4 + $0x18] sm:$0xff] %v794
  %1318 = vst [vmem:[%s4 + $0x20] sm:$0xff] %v863
  %1319 = vst [vmem:[%s4 + $0x28] sm:$0xff] %v865
  %1320 = vst [vmem:[%s4 + $0x30] sm:$0xff] %v934
  %1321 = vst [vmem:[%s4 + $0x38] sm:$0xff] %v936
  %1322 = vst [vmem:[%s4 + $0x40] sm:$0xff] %v1005
  %1323 = vst [vmem:[%s4 + $0x48] sm:$0xff] %v1007
  %1324 = vst [vmem:[%s4 + $0x50] sm:$0xff] %v1076
  %1325 = vst [vmem:[%s4 + $0x58] sm:$0xff] %v1078
  %1326 = vst [vmem:[%s4 + $0x60] sm:$0xff] %v1147
  %1327 = vst [vmem:[%s4 + $0x68] sm:$0xff] %v1149
  %1328 = vst [vmem:[%s4 + $0x70] sm:$0xff] %v1218
  %1329 = vst [vmem:[%s4 + $0x78] sm:$0xff] %v1220
  %vm1330 = vcmask 1041408
  %v1331 = vsel %vm1330, %v149, 0.0
  %v1332 = vsel %vm1330, %v151, 0.0
  %v1333 = vadd.f32 %v1331, %v1332
  %v1334 = vsel %vm1330, %v220, 0.0
  %v1335 = vadd.f32 %v1333, %v1334
  %v1336 = vsel %vm1330, %v222, 0.0
  %v1337 = vadd.f32 %v1335, %v1336
  %v1338 = vsel %vm1330, %v291, 0.0
  %v1339 = vadd.f32 %v1337, %v1338
  %v1340 = vsel %vm1330, %v293, 0.0
  %v1341 = vadd.f32 %v1339, %v1340
  %v1342 = vsel %vm1330, %v362, 0.0
  %v1343 = vadd.f32 %v1341, %v1342
  %v1344 = vsel %vm1330, %v364, 0.0
  %v1345 = vadd.f32 %v1343, %v1344
  %v1346 = vsel %vm1330, %v433, 0.0
  %v1347 = vadd.f32 %v1345, %v1346
  %v1348 = vsel %vm1330, %v435, 0.0
  %v1349 = vadd.f32 %v1347, %v1348
  %v1350 = vsel %vm1330, %v504, 0.0
  %v1351 = vadd.f32 %v1349, %v1350
  %v1352 = vsel %vm1330, %v506, 0.0
  %v1353 = vadd.f32 %v1351, %v1352
  %v1354 = vsel %vm1330, %v575, 0.0
  %v1355 = vadd.f32 %v1353, %v1354
  %v1356 = vsel %vm1330, %v577, 0.0
  %v1357 = vadd.f32 %v1355, %v1356
  %v1358 = vsel %vm1330, %v646, 0.0
  %v1359 = vadd.f32 %v1357, %v1358
  %v1360 = vsel %vm1330, %v648, 0.0
  %v1361 = vadd.f32 %v1359, %v1360
  %1362 = vadd.xlane.f32.xlu0 %v1361
  %v1363 = vpop.xlane.xlu0 %1362
  %vm1364 = vcmask 1024
  %1365 = vst.msk [vmem:[%s5] sm:$0x3] %vm1364, %v1363
  %v1366 = vmul.f32 %v149, %v149
  %v1367 = vmul.f32 %v151, %v151
  %v1368 = vmul.f32 %v220, %v220
  %v1369 = vmul.f32 %v222, %v222
  %v1370 = vmul.f32 %v291, %v291
  %v1371 = vmul.f32 %v293, %v293
  %v1372 = vmul.f32 %v362, %v362
  %v1373 = vmul.f32 %v364, %v364
  %v1374 = vmul.f32 %v433, %v433
  %v1375 = vmul.f32 %v435, %v435
  %v1376 = vmul.f32 %v504, %v504
  %v1377 = vmul.f32 %v506, %v506
  %v1378 = vmul.f32 %v575, %v575
  %v1379 = vmul.f32 %v577, %v577
  %v1380 = vmul.f32 %v646, %v646
  %v1381 = vmul.f32 %v648, %v648
  %v1382 = vsel %vm1330, %v1366, 0.0
  %v1383 = vsel %vm1330, %v1367, 0.0
  %v1384 = vadd.f32 %v1382, %v1383
  %v1385 = vsel %vm1330, %v1368, 0.0
  %v1386 = vadd.f32 %v1384, %v1385
  %v1387 = vsel %vm1330, %v1369, 0.0
  %v1388 = vadd.f32 %v1386, %v1387
  %v1389 = vsel %vm1330, %v1370, 0.0
  %v1390 = vadd.f32 %v1388, %v1389
  %v1391 = vsel %vm1330, %v1371, 0.0
  %v1392 = vadd.f32 %v1390, %v1391
  %v1393 = vsel %vm1330, %v1372, 0.0
  %v1394 = vadd.f32 %v1392, %v1393
  %v1395 = vsel %vm1330, %v1373, 0.0
  %v1396 = vadd.f32 %v1394, %v1395
  %v1397 = vsel %vm1330, %v1374, 0.0
  %v1398 = vadd.f32 %v1396, %v1397
  %v1399 = vsel %vm1330, %v1375, 0.0
  %v1400 = vadd.f32 %v1398, %v1399
  %v1401 = vsel %vm1330, %v1376, 0.0
  %v1402 = vadd.f32 %v1400, %v1401
  %v1403 = vsel %vm1330, %v1377, 0.0
  %v1404 = vadd.f32 %v1402, %v1403
  %v1405 = vsel %vm1330, %v1378, 0.0
  %v1406 = vadd.f32 %v1404, %v1405
  %v1407 = vsel %vm1330, %v1379, 0.0
  %v1408 = vadd.f32 %v1406, %v1407
  %v1409 = vsel %vm1330, %v1380, 0.0
  %v1410 = vadd.f32 %v1408, %v1409
  %v1411 = vsel %vm1330, %v1381, 0.0
  %v1412 = vadd.f32 %v1410, %v1411
  %1413 = vadd.xlane.f32.xlu0 %v1412
  %v1414 = vpop.xlane.xlu0 %1413
  %1415 = vst.msk [vmem:[%s6] sm:$0x3] %vm1364, %v1414
  %v1416 = vadd.f32 %v721, %v723
  %v1417 = vadd.f32 %v1416, %v792
  %v1418 = vadd.f32 %v1417, %v794
  %v1419 = vadd.f32 %v1418, %v863
  %v1420 = vadd.f32 %v1419, %v865
  %v1421 = vadd.f32 %v1420, %v934
  %v1422 = vadd.f32 %v1421, %v936
  %v1423 = vadd.f32 %v1422, %v1005
  %v1424 = vadd.f32 %v1423, %v1007
  %v1425 = vadd.f32 %v1424, %v1076
  %v1426 = vadd.f32 %v1425, %v1078
  %v1427 = vadd.f32 %v1426, %v1147
  %v1428 = vadd.f32 %v1427, %v1149
  %v1429 = vadd.f32 %v1428, %v1218
  %v1430 = vadd.f32 %v1429, %v1220
  %1431 = vadd.xlane.f32.xlu0 %v1430
  %v1432 = vpop.xlane.xlu0 %1431
  %vm1433 = vcmask 7168
  %1434 = vst.msk [vmem:[%s7] sm:$0xff] %vm1433, %v1432
  %v1435 = vmul.f32 %v721, %v721
  %v1436 = vmul.f32 %v723, %v723
  %v1437 = vmul.f32 %v792, %v792
  %v1438 = vmul.f32 %v794, %v794
  %v1439 = vmul.f32 %v863, %v863
  %v1440 = vmul.f32 %v865, %v865
  %v1441 = vmul.f32 %v934, %v934
  %v1442 = vmul.f32 %v936, %v936
  %v1443 = vmul.f32 %v1005, %v1005
  %v1444 = vmul.f32 %v1007, %v1007
  %v1445 = vmul.f32 %v1076, %v1076
  %v1446 = vmul.f32 %v1078, %v1078
  %v1447 = vmul.f32 %v1147, %v1147
  %v1448 = vmul.f32 %v1149, %v1149
  %v1449 = vmul.f32 %v1218, %v1218
  %v1450 = vmul.f32 %v1220, %v1220
  %v1451 = vadd.f32 %v1435, %v1436
  %v1452 = vadd.f32 %v1451, %v1437
  %v1453 = vadd.f32 %v1452, %v1438
  %v1454 = vadd.f32 %v1453, %v1439
  %v1455 = vadd.f32 %v1454, %v1440
  %v1456 = vadd.f32 %v1455, %v1441
  %v1457 = vadd.f32 %v1456, %v1442
  %v1458 = vadd.f32 %v1457, %v1443
  %v1459 = vadd.f32 %v1458, %v1444
  %v1460 = vadd.f32 %v1459, %v1445
  %v1461 = vadd.f32 %v1460, %v1446
  %v1462 = vadd.f32 %v1461, %v1447
  %v1463 = vadd.f32 %v1462, %v1448
  %v1464 = vadd.f32 %v1463, %v1449
  %v1465 = vadd.f32 %v1464, %v1450
  %1466 = vadd.xlane.f32.xlu0 %v1465
  %v1467 = vpop.xlane.xlu0 %1466
  %1468 = vst.msk [vmem:[%s8] sm:$0xff] %vm1433, %v1467
  // Predicated region
  $region14: #{residual_block_forward.4} parent=0 // pred_check
    _
  $region15: #{residual_block_forward.4} parent=0 // pred_check_branch
    %1470 = sbr.rel (0) target = $region17
  $region16: #{residual_block_forward.4} parent=0 // pred_region
    _
  $region17: #{residual_block_forward.4} parent=0 // pred_fallthru
    _
  // Predicated region
  $region18: #{residual_block_forward.4} parent=0 // pred_check
    _
  $region19: #{residual_block_forward.4} parent=0 // pred_check_branch
    %1472 = sbr.rel (0) target = $region21
  $region20: #{residual_block_forward.4} parent=0 // pred_region
    _
  $region21: #{residual_block_forward.4} parent=0 // pred_fallthru
    _
  // Predicated region
  $region22: #{residual_block_forward.4} parent=0 // pred_check
    _
  $region23: #{residual_block_forward.4} parent=0 // pred_check_branch
    %1474 = sbr.rel (0) target = $region25
  $region24: #{residual_block_forward.4} parent=0 // pred_region
    _
  $region25: #{residual_block_forward.4} parent=0 // pred_fallthru
    _
  // Predicated region
  $region26: #{residual_block_forward.4} parent=0 // pred_check
    _
  $region27: #{residual_block_forward.4} parent=0 // pred_check_branch
    %1476 = sbr.rel (0) target = $region29
  $region28: #{residual_block_forward.4} parent=0 // pred_region
    _
  $region29: #{residual_block_forward.4} parent=0 // pred_fallthru
    _
  // Predicated region
  $region30: #{residual_block_forward.4} parent=0 // pred_check
    _
  $region31: #{residual_block_forward.4} parent=0 // pred_check_branch
    %1478 = sbr.rel (0) target = $region33
  $region32: #{residual_block_forward.4} parent=0 // pred_region
    _
  $region33: #{residual_block_forward.4} parent=0 // pred_fallthru
    _
  // Predicated region
  $region34: #{residual_block_forward.4} parent=0 // pred_check
    _
  $region35: #{residual_block_forward.4} parent=0 // pred_check_branch
    %1480 = sbr.rel (0) target = $region37
  $region36: #{residual_block_forward.4} parent=0 // pred_region
    _
  $region37: #{residual_block_forward.4} parent=0 // pred_fallthru
    _
  // Predicated region
  $region38: #{residual_block_forward.4} parent=0 // pred_check
    _
  $region39: #{residual_block_forward.4} parent=0 // pred_check_branch
    %1482 = sbr.rel (0) target = $region41
  $region40: #{residual_block_forward.4} parent=0 // pred_region
    _
  $region41: #{residual_block_forward.4} parent=0 // pred_fallthru
    _
  // Predicated region
  $region42: #{residual_block_forward.4} parent=0 // pred_check
    _
  $region43: #{residual_block_forward.4} parent=0 // pred_check_branch
    %1484 = sbr.rel (0) target = $region45
  $region44: #{residual_block_forward.4} parent=0 // pred_region
    _
  $region45: #{residual_block_forward.4} parent=0 // pred_fallthru
    _
  // Predicated region
  $region46: #{residual_block_forward.4} parent=0 // pred_check
    _
  $region47: #{residual_block_forward.4} parent=0 // pred_check_branch
    %1486 = sbr.rel (0) target = $region49
  $region48: #{residual_block_forward.4} parent=0 // pred_region
    _
  $region49: #{residual_block_forward.4} parent=0 // pred_fallthru
    _
  // Predicated region
  $region50: #{residual_block_forward.4} parent=0 // pred_check
    _
  $region51: #{residual_block_forward.4} parent=0 // pred_check_branch
    %1488 = sbr.rel (0) target = $region53
  $region52: #{residual_block_forward.4} parent=0 // pred_region
    _
  $region53: #{residual_block_forward.4} parent=0 // pred_fallthru
    _
  // Predicated region
  $region54: #{residual_block_forward.4} parent=0 // pred_check
    _
  $region55: #{residual_block_forward.4} parent=0 // pred_check_branch
    %1490 = sbr.rel (0) target = $region57
  $region56: #{residual_block_forward.4} parent=0 // pred_region
    _
  $region57: #{residual_block_forward.4} parent=0 // pred_fallthru
    _
  // Predicated region
  $region58: #{residual_block_forward.4} parent=0 // pred_check
    _
  $region59: #{residual_block_forward.4} parent=0 // pred_check_branch
    %1492 = sbr.rel (0) target = $region61
  $region60: #{residual_block_forward.4} parent=0 // pred_region
    _
  $region61: #{residual_block_forward.4} parent=0 // pred_fallthru
    _

// kernel: mul.62
$region0: #{mul.62}
  #allocation0 [shape = 's32[1]{0}', space=sflag, size = 0x4, scoped, tag = 'scoped memory for mul.62']
  %s0 = inlined_call_operand.vmem [shape: f32[2,1], index: 0, kind: input, shape index: {}]
  %s1 = inlined_call_operand.vmem [shape: f32[2,1], index: 1, kind: input, shape index: {}]
  %s2 = inlined_call_operand.vmem [shape: f32[2,1], index: 2, kind: output, shape index: {}]
  %v3 = vld [vmem:[%s0] sm:$0x3]
  %v4 = vld [vmem:[%s1] sm:$0x3]
  %5 = xla_tuple %v3, %v4
  %6 = xla_tuple %5
  %v7 = vmul.f32 %v3, %v4
  %8 = xla_tuple %v7
  %9 = vst [vmem:[%s2] sm:$0x3] %v7

// kernel: residual_block_forward.6
$region0: #{residual_block_forward.6}
  #allocation0 [shape = 'u32[]', space=smem, size = 0x4, offset = 0x4, fixed_abs, tag = 'smem constant byte address 0x4 - core index']
  #allocation1 [shape = 'u32[144,128]{1,0:T(1,128)}', space=vmem, size = 0x12000, scoped, tag = 'internal scratch']
  %s0 = inlined_call_operand.vmem [shape: f32[2,512], index: 0, kind: input, shape index: {}]
  %s1 = inlined_call_operand.vmem [shape: f32[2,1], index: 1, kind: input, shape index: {}]
  %s2 = inlined_call_operand.vmem [shape: f32[2,1], index: 2, kind: input, shape index: {}]
  %s3 = inlined_call_operand.vmem [shape: f32[8,2], index: 3, kind: input, shape index: {}]
  %s4 = inlined_call_operand.vmem [shape: f32[8,512], index: 4, kind: output, shape index: {0}]
  %s5 = inlined_call_operand.vmem [shape: f32[1,8,1], index: 5, kind: output, shape index: {1}]
  %s6 = inlined_call_operand.vmem [shape: f32[1,8,1], index: 6, kind: output, shape index: {2}]
  %7 = xla_tuple %s4, %s5, %s6
  %s8 = sld [smem:[#allocation0]]
  $region42: #{residual_block_forward.6} parent=0
    _
  %s10 = ssub.s32 1, %s8
  %s11 = scalar_select 0, %s10, %s8
  // Predicated region
  $region2: #{residual_block_forward.6} parent=0 // pred_check
    _
  $region3: #{residual_block_forward.6} parent=0 // pred_check_branch
    %13 = sbr.rel (0) target = $region5
  $region4: #{residual_block_forward.6} parent=0 // pred_region
    _
  $region5: #{residual_block_forward.6} parent=0 // pred_fallthru
    _
  // Predicated region
  $region6: #{residual_block_forward.6} parent=0 // pred_check
    _
  $region7: #{residual_block_forward.6} parent=0 // pred_check_branch
    %15 = sbr.rel (0) target = $region9
  $region8: #{residual_block_forward.6} parent=0 // pred_region
    _
  $region9: #{residual_block_forward.6} parent=0 // pred_fallthru
    _
  // Predicated region
  $region10: #{residual_block_forward.6} parent=0 // pred_check
    _
  $region11: #{residual_block_forward.6} parent=0 // pred_check_branch
    %17 = sbr.rel (0) target = $region13
  $region12: #{residual_block_forward.6} parent=0 // pred_region
    _
  $region13: #{residual_block_forward.6} parent=0 // pred_fallthru
    _
  // Predicated region
  $region14: #{residual_block_forward.6} parent=0 // pred_check
    _
  $region15: #{residual_block_forward.6} parent=0 // pred_check_branch
    %19 = sbr.rel (0) target = $region17
  $region16: #{residual_block_forward.6} parent=0 // pred_region
    _
  $region17: #{residual_block_forward.6} parent=0 // pred_fallthru
    _
  %v20 = vld [vmem:[%s0] sm:$0xff]
  %v21 = vld [vmem:[%s1] sm:$0x3]
  %23 = vset.pattern.permute.xlu0 0
  %24 = vperm.xlu0 %23, %v21
  %v25 = vpop.permute.xlu0 %24
  %v27 = vunpack.c.l.s4 269488144
  %v28 = vunpack.c.0.s8 %v27
  %v29 = vlaneseq
  %v30 = vshrl.u32 %v29, 7
  %v31 = vsub.s32 %v28, %v30
  %v32 = vrot.slane %v25, %v31
  %v34 = vmul.f32 %v20, %v32
  %v35 = vld [vmem:[%s2] sm:$0x3]
  %37 = vset.pattern.permute.xlu0 0
  %38 = vperm.xlu0 %37, %v35
  %v39 = vpop.permute.xlu0 %38
  %v41 = vunpack.c.l.s4 269488144
  %v42 = vunpack.c.0.s8 %v41
  %v43 = vlaneseq
  %v44 = vshrl.u32 %v43, 7
  %v45 = vsub.s32 %v42, %v44
  %v46 = vrot.slane %v39, %v45
  %v48 = vadd.f32 %v34, %v46
  %v49 = vsub.f32 0.0, %v48
  %v50 = vmul.f32 %v49, 1.442695
  %v51 = vpow.pop %v50
  %v52 = vadd.f32 %v51, 1.0
  %v53 = vrcp.pop %v52
  %v54 = vmul.f32 %v48, %v53
  %v55 = vld [vmem:[%s3] sm:$0xff]
  %v57 = vcombine.high %v54, %v54
  %v59 = vunpack.c.l.s4 1983009808
  %v60 = vunpack.c.0.s8 %v59
  %v61 = vlaneseq
  %v62 = vshrl.u32 %v61, 7
  %v63 = vsub.s32 %v60, %v62
  %v64 = vrot.slane %v54, %v63
  %v66 = vunpack.c.l.s4 1983009808
  %v67 = vunpack.c.0.s8 %v66
  %v68 = vlaneseq
  %v69 = vshrl.u32 %v68, 7
  %v70 = vsub.s32 %v67, %v69
  %v71 = vrot.slane %v57, %v70
  %v72 = vcombine.high %v64, %v64
  %v73 = vcombine.high %v71, %v71
  %vm74 = vcmask 15360
  %v76 = vsel %vm74, %v55, 0
  %vm78 = vcmask 1041408
  %v79 = vsel %vm78, %v64, 0
  %v81 = vsel %vm78, %v72, 0
  %v83 = vsel %vm78, %v71, 0
  %v85 = vsel %vm78, %v73, 0
  %87 = vmatprep.subr.mxu0 0.0
  %88 = vmatpush1.msra.mxu0 0.0
  %89 = vmatprep.subr.mxu0 0.0
  %90 = vmatpush1.msra.mxu0 0.0
  %91 = vmatprep.subr.mxu0 0.0
  %92 = vmatpush1.msra.mxu0 0.0
  %93 = vmatprep.subr.mxu0 0.0
  %94 = vmatpush1.msra.mxu0 0.0
  %95 = vmatprep.subr.mxu0 0.0
  %96 = vmatpush1.msra.mxu0 0.0
  %97 = vmatprep.subr.mxu0 0.0
  %98 = vmatpush1.msra.mxu0 0.0
  %99 = vmatprep.subr.mxu0 0.0
  %100 = vmatpush1.msra.mxu0 0.0
  %101 = vmatprep.subr.mxu0 0.0
  %102 = vmatpush1.msra.mxu0 0.0
  %103 = vmatprep.subr.mxu0 0.0
  %104 = vmatpush1.msra.mxu0 0.0
  %105 = vmatprep.subr.mxu0 0.0
  %106 = vmatpush1.msra.mxu0 0.0
  %107 = vmatprep.subr.mxu0 0.0
  %108 = vmatpush1.msra.mxu0 0.0
  %109 = vmatprep.subr.mxu0 0.0
  %110 = vmatpush1.msra.mxu0 0.0
  %111 = vmatprep.subr.mxu0 0.0
  %112 = vmatpush1.msra.mxu0 0.0
  %113 = vmatprep.subr.mxu0 0.0
  %114 = vmatpush1.msra.mxu0 0.0
  %115 = vmatprep.subr.mxu0 0.0
  %116 = vmatpush1.msra.mxu0 0.0
  %117 = vmatprep.subr.mxu0 %v81
  %118 = vmatpush1.msra.mxu0 %v79
  %119 = vmatprep.subr.mxu0 0.0
  %120 = vmatpush2.msra.mxu0 0.0
  %121 = vmatprep.subr.mxu0 0.0
  %122 = vmatpush2.msra.mxu0 0.0
  %123 = vmatprep.subr.mxu0 0.0
  %124 = vmatpush2.msra.mxu0 0.0
  %125 = vmatprep.subr.mxu0 0.0
  %126 = vmatpush2.msra.mxu0 0.0
  %127 = vmatprep.subr.mxu0 0.0
  %128 = vmatpush2.msra.mxu0 0.0
  %129 = vmatprep.subr.mxu0 0.0
  %130 = vmatpush2.msra.mxu0 0.0
  %131 = vmatprep.subr.mxu0 0.0
  %132 = vmatpush2.msra.mxu0 0.0
  %133 = vmatprep.subr.mxu0 0.0
  %134 = vmatpush2.msra.mxu0 0.0
  %135 = vmatprep.subr.mxu0 0.0
  %136 = vmatpush2.msra.mxu0 0.0
  %137 = vmatprep.subr.mxu0 0.0
  %138 = vmatpush2.msra.mxu0 0.0
  %139 = vmatprep.subr.mxu0 0.0
  %140 = vmatpush2.msra.mxu0 0.0
  %141 = vmatprep.subr.mxu0 0.0
  %142 = vmatpush2.msra.mxu0 0.0
  %143 = vmatprep.subr.mxu0 0.0
  %144 = vmatpush2.msra.mxu0 0.0
  %145 = vmatprep.subr.mxu0 0.0
  %146 = vmatpush2.msra.mxu0 0.0
  %147 = vmatprep.subr.mxu0 0.0
  %148 = vmatpush2.msra.mxu0 0.0
  %149 = vmatprep.subr.mxu0 0.0
  %150 = vmatpush2.msra.mxu0 0.0
  %151 = vmatprep.mubr.f32.mxu0 0.0
  %152 = vmatmul.mubr.f32.gmra.mxu0 %v76
  %v153 = vpop.f32.mrf.mxu0
  %v154 = vadd.f32 0.0, %v153
  %v155 = vpop.f32.mrf.mxu0
  %v156 = vadd.f32 0.0, %v155
  %157 = vdwg.mxu0
  %158 = vmatprep.subr.mxu0 0.0
  %159 = vmatpush1.msra.mxu0 0.0
  %160 = vmatprep.subr.mxu0 0.0
  %161 = vmatpush1.msra.mxu0 0.0
  %162 = vmatprep.subr.mxu0 0.0
  %163 = vmatpush1.msra.mxu0 0.0
  %164 = vmatprep.subr.mxu0 0.0
  %165 = vmatpush1.msra.mxu0 0.0
  %166 = vmatprep.subr.mxu0 0.0
  %167 = vmatpush1.msra.mxu0 0.0
  %168 = vmatprep.subr.mxu0 0.0
  %169 = vmatpush1.msra.mxu0 0.0
  %170 = vmatprep.subr.mxu0 0.0
  %171 = vmatpush1.msra.mxu0 0.0
  %172 = vmatprep.subr.mxu0 0.0
  %173 = vmatpush1.msra.mxu0 0.0
  %174 = vmatprep.subr.mxu0 0.0
  %175 = vmatpush1.msra.mxu0 0.0
  %176 = vmatprep.subr.mxu0 0.0
  %177 = vmatpush1.msra.mxu0 0.0
  %178 = vmatprep.subr.mxu0 0.0
  %179 = vmatpush1.msra.mxu0 0.0
  %180 = vmatprep.subr.mxu0 0.0
  %181 = vmatpush1.msra.mxu0 0.0
  %182 = vmatprep.subr.mxu0 0.0
  %183 = vmatpush1.msra.mxu0 0.0
  %184 = vmatprep.subr.mxu0 0.0
  %185 = vmatpush1.msra.mxu0 0.0
  %186 = vmatprep.subr.mxu0 0.0
  %187 = vmatpush1.msra.mxu0 0.0
  %188 = vmatprep.subr.mxu0 %v85
  %189 = vmatpush1.msra.mxu0 %v83
  %190 = vmatprep.subr.mxu0 0.0
  %191 = vmatpush2.msra.mxu0 0.0
  %192 = vmatprep.subr.mxu0 0.0
  %193 = vmatpush2.msra.mxu0 0.0
  %194 = vmatprep.subr.mxu0 0.0
  %195 = vmatpush2.msra.mxu0 0.0
  %196 = vmatprep.subr.mxu0 0.0
  %197 = vmatpush2.msra.mxu0 0.0
  %198 = vmatprep.subr.mxu0 0.0
  %199 = vmatpush2.msra.mxu0 0.0
  %200 = vmatprep.subr.mxu0 0.0
  %201 = vmatpush2.msra.mxu0 0.0
  %202 = vmatprep.subr.mxu0 0.0
  %203 = vmatpush2.msra.mxu0 0.0
  %204 = vmatprep.subr.mxu0 0.0
  %205 = vmatpush2.msra.mxu0 0.0
  %206 = vmatprep.subr.mxu0 0.0
  %207 = vmatpush2.msra.mxu0 0.0
  %208 = vmatprep.subr.mxu0 0.0
  %209 = vmatpush2.msra.mxu0 0.0
  %210 = vmatprep.subr.mxu0 0.0
  %211 = vmatpush2.msra.mxu0 0.0
  %212 = vmatprep.subr.mxu0 0.0
  %213 = vmatpush2.msra.mxu0 0.0
  %214 = vmatprep.subr.mxu0 0.0
  %215 = vmatpush2.msra.mxu0 0.0
  %216 = vmatprep.subr.mxu0 0.0
  %217 = vmatpush2.msra.mxu0 0.0
  %218 = vmatprep.subr.mxu0 0.0
  %219 = vmatpush2.msra.mxu0 0.0
  %220 = vmatprep.subr.mxu0 0.0
  %221 = vmatpush2.msra.mxu0 0.0
  %222 = vmatprep.mubr.f32.mxu0 0.0
  %223 = vmatmul.mubr.f32.gmra.mxu0 %v76
  %v224 = vpop.f32.mrf.mxu0
  %v225 = vadd.f32 0.0, %v224
  %v226 = vpop.f32.mrf.mxu0
  %v227 = vadd.f32 0.0, %v226
  %228 = vdwg.mxu0
  %229 = vst [vmem:[%s4] sm:$0xff] %v154
  %230 = vst [vmem:[%s4 + $0x8] sm:$0xff] %v156
  %231 = vst [vmem:[%s4 + $0x10] sm:$0xff] %v225
  %232 = vst [vmem:[%s4 + $0x18] sm:$0xff] %v227
  %v233 = vadd.f32 %v154, %v156
  %v234 = vadd.f32 %v233, %v225
  %v235 = vadd.f32 %v234, %v227
  %236 = vadd.xlane.f32.xlu0 %v235
  %v237 = vpop.xlane.xlu0 %236
  %vm238 = vcmask 7168
  %239 = vst.msk [vmem:[%s5] sm:$0xff] %vm238, %v237
  %v240 = vmul.f32 %v154, %v154
  %v241 = vmul.f32 %v156, %v156
  %v242 = vmul.f32 %v225, %v225
  %v243 = vmul.f32 %v227, %v227
  %v244 = vadd.f32 %v240, %v241
  %v245 = vadd.f32 %v244, %v242
  %v246 = vadd.f32 %v245, %v243
  %247 = vadd.xlane.f32.xlu0 %v246
  %v248 = vpop.xlane.xlu0 %247
  %249 = vst.msk [vmem:[%s6] sm:$0xff] %vm238, %v248
  // Predicated region
  $region18: #{residual_block_forward.6} parent=0 // pred_check
    _
  $region19: #{residual_block_forward.6} parent=0 // pred_check_branch
    %251 = sbr.rel (0) target = $region21
  $region20: #{residual_block_forward.6} parent=0 // pred_region
    _
  $region21: #{residual_block_forward.6} parent=0 // pred_fallthru
    _
  // Predicated region
  $region22: #{residual_block_forward.6} parent=0 // pred_check
    _
  $region23: #{residual_block_forward.6} parent=0 // pred_check_branch
    %253 = sbr.rel (0) target = $region25
  $region24: #{residual_block_forward.6} parent=0 // pred_region
    _
  $region25: #{residual_block_forward.6} parent=0 // pred_fallthru
    _
  // Predicated region
  $region26: #{residual_block_forward.6} parent=0 // pred_check
    _
  $region27: #{residual_block_forward.6} parent=0 // pred_check_branch
    %255 = sbr.rel (0) target = $region29
  $region28: #{residual_block_forward.6} parent=0 // pred_region
    _
  $region29: #{residual_block_forward.6} parent=0 // pred_fallthru
    _
  // Predicated region
  $region30: #{residual_block_forward.6} parent=0 // pred_check
    _
  $region31: #{residual_block_forward.6} parent=0 // pred_check_branch
    %257 = sbr.rel (0) target = $region33
  $region32: #{residual_block_forward.6} parent=0 // pred_region
    _
  $region33: #{residual_block_forward.6} parent=0 // pred_fallthru
    _
  // Predicated region
  $region34: #{residual_block_forward.6} parent=0 // pred_check
    _
  $region35: #{residual_block_forward.6} parent=0 // pred_check_branch
    %259 = sbr.rel (0) target = $region37
  $region36: #{residual_block_forward.6} parent=0 // pred_region
    _
  $region37: #{residual_block_forward.6} parent=0 // pred_fallthru
    _
  // Predicated region
  $region38: #{residual_block_forward.6} parent=0 // pred_check
    _
  $region39: #{residual_block_forward.6} parent=0 // pred_check_branch
    %261 = sbr.rel (0) target = $region41
  $region40: #{residual_block_forward.6} parent=0 // pred_region
    _
  $region41: #{residual_block_forward.6} parent=0 // pred_fallthru
    _

// kernel: residual_block_forward.5
$region0: #{residual_block_forward.5}
  #allocation0 [shape = 'u32[]', space=smem, size = 0x4, offset = 0x4, fixed_abs, tag = 'smem constant byte address 0x4 - core index']
  #allocation1 [shape = 'u32[144,128]{1,0:T(1,128)}', space=vmem, size = 0x12000, scoped, tag = 'internal scratch']
  %s0 = inlined_call_operand.vmem [shape: f32[8,8,2,9,9], index: 0, kind: input, shape index: {}]
  %s1 = inlined_call_operand.vmem [shape: f32[2,3,3,2,2], index: 1, kind: input, shape index: {}]
  %s2 = inlined_call_operand.vmem [shape: f32[2,8,8,8], index: 2, kind: output, shape index: {0}]
  %s3 = inlined_call_operand.vmem [shape: f32[8,2,1], index: 3, kind: output, shape index: {1}]
  %s4 = inlined_call_operand.vmem [shape: f32[8,2,1], index: 4, kind: output, shape index: {2}]
  %5 = xla_tuple %s2, %s3, %s4
  %s6 = sld [smem:[#allocation0]]
  $region91: #{residual_block_forward.5} parent=0
    _
  %s8 = ssub.s32 1, %s6
  %s9 = scalar_select 0, %s8, %s6
  $region1: #{residual_block_forward.5} parent=0
    #allocation2 [shape = 'u8[16384]{0}', space=vmem, size = 0x4000, scoped, tag = 'output window, operand 0']
    loop: start=0, step=1, limit=10
    $region2: #{residual_block_forward.5} parent=1 // loop_pre_header
      _
    $region3: #{residual_block_forward.5} parent=1 // loop_header
      %s11 = sphi 0, %s15
      %p12 = scmp.ge.s32.totalorder %s11, 10
      %s21 = sphi 0, %s23
      %s24 = sphi 0, %s21
      %s25 = sphi 0, %s24
      %s41 = sphi 0, %s25
      %s45 = sphi 0, %s45
      %s47 = sphi 0, %s45
      %s48 = sphi 0, %s47
      %s62 = sphi 0, %s48
      %s68 = sphi 0, %s70
      %s71 = sphi 0, %s68
      %s72 = sphi 0, %s71
      %s88 = sphi 0, %s72
      %s94 = sphi 0, %s96
      %s97 = sphi 0, %s94
      %s98 = sphi 0, %s97
      %s114 = sphi 0, %s98
      %s120 = sphi 0, %s122
      %s123 = sphi 0, %s120
      %s124 = sphi 0, %s123
      %s140 = sphi 0, %s124
    $region4: #{residual_block_forward.5} parent=1 // loop_header_branch
      %14 = sbr.rel (%p12) target = $region8
    $region5: #{residual_block_forward.5} parent=1 // loop_body
      %s16 = ssub.s32 %s11, 1
      %s17 = ssub.s32 %s11, 2
      %s18 = sadd.s32 %s11, 1
      %s19 = ssub.s32 %s11, %s18
      %p20 = scmp.eq.s32.totalorder %s19, 0
      %s22 = sadd.s32 %s21, 1
      %s23 = scalar_select %p20, %s21, %s22
      %p26 = pneg %p20
      %p27 = scmp.eq.s32.totalorder %s11, 7
      %p28 = por %p26, %p27
      %p29 = scmp.ne.s32.totalorder %s21, %s24
      %p30 = scmp.eq.s32.totalorder %s11, 0
      %p31 = por %p29, %p30
      %p32 = scmp.ne.s32.totalorder %s21, %s24
      %p33 = scmp.eq.s32.totalorder %s16, 7
      %p34 = por %p32, %p33
      %p35 = scmp.ne.s32.totalorder %s24, %s25
      %p36 = scmp.eq.s32.totalorder %s16, 0
      %p37 = por %p35, %p36
      %p38 = scmp.ne.s32.totalorder %s24, %s25
      %p39 = scmp.eq.s32.totalorder %s17, 7
      %p40 = por %p38, %p39
      %p42 = scmp.ne.s32.totalorder %s25, %s41
      %p43 = scmp.eq.s32.totalorder %s17, 0
      %p44 = por %p42, %p43
      %s46 = sadd.s32 %s45, 1
      %p49 = scmp.eq.s32.totalorder %s11, 7
      %p50 = scmp.ne.s32.totalorder %s45, %s47
      %p51 = scmp.eq.s32.totalorder %s11, 0
      %p52 = por %p50, %p51
      %p53 = scmp.ne.s32.totalorder %s45, %s47
      %p54 = scmp.eq.s32.totalorder %s16, 7
      %p55 = por %p53, %p54
      %p56 = scmp.ne.s32.totalorder %s47, %s48
      %p57 = scmp.eq.s32.totalorder %s16, 0
      %p58 = por %p56, %p57
      %p59 = scmp.ne.s32.totalorder %s47, %s48
      %p60 = scmp.eq.s32.totalorder %s17, 7
      %p61 = por %p59, %p60
      %p63 = scmp.ne.s32.totalorder %s48, %s62
      %p64 = scmp.eq.s32.totalorder %s17, 0
      %p65 = por %p63, %p64
      %s66 = ssub.s32 %s11, %s18
      %p67 = scmp.eq.s32.totalorder %s66, 0
      %s69 = sadd.s32 %s68, 1
      %s70 = scalar_select %p67, %s68, %s69
      %p73 = pneg %p67
      %p74 = scmp.eq.s32.totalorder %s11, 7
      %p75 = por %p73, %p74
      %p76 = scmp.ne.s32.totalorder %s68, %s71
      %p77 = scmp.eq.s32.totalorder %s11, 0
      %p78 = por %p76, %p77
      %p79 = scmp.ne.s32.totalorder %s68, %s71
      %p80 = scmp.eq.s32.totalorder %s16, 7
      %p81 = por %p79, %p80
      %p82 = scmp.ne.s32.totalorder %s71, %s72
      %p83 = scmp.eq.s32.totalorder %s16, 0
      %p84 = por %p82, %p83
      %p85 = scmp.ne.s32.totalorder %s71, %s72
      %p86 = scmp.eq.s32.totalorder %s17, 7
      %p87 = por %p85, %p86
      %p89 = scmp.ne.s32.totalorder %s72, %s88
      %p90 = scmp.eq.s32.totalorder %s17, 0
      %p91 = por %p89, %p90
      %s92 = ssub.s32 %s11, %s18
      %p93 = scmp.eq.s32.totalorder %s92, 0
      %s95 = sadd.s32 %s94, 1
      %s96 = scalar_select %p93, %s94, %s95
      %p99 = pneg %p93
      %p100 = scmp.eq.s32.totalorder %s11, 7
      %p101 = por %p99, %p100
      %p102 = scmp.ne.s32.totalorder %s94, %s97
      %p103 = scmp.eq.s32.totalorder %s11, 0
      %p104 = por %p102, %p103
      %p105 = scmp.ne.s32.totalorder %s94, %s97
      %p106 = scmp.eq.s32.totalorder %s16, 7
      %p107 = por %p105, %p106
      %p108 = scmp.ne.s32.totalorder %s97, %s98
      %p109 = scmp.eq.s32.totalorder %s16, 0
      %p110 = por %p108, %p109
      %p111 = scmp.ne.s32.totalorder %s97, %s98
      %p112 = scmp.eq.s32.totalorder %s17, 7
      %p113 = por %p111, %p112
      %p115 = scmp.ne.s32.totalorder %s98, %s114
      %p116 = scmp.eq.s32.totalorder %s17, 0
      %p117 = por %p115, %p116
      %s118 = ssub.s32 %s11, %s18
      %p119 = scmp.eq.s32.totalorder %s118, 0
      %s121 = sadd.s32 %s120, 1
      %s122 = scalar_select %p119, %s120, %s121
      %p125 = pneg %p119
      %p126 = scmp.eq.s32.totalorder %s11, 7
      %p127 = por %p125, %p126
      %p128 = scmp.ne.s32.totalorder %s120, %s123
      %p129 = scmp.eq.s32.totalorder %s11, 0
      %p130 = por %p128, %p129
      %p131 = scmp.ne.s32.totalorder %s120, %s123
      %p132 = scmp.eq.s32.totalorder %s16, 7
      %p133 = por %p131, %p132
      %p134 = scmp.ne.s32.totalorder %s123, %s124
      %p135 = scmp.eq.s32.totalorder %s16, 0
      %p136 = por %p134, %p135
      %p137 = scmp.ne.s32.totalorder %s123, %s124
      %p138 = scmp.eq.s32.totalorder %s17, 7
      %p139 = por %p137, %p138
      %p141 = scmp.ne.s32.totalorder %s124, %s140
      %p142 = scmp.eq.s32.totalorder %s17, 0
      %p143 = por %p141, %p142
      %p144 = scmp.le.s32.totalorder 1, %s11
      %p145 = scmp.lt.s32.totalorder %s11, 9
      %p146 = pnand %p144, %p145
      %p147 = pneg %p146
      // Predicated region
      $region9: #{residual_block_forward.5} parent=5 // pred_check
        _
      $region10: #{residual_block_forward.5} parent=5 // pred_check_branch
        %149 = sbr.rel (%p146) target = $region12
      $region11: #{residual_block_forward.5} parent=5 // pred_region
        %s150 = ssub.s32 %s11, 1
        // Predicated region
        $region13: #{residual_block_forward.5} parent=11 // pred_check
          %p151 = pneg %p58
        $region14: #{residual_block_forward.5} parent=11 // pred_check_branch
          %153 = sbr.rel (%p151) target = $region16
        $region15: #{residual_block_forward.5} parent=11 // pred_region
          _
        $region16: #{residual_block_forward.5} parent=11 // pred_fallthru
          _
      $region12: #{residual_block_forward.5} parent=5 // pred_fallthru
        _
      %p154 = scmp.lt.s32.totalorder %s11, 8
      // Predicated region
      $region17: #{residual_block_forward.5} parent=5 // pred_check
        %p155 = pneg %p154
      $region18: #{residual_block_forward.5} parent=5 // pred_check_branch
        %157 = sbr.rel (%p155) target = $region20
      $region19: #{residual_block_forward.5} parent=5 // pred_region
        // Predicated region
        $region21: #{residual_block_forward.5} parent=19 // pred_check
          %p158 = pneg %p31
        $region22: #{residual_block_forward.5} parent=19 // pred_check_branch
          %160 = sbr.rel (%p158) target = $region24
        $region23: #{residual_block_forward.5} parent=19 // pred_region
          %p161 = scmp.lt.s32.totalorder %s11, 7
          %s162 = scalar_select %p161, %s11, 7
          %s163 = smul.addr %s162, 32
          %s164 = smul.addr %s163, 8
          %s165 = scalar_lea.vmem %s0, %s164
        $region24: #{residual_block_forward.5} parent=19 // pred_fallthru
          _
      $region20: #{residual_block_forward.5} parent=5 // pred_fallthru
        _
      %p166 = scmp.le.s32.totalorder 1, %s11
      %p167 = scmp.lt.s32.totalorder %s11, 9
      %p168 = pnand %p166, %p167
      %p169 = pneg %p168
      // Predicated region
      $region25: #{residual_block_forward.5} parent=5 // pred_check
        _
      $region26: #{residual_block_forward.5} parent=5 // pred_check_branch
        %171 = sbr.rel (%p168) target = $region28
      $region27: #{residual_block_forward.5} parent=5 // pred_region
        %s172 = ssub.s32 %s11, 1
        %p173 = scmp.lt.s32.totalorder %s16, 7
        %s174 = scalar_select %p173, %s16, 7
        %s175 = smul.addr %s174, 32
        %s176 = smul.addr %s175, 8
        %s177 = scalar_lea.vmem %s0, %s176
        %p178 = pneg %p37
        %p179 = pneg %p34
        %p180 = pneg %p58
        %p181 = pneg %p55
        %p182 = pneg %p84
        %p183 = pneg %p81
        %s184 = sand.u32 %s71, 1
        %s185 = sand.u32 %s71, 1
        %s186 = smul.addr %s185, 16
        %s187 = scalar_lea.vmem [#allocation2], %s186
        %p188 = pneg %p110
        %p189 = pneg %p107
        %p190 = scmp.lt.s32.totalorder %s16, 7
        %s191 = scalar_select %p190, %s16, 7
        %s192 = smul.addr %s191, 2
        %s193 = scalar_lea.vmem %s3, %s192
        %p194 = pneg %p136
        %p195 = pneg %p133
        %p196 = scmp.lt.s32.totalorder %s16, 7
        %s197 = scalar_select %p196, %s16, 7
        %s198 = smul.addr %s197, 2
        %s199 = scalar_lea.vmem %s4, %s198
        %p200 = scmp.lt.s32.totalorder %s16, 7
        %s201 = scalar_select %p200, %s16, 7
        %s202 = smul.addr %s201, 32
        %s203 = smul.addr %s202, 8
        %s204 = scalar_lea.vmem %s0, %s203
        %p205 = scmp.lt.s32.totalorder %s16, 7
        %s206 = scalar_select %p205, %s16, 7
        %s207 = smul.addr %s206, 2
        %s208 = scalar_lea.vmem %s3, %s207
        %p209 = scmp.lt.s32.totalorder %s16, 7
        %s210 = scalar_select %p209, %s16, 7
        %s211 = smul.addr %s210, 2
        %s212 = scalar_lea.vmem %s4, %s211
        %v213 = vld [vmem:[%s204] sm:$0xff]
        %v214 = vld [vmem:[%s204 + $0x8] sm:$0x1]
        %v215 = vld [vmem:[%s204 + $0x10] sm:$0xff]
        %v216 = vld [vmem:[%s204 + $0x18] sm:$0x1]
        %v217 = vld [vmem:[%s204 + $0x20] sm:$0xff]
        %v218 = vld [vmem:[%s204 + $0x28] sm:$0x1]
        %v219 = vld [vmem:[%s204 + $0x30] sm:$0xff]
        %v220 = vld [vmem:[%s204 + $0x38] sm:$0x1]
        %v221 = vld [vmem:[%s204 + $0x40] sm:$0xff]
        %v222 = vld [vmem:[%s204 + $0x50] sm:$0xff]
        %v223 = vld [vmem:[%s204 + $0x60] sm:$0xff]
        %v224 = vld [vmem:[%s204 + $0x70] sm:$0xff]
        %v225 = vld [vmem:[%s204 + $0x80] sm:$0xff]
        %v226 = vld [vmem:[%s204 + $0x88] sm:$0x1]
        %v227 = vld [vmem:[%s204 + $0x90] sm:$0xff]
        %v228 = vld [vmem:[%s204 + $0x98] sm:$0x1]
        %v229 = vld [vmem:[%s204 + $0xa0] sm:$0xff]
        %v230 = vld [vmem:[%s204 + $0xa8] sm:$0x1]
        %v231 = vld [vmem:[%s204 + $0xb0] sm:$0xff]
        %v232 = vld [vmem:[%s204 + $0xb8] sm:$0x1]
        %v233 = vld [vmem:[%s204 + $0xc0] sm:$0xff]
        %v234 = vld [vmem:[%s204 + $0xd0] sm:$0xff]
        %v235 = vld [vmem:[%s204 + $0xe0] sm:$0xff]
        %v236 = vld [vmem:[%s204 + $0xf0] sm:$0xff]
        %v237 = vsub.f32 0.0, %v213
        %v238 = vsub.f32 0.0, %v214
        %v239 = vsub.f32 0.0, %v215
        %v240 = vsub.f32 0.0, %v216
        %v241 = vsub.f32 0.0, %v217
        %v242 = vsub.f32 0.0, %v218
        %v243 = vsub.f32 0.0, %v219
        %v244 = vsub.f32 0.0, %v220
        %v245 = vsub.f32 0.0, %v221
        %v246 = vsub.f32 0.0, %v222
        %v247 = vsub.f32 0.0, %v223
        %v248 = vsub.f32 0.0, %v224
        %v249 = vsub.f32 0.0, %v225
        %v250 = vsub.f32 0.0, %v226
        %v251 = vsub.f32 0.0, %v227
        %v252 = vsub.f32 0.0, %v228
        %v253 = vsub.f32 0.0, %v229
        %v254 = vsub.f32 0.0, %v230
        %v255 = vsub.f32 0.0, %v231
        %v256 = vsub.f32 0.0, %v232
        %v257 = vsub.f32 0.0, %v233
        %v258 = vsub.f32 0.0, %v234
        %v259 = vsub.f32 0.0, %v235
        %v260 = vsub.f32 0.0, %v236
        %v261 = vmul.f32 %v237, 1.442695
        %v262 = vpow.pop %v261
        %v263 = vmul.f32 %v238, 1.442695
        %v264 = vpow.pop %v263
        %v265 = vmul.f32 %v239, 1.442695
        %v266 = vpow.pop %v265
        %v267 = vmul.f32 %v240, 1.442695
        %v268 = vpow.pop %v267
        %v269 = vmul.f32 %v241, 1.442695
        %v270 = vpow.pop %v269
        %v271 = vmul.f32 %v242, 1.442695
        %v272 = vpow.pop %v271
        %v273 = vmul.f32 %v243, 1.442695
        %v274 = vpow.pop %v273
        %v275 = vmul.f32 %v244, 1.442695
        %v276 = vpow.pop %v275
        %v277 = vmul.f32 %v245, 1.442695
        %v278 = vpow.pop %v277
        %v279 = vmul.f32 %v246, 1.442695
        %v280 = vpow.pop %v279
        %v281 = vmul.f32 %v247, 1.442695
        %v282 = vpow.pop %v281
        %v283 = vmul.f32 %v248, 1.442695
        %v284 = vpow.pop %v283
        %v285 = vmul.f32 %v249, 1.442695
        %v286 = vpow.pop %v285
        %v287 = vmul.f32 %v250, 1.442695
        %v288 = vpow.pop %v287
        %v289 = vmul.f32 %v251, 1.442695
        %v290 = vpow.pop %v289
        %v291 = vmul.f32 %v252, 1.442695
        %v292 = vpow.pop %v291
        %v293 = vmul.f32 %v253, 1.442695
        %v294 = vpow.pop %v293
        %v295 = vmul.f32 %v254, 1.442695
        %v296 = vpow.pop %v295
        %v297 = vmul.f32 %v255, 1.442695
        %v298 = vpow.pop %v297
        %v299 = vmul.f32 %v256, 1.442695
        %v300 = vpow.pop %v299
        %v301 = vmul.f32 %v257, 1.442695
        %v302 = vpow.pop %v301
        %v303 = vmul.f32 %v258, 1.442695
        %v304 = vpow.pop %v303
        %v305 = vmul.f32 %v259, 1.442695
        %v306 = vpow.pop %v305
        %v307 = vmul.f32 %v260, 1.442695
        %v308 = vpow.pop %v307
        %v309 = vadd.f32 %v262, 1.0
        %v310 = vadd.f32 %v264, 1.0
        %v311 = vadd.f32 %v266, 1.0
        %v312 = vadd.f32 %v268, 1.0
        %v313 = vadd.f32 %v270, 1.0
        %v314 = vadd.f32 %v272, 1.0
        %v315 = vadd.f32 %v274, 1.0
        %v316 = vadd.f32 %v276, 1.0
        %v317 = vadd.f32 %v278, 1.0
        %v318 = vadd.f32 %v280, 1.0
        %v319 = vadd.f32 %v282, 1.0
        %v320 = vadd.f32 %v284, 1.0
        %v321 = vadd.f32 %v286, 1.0
        %v322 = vadd.f32 %v288, 1.0
        %v323 = vadd.f32 %v290, 1.0
        %v324 = vadd.f32 %v292, 1.0
        %v325 = vadd.f32 %v294, 1.0
        %v326 = vadd.f32 %v296, 1.0
        %v327 = vadd.f32 %v298, 1.0
        %v328 = vadd.f32 %v300, 1.0
        %v329 = vadd.f32 %v302, 1.0
        %v330 = vadd.f32 %v304, 1.0
        %v331 = vadd.f32 %v306, 1.0
        %v332 = vadd.f32 %v308, 1.0
        %v333 = vrcp.pop %v309
        %v334 = vrcp.pop %v310
        %v335 = vrcp.pop %v311
        %v336 = vrcp.pop %v312
        %v337 = vrcp.pop %v313
        %v338 = vrcp.pop %v314
        %v339 = vrcp.pop %v315
        %v340 = vrcp.pop %v316
        %v341 = vrcp.pop %v317
        %v342 = vrcp.pop %v318
        %v343 = vrcp.pop %v319
        %v344 = vrcp.pop %v320
        %v345 = vrcp.pop %v321
        %v346 = vrcp.pop %v322
        %v347 = vrcp.pop %v323
        %v348 = vrcp.pop %v324
        %v349 = vrcp.pop %v325
        %v350 = vrcp.pop %v326
        %v351 = vrcp.pop %v327
        %v352 = vrcp.pop %v328
        %v353 = vrcp.pop %v329
        %v354 = vrcp.pop %v330
        %v355 = vrcp.pop %v331
        %v356 = vrcp.pop %v332
        %v357 = vmul.f32 %v213, %v333
        %v358 = vmul.f32 %v214, %v334
        %v359 = vmul.f32 %v215, %v335
        %v360 = vmul.f32 %v216, %v336
        %v361 = vmul.f32 %v217, %v337
        %v362 = vmul.f32 %v218, %v338
        %v363 = vmul.f32 %v219, %v339
        %v364 = vmul.f32 %v220, %v340
        %v365 = vmul.f32 %v221, %v341
        %v366 = vmul.f32 %v222, %v342
        %v367 = vmul.f32 %v223, %v343
        %v368 = vmul.f32 %v224, %v344
        %v369 = vmul.f32 %v225, %v345
        %v370 = vmul.f32 %v226, %v346
        %v371 = vmul.f32 %v227, %v347
        %v372 = vmul.f32 %v228, %v348
        %v373 = vmul.f32 %v229, %v349
        %v374 = vmul.f32 %v230, %v350
        %v375 = vmul.f32 %v231, %v351
        %v376 = vmul.f32 %v232, %v352
        %v377 = vmul.f32 %v233, %v353
        %v378 = vmul.f32 %v234, %v354
        %v379 = vmul.f32 %v235, %v355
        %v380 = vmul.f32 %v236, %v356
        %v381 = vld [vmem:[%s1] sm:$0x3]
        %v382 = vlaneseq
        %v383 = vshrl.u32 %v382, 7
        %v384 = vsub.s32 0, %v383
        %v385 = vrot.slane %v381, %v384
        %387 = vbcast.lane.b32.xlu0 %v385, 256
        %v388 = vpop.permute.xlu0 %387
        %v389 = vlaneseq
        %v390 = vshrl.u32 %v389, 7
        %v391 = vsub.s32 1, %v390
        %v392 = vrot.slane %v381, %v391
        %394 = vbcast.lane.b32.xlu0 %v392, 256
        %v395 = vpop.permute.xlu0 %394
        %v396 = vlaneseq
        %v397 = vshrl.u32 %v396, 7
        %v398 = vsub.s32 0, %v397
        %v399 = vrot.slane %v388, %v398
        %v400 = vlaneseq
        %v401 = vshrl.u32 %v400, 7
        %v402 = vsub.s32 1, %v401
        %v403 = vrot.slane %v388, %v402
        %v404 = vlaneseq
        %v405 = vshrl.u32 %v404, 7
        %v406 = vsub.s32 0, %v405
        %v407 = vrot.slane %v395, %v406
        %v408 = vlaneseq
        %v409 = vshrl.u32 %v408, 7
        %v410 = vsub.s32 1, %v409
        %v411 = vrot.slane %v395, %v410
        %v412 = vmul.f32 %v399, %v357
        %v413 = vmul.f32 %v403, %v359
        %v414 = vmul.f32 %v407, %v357
        %v415 = vmul.f32 %v411, %v359
        %vm416 = vcmask 64512
        %v417 = vsel %vm416, %v412, 0.0
        %v418 = vsel %vm416, %v413, 0.0
        %v419 = vadd.f32 %v417, %v418
        %v420 = vsel %vm416, %v414, 0.0
        %v421 = vsel %vm416, %v415, 0.0
        %v422 = vadd.f32 %v420, %v421
        %v423 = vadd.f32 %v419, 0.0
        %v424 = vadd.f32 %v422, 0.0
        %s425 = scalar_lea.vmem %s1, 2
        %v426 = vld [vmem:[%s425] sm:$0x3]
        %v427 = vlaneseq
        %v428 = vshrl.u32 %v427, 7
        %v429 = vsub.s32 0, %v428
        %v430 = vrot.slane %v426, %v429
        %432 = vbcast.lane.b32.xlu0 %v430, 256
        %v433 = vpop.permute.xlu0 %432
        %v434 = vlaneseq
        %v435 = vshrl.u32 %v434, 7
        %v436 = vsub.s32 1, %v435
        %v437 = vrot.slane %v426, %v436
        %439 = vbcast.lane.b32.xlu0 %v437, 256
        %v440 = vpop.permute.xlu0 %439
        %v441 = vlaneseq
        %v442 = vshrl.u32 %v441, 7
        %v443 = vsub.s32 0, %v442
        %v444 = vrot.slane %v433, %v443
        %v445 = vlaneseq
        %v446 = vshrl.u32 %v445, 7
        %v447 = vsub.s32 1, %v446
        %v448 = vrot.slane %v433, %v447
        %v449 = vlaneseq
        %v450 = vshrl.u32 %v449, 7
        %v451 = vsub.s32 0, %v450
        %v452 = vrot.slane %v440, %v451
        %v453 = vlaneseq
        %v454 = vshrl.u32 %v453, 7
        %v455 = vsub.s32 1, %v454
        %v456 = vrot.slane %v440, %v455
        %v457 = vmul.f32 %v444, %v361
        %v458 = vmul.f32 %v448, %v363
        %v459 = vmul.f32 %v452, %v361
        %v460 = vmul.f32 %v456, %v363
        %v461 = vsel %vm416, %v457, 0.0
        %v462 = vsel %vm416, %v458, 0.0
        %v463 = vadd.f32 %v461, %v462
        %v464 = vsel %vm416, %v459, 0.0
        %v465 = vsel %vm416, %v460, 0.0
        %v466 = vadd.f32 %v464, %v465
        %v467 = vadd.f32 %v423, %v463
        %v468 = vadd.f32 %v424, %v466
        %s469 = scalar_lea.vmem %s1, 4
        %v470 = vld [vmem:[%s469] sm:$0x3]
        %v471 = vlaneseq
        %v472 = vshrl.u32 %v471, 7
        %v473 = vsub.s32 0, %v472
        %v474 = vrot.slane %v470, %v473
        %476 = vbcast.lane.b32.xlu0 %v474, 256
        %v477 = vpop.permute.xlu0 %476
        %v478 = vlaneseq
        %v479 = vshrl.u32 %v478, 7
        %v480 = vsub.s32 1, %v479
        %v481 = vrot.slane %v470, %v480
        %483 = vbcast.lane.b32.xlu0 %v481, 256
        %v484 = vpop.permute.xlu0 %483
        %v485 = vlaneseq
        %v486 = vshrl.u32 %v485, 7
        %v487 = vsub.s32 0, %v486
        %v488 = vrot.slane %v477, %v487
        %v489 = vlaneseq
        %v490 = vshrl.u32 %v489, 7
        %v491 = vsub.s32 1, %v490
        %v492 = vrot.slane %v477, %v491
        %v493 = vlaneseq
        %v494 = vshrl.u32 %v493, 7
        %v495 = vsub.s32 0, %v494
        %v496 = vrot.slane %v484, %v495
        %v497 = vlaneseq
        %v498 = vshrl.u32 %v497, 7
        %v499 = vsub.s32 1, %v498
        %v500 = vrot.slane %v484, %v499
        %v501 = vmul.f32 %v488, %v357
        %v502 = vmul.f32 %v492, %v359
        %v503 = vmul.f32 %v496, %v357
        %v504 = vmul.f32 %v500, %v359
        %vm505 = vcmask 72712
        %v506 = vsel %vm505, %v501, 0.0
        %v507 = vsel %vm505, %v502, 0.0
        %v508 = vadd.f32 %v506, %v507
        %v509 = vsel %vm505, %v503, 0.0
        %v510 = vsel %vm505, %v504, 0.0
        %v511 = vadd.f32 %v509, %v510
        %514 = vrot.lane.b32.xlu0 %v508, 127
        %v515 = vpop.permute.xlu0 %514
        %516 = vrot.lane.b32.xlu0 %v511, 127
        %v517 = vpop.permute.xlu0 %516
        %v520 = vadd.f32 %v467, %v515
        %v521 = vadd.f32 %v468, %v517
        %s522 = scalar_lea.vmem %s1, 6
        %v523 = vld [vmem:[%s522] sm:$0x3]
        %v524 = vlaneseq
        %v525 = vshrl.u32 %v524, 7
        %v526 = vsub.s32 0, %v525
        %v527 = vrot.slane %v523, %v526
        %529 = vbcast.lane.b32.xlu0 %v527, 256
        %v530 = vpop.permute.xlu0 %529
        %v531 = vlaneseq
        %v532 = vshrl.u32 %v531, 7
        %v533 = vsub.s32 1, %v532
        %v534 = vrot.slane %v523, %v533
        %536 = vbcast.lane.b32.xlu0 %v534, 256
        %v537 = vpop.permute.xlu0 %536
        %v538 = vlaneseq
        %v539 = vshrl.u32 %v538, 7
        %v540 = vsub.s32 0, %v539
        %v541 = vrot.slane %v530, %v540
        %v542 = vlaneseq
        %v543 = vshrl.u32 %v542, 7
        %v544 = vsub.s32 1, %v543
        %v545 = vrot.slane %v530, %v544
        %v546 = vlaneseq
        %v547 = vshrl.u32 %v546, 7
        %v548 = vsub.s32 0, %v547
        %v549 = vrot.slane %v537, %v548
        %v550 = vlaneseq
        %v551 = vshrl.u32 %v550, 7
        %v552 = vsub.s32 1, %v551
        %v553 = vrot.slane %v537, %v552
        %v554 = vmul.f32 %v541, %v365
        %v555 = vmul.f32 %v545, %v366
        %v556 = vmul.f32 %v549, %v365
        %v557 = vmul.f32 %v553, %v366
        %v558 = vsel %vm416, %v554, 0.0
        %v559 = vsel %vm416, %v555, 0.0
        %v560 = vadd.f32 %v558, %v559
        %v561 = vsel %vm416, %v556, 0.0
        %v562 = vsel %vm416, %v557, 0.0
        %v563 = vadd.f32 %v561, %v562
        %v564 = vadd.f32 %v520, %v560
        %v565 = vadd.f32 %v521, %v563
        %s566 = scalar_lea.vmem %s1, 8
        %v567 = vld [vmem:[%s566] sm:$0x3]
        %v568 = vlaneseq
        %v569 = vshrl.u32 %v568, 7
        %v570 = vsub.s32 0, %v569
        %v571 = vrot.slane %v567, %v570
        %573 = vbcast.lane.b32.xlu0 %v571, 256
        %v574 = vpop.permute.xlu0 %573
        %v575 = vlaneseq
        %v576 = vshrl.u32 %v575, 7
        %v577 = vsub.s32 1, %v576
        %v578 = vrot.slane %v567, %v577
        %580 = vbcast.lane.b32.xlu0 %v578, 256
        %v581 = vpop.permute.xlu0 %580
        %v582 = vlaneseq
        %v583 = vshrl.u32 %v582, 7
        %v584 = vsub.s32 0, %v583
        %v585 = vrot.slane %v574, %v584
        %v586 = vlaneseq
        %v587 = vshrl.u32 %v586, 7
        %v588 = vsub.s32 1, %v587
        %v589 = vrot.slane %v574, %v588
        %v590 = vlaneseq
        %v591 = vshrl.u32 %v590, 7
        %v592 = vsub.s32 0, %v591
        %v593 = vrot.slane %v581, %v592
        %v594 = vlaneseq
        %v595 = vshrl.u32 %v594, 7
        %v596 = vsub.s32 1, %v595
        %v597 = vrot.slane %v581, %v596
        %v598 = vmul.f32 %v585, %v367
        %v599 = vmul.f32 %v589, %v368
        %v600 = vmul.f32 %v593, %v367
        %v601 = vmul.f32 %v597, %v368
        %v602 = vsel %vm416, %v598, 0.0
        %v603 = vsel %vm416, %v599, 0.0
        %v604 = vadd.f32 %v602, %v603
        %v605 = vsel %vm416, %v600, 0.0
        %v606 = vsel %vm416, %v601, 0.0
        %v607 = vadd.f32 %v605, %v606
        %v608 = vadd.f32 %v564, %v604
        %v609 = vadd.f32 %v565, %v607
        %s610 = scalar_lea.vmem %s1, 10
        %v611 = vld [vmem:[%s610] sm:$0x3]
        %v612 = vlaneseq
        %v613 = vshrl.u32 %v612, 7
        %v614 = vsub.s32 0, %v613
        %v615 = vrot.slane %v611, %v614
        %617 = vbcast.lane.b32.xlu0 %v615, 256
        %v618 = vpop.permute.xlu0 %617
        %v619 = vlaneseq
        %v620 = vshrl.u32 %v619, 7
        %v621 = vsub.s32 1, %v620
        %v622 = vrot.slane %v611, %v621
        %624 = vbcast.lane.b32.xlu0 %v622, 256
        %v625 = vpop.permute.xlu0 %624
        %v626 = vlaneseq
        %v627 = vshrl.u32 %v626, 7
        %v628 = vsub.s32 0, %v627
        %v629 = vrot.slane %v618, %v628
        %v630 = vlaneseq
        %v631 = vshrl.u32 %v630, 7
        %v632 = vsub.s32 1, %v631
        %v633 = vrot.slane %v618, %v632
        %v634 = vlaneseq
        %v635 = vshrl.u32 %v634, 7
        %v636 = vsub.s32 0, %v635
        %v637 = vrot.slane %v625, %v636
        %v638 = vlaneseq
        %v639 = vshrl.u32 %v638, 7
        %v640 = vsub.s32 1, %v639
        %v641 = vrot.slane %v625, %v640
        %v642 = vmul.f32 %v629, %v365
        %v643 = vmul.f32 %v633, %v366
        %v644 = vmul.f32 %v637, %v365
        %v645 = vmul.f32 %v641, %v366
        %v646 = vsel %vm505, %v642, 0.0
        %v647 = vsel %vm505, %v643, 0.0
        %v648 = vadd.f32 %v646, %v647
        %v649 = vsel %vm505, %v644, 0.0
        %v650 = vsel %vm505, %v645, 0.0
        %v651 = vadd.f32 %v649, %v650
        %654 = vrot.lane.b32.xlu0 %v648, 127
        %v655 = vpop.permute.xlu0 %654
        %656 = vrot.lane.b32.xlu0 %v651, 127
        %v657 = vpop.permute.xlu0 %656
        %v660 = vadd.f32 %v608, %v655
        %v661 = vadd.f32 %v609, %v657
        %s662 = scalar_lea.vmem %s1, 12
        %v663 = vld [vmem:[%s662] sm:$0x3]
        %v664 = vlaneseq
        %v665 = vshrl.u32 %v664, 7
        %v666 = vsub.s32 0, %v665
        %v667 = vrot.slane %v663, %v666
        %669 = vbcast.lane.b32.xlu0 %v667, 256
        %v670 = vpop.permute.xlu0 %669
        %v671 = vlaneseq
        %v672 = vshrl.u32 %v671, 7
        %v673 = vsub.s32 1, %v672
        %v674 = vrot.slane %v663, %v673
        %676 = vbcast.lane.b32.xlu0 %v674, 256
        %v677 = vpop.permute.xlu0 %676
        %v678 = vlaneseq
        %v679 = vshrl.u32 %v678, 7
        %v680 = vsub.s32 0, %v679
        %v681 = vrot.slane %v670, %v680
        %v682 = vlaneseq
        %v683 = vshrl.u32 %v682, 7
        %v684 = vsub.s32 1, %v683
        %v685 = vrot.slane %v670, %v684
        %v686 = vlaneseq
        %v687 = vshrl.u32 %v686, 7
        %v688 = vsub.s32 0, %v687
        %v689 = vrot.slane %v677, %v688
        %v690 = vlaneseq
        %v691 = vshrl.u32 %v690, 7
        %v692 = vsub.s32 1, %v691
        %v693 = vrot.slane %v677, %v692
        %v694 = vmul.f32 %v681, %v357
        %v695 = vmul.f32 %v681, %v358
        %v696 = vmul.f32 %v685, %v359
        %v697 = vmul.f32 %v685, %v360
        %v698 = vmul.f32 %v689, %v357
        %v699 = vmul.f32 %v689, %v358
        %v700 = vmul.f32 %v693, %v359
        %v701 = vmul.f32 %v693, %v360
        %vm702 = vcmask 64513
        %v703 = vsel %vm702, %v694, 0.0
        %v704 = vsel %vm702, %v696, 0.0
        %v705 = vadd.f32 %v703, %v704
        %vm706 = vcmask 57344
        %v707 = vsel %vm706, %v695, 0.0
        %v708 = vsel %vm706, %v697, 0.0
        %v709 = vadd.f32 %v707, %v708
        %v710 = vsel %vm702, %v698, 0.0
        %v711 = vsel %vm702, %v700, 0.0
        %v712 = vadd.f32 %v710, %v711
        %v713 = vsel %vm706, %v699, 0.0
        %v714 = vsel %vm706, %v701, 0.0
        %v715 = vadd.f32 %v713, %v714
        %vm720 = vcmask 1046528
        %v721 = vrot.slane %v705, 1
        %v722 = vrot.slane %v709, 1
        %v723 = vsel %vm720, %v721, %v722
        %v724 = vrot.slane %v712, 1
        %v725 = vrot.slane %v715, 1
        %v726 = vsel %vm720, %v724, %v725
        %v729 = vadd.f32 %v660, %v723
        %v730 = vadd.f32 %v661, %v726
        %s731 = scalar_lea.vmem %s1, 14
        %v732 = vld [vmem:[%s731] sm:$0x3]
        %v733 = vlaneseq
        %v734 = vshrl.u32 %v733, 7
        %v735 = vsub.s32 0, %v734
        %v736 = vrot.slane %v732, %v735
        %738 = vbcast.lane.b32.xlu0 %v736, 256
        %v739 = vpop.permute.xlu0 %738
        %v740 = vlaneseq
        %v741 = vshrl.u32 %v740, 7
        %v742 = vsub.s32 1, %v741
        %v743 = vrot.slane %v732, %v742
        %745 = vbcast.lane.b32.xlu0 %v743, 256
        %v746 = vpop.permute.xlu0 %745
        %v747 = vlaneseq
        %v748 = vshrl.u32 %v747, 7
        %v749 = vsub.s32 0, %v748
        %v750 = vrot.slane %v739, %v749
        %v751 = vlaneseq
        %v752 = vshrl.u32 %v751, 7
        %v753 = vsub.s32 1, %v752
        %v754 = vrot.slane %v739, %v753
        %v755 = vlaneseq
        %v756 = vshrl.u32 %v755, 7
        %v757 = vsub.s32 0, %v756
        %v758 = vrot.slane %v746, %v757
        %v759 = vlaneseq
        %v760 = vshrl.u32 %v759, 7
        %v761 = vsub.s32 1, %v760
        %v762 = vrot.slane %v746, %v761
        %v763 = vmul.f32 %v750, %v361
        %v764 = vmul.f32 %v750, %v362
        %v765 = vmul.f32 %v754, %v363
        %v766 = vmul.f32 %v754, %v364
        %v767 = vmul.f32 %v758, %v361
        %v768 = vmul.f32 %v758, %v362
        %v769 = vmul.f32 %v762, %v363
        %v770 = vmul.f32 %v762, %v364
        %v771 = vsel %vm702, %v763, 0.0
        %v772 = vsel %vm702, %v765, 0.0
        %v773 = vadd.f32 %v771, %v772
        %v774 = vsel %vm706, %v764, 0.0
        %v775 = vsel %vm706, %v766, 0.0
        %v776 = vadd.f32 %v774, %v775
        %v777 = vsel %vm702, %v767, 0.0
        %v778 = vsel %vm702, %v769, 0.0
        %v779 = vadd.f32 %v777, %v778
        %v780 = vsel %vm706, %v768, 0.0
        %v781 = vsel %vm706, %v770, 0.0
        %v782 = vadd.f32 %v780, %v781
        %v787 = vrot.slane %v773, 1
        %v788 = vrot.slane %v776, 1
        %v789 = vsel %vm720, %v787, %v788
        %v790 = vrot.slane %v779, 1
        %v791 = vrot.slane %v782, 1
        %v792 = vsel %vm720, %v790, %v791
        %v795 = vadd.f32 %v729, %v789
        %v796 = vadd.f32 %v730, %v792
        %s797 = scalar_lea.vmem %s1, 16
        %v798 = vld [vmem:[%s797] sm:$0x3]
        %v799 = vlaneseq
        %v800 = vshrl.u32 %v799, 7
        %v801 = vsub.s32 0, %v800
        %v802 = vrot.slane %v798, %v801
        %804 = vbcast.lane.b32.xlu0 %v802, 256
        %v805 = vpop.permute.xlu0 %804
        %v806 = vlaneseq
        %v807 = vshrl.u32 %v806, 7
        %v808 = vsub.s32 1, %v807
        %v809 = vrot.slane %v798, %v808
        %811 = vbcast.lane.b32.xlu0 %v809, 256
        %v812 = vpop.permute.xlu0 %811
        %v813 = vlaneseq
        %v814 = vshrl.u32 %v813, 7
        %v815 = vsub.s32 0, %v814
        %v816 = vrot.slane %v805, %v815
        %v817 = vlaneseq
        %v818 = vshrl.u32 %v817, 7
        %v819 = vsub.s32 1, %v818
        %v820 = vrot.slane %v805, %v819
        %v821 = vlaneseq
        %v822 = vshrl.u32 %v821, 7
        %v823 = vsub.s32 0, %v822
        %v824 = vrot.slane %v812, %v823
        %v825 = vlaneseq
        %v826 = vshrl.u32 %v825, 7
        %v827 = vsub.s32 1, %v826
        %v828 = vrot.slane %v812, %v827
        %v829 = vmul.f32 %v816, %v357
        %v830 = vmul.f32 %v816, %v358
        %v831 = vmul.f32 %v820, %v359
        %v832 = vmul.f32 %v820, %v360
        %v833 = vmul.f32 %v824, %v357
        %v834 = vmul.f32 %v824, %v358
        %v835 = vmul.f32 %v828, %v359
        %v836 = vmul.f32 %v828, %v360
        %vm837 = vcmask 72713
        %v838 = vsel %vm837, %v829, 0.0
        %v839 = vsel %vm837, %v831, 0.0
        %v840 = vadd.f32 %v838, %v839
        %vm841 = vcmask 65544
        %v842 = vsel %vm841, %v830, 0.0
        %v843 = vsel %vm841, %v832, 0.0
        %v844 = vadd.f32 %v842, %v843
        %v845 = vsel %vm837, %v833, 0.0
        %v846 = vsel %vm837, %v835, 0.0
        %v847 = vadd.f32 %v845, %v846
        %v848 = vsel %vm841, %v834, 0.0
        %v849 = vsel %vm841, %v836, 0.0
        %v850 = vadd.f32 %v848, %v849
        %v855 = vrot.slane %v840, 1
        %v856 = vrot.slane %v844, 1
        %v857 = vsel %vm720, %v855, %v856
        %v858 = vrot.slane %v847, 1
        %v859 = vrot.slane %v850, 1
        %v860 = vsel %vm720, %v858, %v859
        %861 = vrot.lane.b32.xlu0 %v857, 127
        %v862 = vpop.permute.xlu0 %861
        %863 = vrot.lane.b32.xlu0 %v860, 127
        %v864 = vpop.permute.xlu0 %863
        %v867 = vadd.f32 %v795, %v862
        %v868 = vadd.f32 %v796, %v864
        %s869 = scalar_lea.vmem %s1, 18
        %v870 = vld [vmem:[%s869] sm:$0x3]
        %v871 = vlaneseq
        %v872 = vshrl.u32 %v871, 7
        %v873 = vsub.s32 0, %v872
        %v874 = vrot.slane %v870, %v873
        %876 = vbcast.lane.b32.xlu0 %v874, 256
        %v877 = vpop.permute.xlu0 %876
        %v878 = vlaneseq
        %v879 = vshrl.u32 %v878, 7
        %v880 = vsub.s32 1, %v879
        %v881 = vrot.slane %v870, %v880
        %883 = vbcast.lane.b32.xlu0 %v881, 256
        %v884 = vpop.permute.xlu0 %883
        %v885 = vlaneseq
        %v886 = vshrl.u32 %v885, 7
        %v887 = vsub.s32 0, %v886
        %v888 = vrot.slane %v877, %v887
        %v889 = vlaneseq
        %v890 = vshrl.u32 %v889, 7
        %v891 = vsub.s32 1, %v890
        %v892 = vrot.slane %v877, %v891
        %v893 = vlaneseq
        %v894 = vshrl.u32 %v893, 7
        %v895 = vsub.s32 0, %v894
        %v896 = vrot.slane %v884, %v895
        %v897 = vlaneseq
        %v898 = vshrl.u32 %v897, 7
        %v899 = vsub.s32 1, %v898
        %v900 = vrot.slane %v884, %v899
        %v901 = vmul.f32 %v888, %v369
        %v902 = vmul.f32 %v892, %v371
        %v903 = vmul.f32 %v896, %v369
        %v904 = vmul.f32 %v900, %v371
        %v905 = vsel %vm416, %v901, 0.0
        %v906 = vsel %vm416, %v902, 0.0
        %v907 = vadd.f32 %v905, %v906
        %v908 = vsel %vm416, %v903, 0.0
        %v909 = vsel %vm416, %v904, 0.0
        %v910 = vadd.f32 %v908, %v909
        %v911 = vadd.f32 %v867, %v907
        %v912 = vadd.f32 %v868, %v910
        %s913 = scalar_lea.vmem %s1, 20
        %v914 = vld [vmem:[%s913] sm:$0x3]
        %v915 = vlaneseq
        %v916 = vshrl.u32 %v915, 7
        %v917 = vsub.s32 0, %v916
        %v918 = vrot.slane %v914, %v917
        %920 = vbcast.lane.b32.xlu0 %v918, 256
        %v921 = vpop.permute.xlu0 %920
        %v922 = vlaneseq
        %v923 = vshrl.u32 %v922, 7
        %v924 = vsub.s32 1, %v923
        %v925 = vrot.slane %v914, %v924
        %927 = vbcast.lane.b32.xlu0 %v925, 256
        %v928 = vpop.permute.xlu0 %927
        %v929 = vlaneseq
        %v930 = vshrl.u32 %v929, 7
        %v931 = vsub.s32 0, %v930
        %v932 = vrot.slane %v921, %v931
        %v933 = vlaneseq
        %v934 = vshrl.u32 %v933, 7
        %v935 = vsub.s32 1, %v934
        %v936 = vrot.slane %v921, %v935
        %v937 = vlaneseq
        %v938 = vshrl.u32 %v937, 7
        %v939 = vsub.s32 0, %v938
        %v940 = vrot.slane %v928, %v939
        %v941 = vlaneseq
        %v942 = vshrl.u32 %v941, 7
        %v943 = vsub.s32 1, %v942
        %v944 = vrot.slane %v928, %v943
        %v945 = vmul.f32 %v932, %v373
        %v946 = vmul.f32 %v936, %v375
        %v947 = vmul.f32 %v940, %v373
        %v948 = vmul.f32 %v944, %v375
        %v949 = vsel %vm416, %v945, 0.0
        %v950 = vsel %vm416, %v946, 0.0
        %v951 = vadd.f32 %v949, %v950
        %v952 = vsel %vm416, %v947, 0.0
        %v953 = vsel %vm416, %v948, 0.0
        %v954 = vadd.f32 %v952, %v953
        %v955 = vadd.f32 %v911, %v951
        %v956 = vadd.f32 %v912, %v954
        %s957 = scalar_lea.vmem %s1, 22
        %v958 = vld [vmem:[%s957] sm:$0x3]
        %v959 = vlaneseq
        %v960 = vshrl.u32 %v959, 7
        %v961 = vsub.s32 0, %v960
        %v962 = vrot.slane %v958, %v961
        %964 = vbcast.lane.b32.xlu0 %v962, 256
        %v965 = vpop.permute.xlu0 %964
        %v966 = vlaneseq
        %v967 = vshrl.u32 %v966, 7
        %v968 = vsub.s32 1, %v967
        %v969 = vrot.slane %v958, %v968
        %971 = vbcast.lane.b32.xlu0 %v969, 256
        %v972 = vpop.permute.xlu0 %971
        %v973 = vlaneseq
        %v974 = vshrl.u32 %v973, 7
        %v975 = vsub.s32 0, %v974
        %v976 = vrot.slane %v965, %v975
        %v977 = vlaneseq
        %v978 = vshrl.u32 %v977, 7
        %v979 = vsub.s32 1, %v978
        %v980 = vrot.slane %v965, %v979
        %v981 = vlaneseq
        %v982 = vshrl.u32 %v981, 7
        %v983 = vsub.s32 0, %v982
        %v984 = vrot.slane %v972, %v983
        %v985 = vlaneseq
        %v986 = vshrl.u32 %v985, 7
        %v987 = vsub.s32 1, %v986
        %v988 = vrot.slane %v972, %v987
        %v989 = vmul.f32 %v976, %v369
        %v990 = vmul.f32 %v980, %v371
        %v991 = vmul.f32 %v984, %v369
        %v992 = vmul.f32 %v988, %v371
        %v993 = vsel %vm505, %v989, 0.0
        %v994 = vsel %vm505, %v990, 0.0
        %v995 = vadd.f32 %v993, %v994
        %v996 = vsel %vm505, %v991, 0.0
        %v997 = vsel %vm505, %v992, 0.0
        %v998 = vadd.f32 %v996, %v997
        %1001 = vrot.lane.b32.xlu0 %v995, 127
        %v1002 = vpop.permute.xlu0 %1001
        %1003 = vrot.lane.b32.xlu0 %v998, 127
        %v1004 = vpop.permute.xlu0 %1003
        %v1007 = vadd.f32 %v955, %v1002
        %v1008 = vadd.f32 %v956, %v1004
        %s1009 = scalar_lea.vmem %s1, 24
        %v1010 = vld [vmem:[%s1009] sm:$0x3]
        %v1011 = vlaneseq
        %v1012 = vshrl.u32 %v1011, 7
        %v1013 = vsub.s32 0, %v1012
        %v1014 = vrot.slane %v1010, %v1013
        %1016 = vbcast.lane.b32.xlu0 %v1014, 256
        %v1017 = vpop.permute.xlu0 %1016
        %v1018 = vlaneseq
        %v1019 = vshrl.u32 %v1018, 7
        %v1020 = vsub.s32 1, %v1019
        %v1021 = vrot.slane %v1010, %v1020
        %1023 = vbcast.lane.b32.xlu0 %v1021, 256
        %v1024 = vpop.permute.xlu0 %1023
        %v1025 = vlaneseq
        %v1026 = vshrl.u32 %v1025, 7
        %v1027 = vsub.s32 0, %v1026
        %v1028 = vrot.slane %v1017, %v1027
        %v1029 = vlaneseq
        %v1030 = vshrl.u32 %v1029, 7
        %v1031 = vsub.s32 1, %v1030
        %v1032 = vrot.slane %v1017, %v1031
        %v1033 = vlaneseq
        %v1034 = vshrl.u32 %v1033, 7
        %v1035 = vsub.s32 0, %v1034
        %v1036 = vrot.slane %v1024, %v1035
        %v1037 = vlaneseq
        %v1038 = vshrl.u32 %v1037, 7
        %v1039 = vsub.s32 1, %v1038
        %v1040 = vrot.slane %v1024, %v1039
        %v1041 = vmul.f32 %v1028, %v377
        %v1042 = vmul.f32 %v1032, %v378
        %v1043 = vmul.f32 %v1036, %v377
        %v1044 = vmul.f32 %v1040, %v378
        %v1045 = vsel %vm416, %v1041, 0.0
        %v1046 = vsel %vm416, %v1042, 0.0
        %v1047 = vadd.f32 %v1045, %v1046
        %v1048 = vsel %vm416, %v1043, 0.0
        %v1049 = vsel %vm416, %v1044, 0.0
        %v1050 = vadd.f32 %v1048, %v1049
        %v1051 = vadd.f32 %v1007, %v1047
        %v1052 = vadd.f32 %v1008, %v1050
        %s1053 = scalar_lea.vmem %s1, 26
        %v1054 = vld [vmem:[%s1053] sm:$0x3]
        %v1055 = vlaneseq
        %v1056 = vshrl.u32 %v1055, 7
        %v1057 = vsub.s32 0, %v1056
        %v1058 = vrot.slane %v1054, %v1057
        %1060 = vbcast.lane.b32.xlu0 %v1058, 256
        %v1061 = vpop.permute.xlu0 %1060
        %v1062 = vlaneseq
        %v1063 = vshrl.u32 %v1062, 7
        %v1064 = vsub.s32 1, %v1063
        %v1065 = vrot.slane %v1054, %v1064
        %1067 = vbcast.lane.b32.xlu0 %v1065, 256
        %v1068 = vpop.permute.xlu0 %1067
        %v1069 = vlaneseq
        %v1070 = vshrl.u32 %v1069, 7
        %v1071 = vsub.s32 0, %v1070
        %v1072 = vrot.slane %v1061, %v1071
        %v1073 = vlaneseq
        %v1074 = vshrl.u32 %v1073, 7
        %v1075 = vsub.s32 1, %v1074
        %v1076 = vrot.slane %v1061, %v1075
        %v1077 = vlaneseq
        %v1078 = vshrl.u32 %v1077, 7
        %v1079 = vsub.s32 0, %v1078
        %v1080 = vrot.slane %v1068, %v1079
        %v1081 = vlaneseq
        %v1082 = vshrl.u32 %v1081, 7
        %v1083 = vsub.s32 1, %v1082
        %v1084 = vrot.slane %v1068, %v1083
        %v1085 = vmul.f32 %v1072, %v379
        %v1086 = vmul.f32 %v1076, %v380
        %v1087 = vmul.f32 %v1080, %v379
        %v1088 = vmul.f32 %v1084, %v380
        %v1089 = vsel %vm416, %v1085, 0.0
        %v1090 = vsel %vm416, %v1086, 0.0
        %v1091 = vadd.f32 %v1089, %v1090
        %v1092 = vsel %vm416, %v1087, 0.0
        %v1093 = vsel %vm416, %v1088, 0.0
        %v1094 = vadd.f32 %v1092, %v1093
        %v1095 = vadd.f32 %v1051, %v1091
        %v1096 = vadd.f32 %v1052, %v1094
        %s1097 = scalar_lea.vmem %s1, 28
        %v1098 = vld [vmem:[%s1097] sm:$0x3]
        %v1099 = vlaneseq
        %v1100 = vshrl.u32 %v1099, 7
        %v1101 = vsub.s32 0, %v1100
        %v1102 = vrot.slane %v1098, %v1101
        %1104 = vbcast.lane.b32.xlu0 %v1102, 256
        %v1105 = vpop.permute.xlu0 %1104
        %v1106 = vlaneseq
        %v1107 = vshrl.u32 %v1106, 7
        %v1108 = vsub.s32 1, %v1107
        %v1109 = vrot.slane %v1098, %v1108
        %1111 = vbcast.lane.b32.xlu0 %v1109, 256
        %v1112 = vpop.permute.xlu0 %1111
        %v1113 = vlaneseq
        %v1114 = vshrl.u32 %v1113, 7
        %v1115 = vsub.s32 0, %v1114
        %v1116 = vrot.slane %v1105, %v1115
        %v1117 = vlaneseq
        %v1118 = vshrl.u32 %v1117, 7
        %v1119 = vsub.s32 1, %v1118
        %v1120 = vrot.slane %v1105, %v1119
        %v1121 = vlaneseq
        %v1122 = vshrl.u32 %v1121, 7
        %v1123 = vsub.s32 0, %v1122
        %v1124 = vrot.slane %v1112, %v1123
        %v1125 = vlaneseq
        %v1126 = vshrl.u32 %v1125, 7
        %v1127 = vsub.s32 1, %v1126
        %v1128 = vrot.slane %v1112, %v1127
        %v1129 = vmul.f32 %v1116, %v377
        %v1130 = vmul.f32 %v1120, %v378
        %v1131 = vmul.f32 %v1124, %v377
        %v1132 = vmul.f32 %v1128, %v378
        %v1133 = vsel %vm505, %v1129, 0.0
        %v1134 = vsel %vm505, %v1130, 0.0
        %v1135 = vadd.f32 %v1133, %v1134
        %v1136 = vsel %vm505, %v1131, 0.0
        %v1137 = vsel %vm505, %v1132, 0.0
        %v1138 = vadd.f32 %v1136, %v1137
        %1141 = vrot.lane.b32.xlu0 %v1135, 127
        %v1142 = vpop.permute.xlu0 %1141
        %1143 = vrot.lane.b32.xlu0 %v1138, 127
        %v1144 = vpop.permute.xlu0 %1143
        %v1147 = vadd.f32 %v1095, %v1142
        %v1148 = vadd.f32 %v1096, %v1144
        %s1149 = scalar_lea.vmem %s1, 30
        %v1150 = vld [vmem:[%s1149] sm:$0x3]
        %v1151 = vlaneseq
        %v1152 = vshrl.u32 %v1151, 7
        %v1153 = vsub.s32 0, %v1152
        %v1154 = vrot.slane %v1150, %v1153
        %1156 = vbcast.lane.b32.xlu0 %v1154, 256
        %v1157 = vpop.permute.xlu0 %1156
        %v1158 = vlaneseq
        %v1159 = vshrl.u32 %v1158, 7
        %v1160 = vsub.s32 1, %v1159
        %v1161 = vrot.slane %v1150, %v1160
        %1163 = vbcast.lane.b32.xlu0 %v1161, 256
        %v1164 = vpop.permute.xlu0 %1163
        %v1165 = vlaneseq
        %v1166 = vshrl.u32 %v1165, 7
        %v1167 = vsub.s32 0, %v1166
        %v1168 = vrot.slane %v1157, %v1167
        %v1169 = vlaneseq
        %v1170 = vshrl.u32 %v1169, 7
        %v1171 = vsub.s32 1, %v1170
        %v1172 = vrot.slane %v1157, %v1171
        %v1173 = vlaneseq
        %v1174 = vshrl.u32 %v1173, 7
        %v1175 = vsub.s32 0, %v1174
        %v1176 = vrot.slane %v1164, %v1175
        %v1177 = vlaneseq
        %v1178 = vshrl.u32 %v1177, 7
        %v1179 = vsub.s32 1, %v1178
        %v1180 = vrot.slane %v1164, %v1179
        %v1181 = vmul.f32 %v1168, %v369
        %v1182 = vmul.f32 %v1168, %v370
        %v1183 = vmul.f32 %v1172, %v371
        %v1184 = vmul.f32 %v1172, %v372
        %v1185 = vmul.f32 %v1176, %v369
        %v1186 = vmul.f32 %v1176, %v370
        %v1187 = vmul.f32 %v1180, %v371
        %v1188 = vmul.f32 %v1180, %v372
        %v1189 = vsel %vm702, %v1181, 0.0
        %v1190 = vsel %vm702, %v1183, 0.0
        %v1191 = vadd.f32 %v1189, %v1190
        %v1192 = vsel %vm706, %v1182, 0.0
        %v1193 = vsel %vm706, %v1184, 0.0
        %v1194 = vadd.f32 %v1192, %v1193
        %v1195 = vsel %vm702, %v1185, 0.0
        %v1196 = vsel %vm702, %v1187, 0.0
        %v1197 = vadd.f32 %v1195, %v1196
        %v1198 = vsel %vm706, %v1186, 0.0
        %v1199 = vsel %vm706, %v1188, 0.0
        %v1200 = vadd.f32 %v1198, %v1199
        %v1205 = vrot.slane %v1191, 1
        %v1206 = vrot.slane %v1194, 1
        %v1207 = vsel %vm720, %v1205, %v1206
        %v1208 = vrot.slane %v1197, 1
        %v1209 = vrot.slane %v1200, 1
        %v1210 = vsel %vm720, %v1208, %v1209
        %v1213 = vadd.f32 %v1147, %v1207
        %v1214 = vadd.f32 %v1148, %v1210
        %s1215 = scalar_lea.vmem %s1, 32
        %v1216 = vld [vmem:[%s1215] sm:$0x3]
        %v1217 = vlaneseq
        %v1218 = vshrl.u32 %v1217, 7
        %v1219 = vsub.s32 0, %v1218
        %v1220 = vrot.slane %v1216, %v1219
        %1222 = vbcast.lane.b32.xlu0 %v1220, 256
        %v1223 = vpop.permute.xlu0 %1222
        %v1224 = vlaneseq
        %v1225 = vshrl.u32 %v1224, 7
        %v1226 = vsub.s32 1, %v1225
        %v1227 = vrot.slane %v1216, %v1226
        %1229 = vbcast.lane.b32.xlu0 %v1227, 256
        %v1230 = vpop.permute.xlu0 %1229
        %v1231 = vlaneseq
        %v1232 = vshrl.u32 %v1231, 7
        %v1233 = vsub.s32 0, %v1232
        %v1234 = vrot.slane %v1223, %v1233
        %v1235 = vlaneseq
        %v1236 = vshrl.u32 %v1235, 7
        %v1237 = vsub.s32 1, %v1236
        %v1238 = vrot.slane %v1223, %v1237
        %v1239 = vlaneseq
        %v1240 = vshrl.u32 %v1239, 7
        %v1241 = vsub.s32 0, %v1240
        %v1242 = vrot.slane %v1230, %v1241
        %v1243 = vlaneseq
        %v1244 = vshrl.u32 %v1243, 7
        %v1245 = vsub.s32 1, %v1244
        %v1246 = vrot.slane %v1230, %v1245
        %v1247 = vmul.f32 %v1234, %v373
        %v1248 = vmul.f32 %v1234, %v374
        %v1249 = vmul.f32 %v1238, %v375
        %v1250 = vmul.f32 %v1238, %v376
        %v1251 = vmul.f32 %v1242, %v373
        %v1252 = vmul.f32 %v1242, %v374
        %v1253 = vmul.f32 %v1246, %v375
        %v1254 = vmul.f32 %v1246, %v376
        %v1255 = vsel %vm702, %v1247, 0.0
        %v1256 = vsel %vm702, %v1249, 0.0
        %v1257 = vadd.f32 %v1255, %v1256
        %v1258 = vsel %vm706, %v1248, 0.0
        %v1259 = vsel %vm706, %v1250, 0.0
        %v1260 = vadd.f32 %v1258, %v1259
        %v1261 = vsel %vm702, %v1251, 0.0
        %v1262 = vsel %vm702, %v1253, 0.0
        %v1263 = vadd.f32 %v1261, %v1262
        %v1264 = vsel %vm706, %v1252, 0.0
        %v1265 = vsel %vm706, %v1254, 0.0
        %v1266 = vadd.f32 %v1264, %v1265
        %v1271 = vrot.slane %v1257, 1
        %v1272 = vrot.slane %v1260, 1
        %v1273 = vsel %vm720, %v1271, %v1272
        %v1274 = vrot.slane %v1263, 1
        %v1275 = vrot.slane %v1266, 1
        %v1276 = vsel %vm720, %v1274, %v1275
        %v1279 = vadd.f32 %v1213, %v1273
        %v1280 = vadd.f32 %v1214, %v1276
        %s1281 = scalar_lea.vmem %s1, 34
        %v1282 = vld [vmem:[%s1281] sm:$0x3]
        %v1283 = vlaneseq
        %v1284 = vshrl.u32 %v1283, 7
        %v1285 = vsub.s32 0, %v1284
        %v1286 = vrot.slane %v1282, %v1285
        %1288 = vbcast.lane.b32.xlu0 %v1286, 256
        %v1289 = vpop.permute.xlu0 %1288
        %v1290 = vlaneseq
        %v1291 = vshrl.u32 %v1290, 7
        %v1292 = vsub.s32 1, %v1291
        %v1293 = vrot.slane %v1282, %v1292
        %1295 = vbcast.lane.b32.xlu0 %v1293, 256
        %v1296 = vpop.permute.xlu0 %1295
        %v1297 = vlaneseq
        %v1298 = vshrl.u32 %v1297, 7
        %v1299 = vsub.s32 0, %v1298
        %v1300 = vrot.slane %v1289, %v1299
        %v1301 = vlaneseq
        %v1302 = vshrl.u32 %v1301, 7
        %v1303 = vsub.s32 1, %v1302
        %v1304 = vrot.slane %v1289, %v1303
        %v1305 = vlaneseq
        %v1306 = vshrl.u32 %v1305, 7
        %v1307 = vsub.s32 0, %v1306
        %v1308 = vrot.slane %v1296, %v1307
        %v1309 = vlaneseq
        %v1310 = vshrl.u32 %v1309, 7
        %v1311 = vsub.s32 1, %v1310
        %v1312 = vrot.slane %v1296, %v1311
        %v1313 = vmul.f32 %v1300, %v369
        %v1314 = vmul.f32 %v1300, %v370
        %v1315 = vmul.f32 %v1304, %v371
        %v1316 = vmul.f32 %v1304, %v372
        %v1317 = vmul.f32 %v1308, %v369
        %v1318 = vmul.f32 %v1308, %v370
        %v1319 = vmul.f32 %v1312, %v371
        %v1320 = vmul.f32 %v1312, %v372
        %v1321 = vsel %vm837, %v1313, 0.0
        %v1322 = vsel %vm837, %v1315, 0.0
        %v1323 = vadd.f32 %v1321, %v1322
        %v1324 = vsel %vm841, %v1314, 0.0
        %v1325 = vsel %vm841, %v1316, 0.0
        %v1326 = vadd.f32 %v1324, %v1325
        %v1327 = vsel %vm837, %v1317, 0.0
        %v1328 = vsel %vm837, %v1319, 0.0
        %v1329 = vadd.f32 %v1327, %v1328
        %v1330 = vsel %vm841, %v1318, 0.0
        %v1331 = vsel %vm841, %v1320, 0.0
        %v1332 = vadd.f32 %v1330, %v1331
        %v1337 = vrot.slane %v1323, 1
        %v1338 = vrot.slane %v1326, 1
        %v1339 = vsel %vm720, %v1337, %v1338
        %v1340 = vrot.slane %v1329, 1
        %v1341 = vrot.slane %v1332, 1
        %v1342 = vsel %vm720, %v1340, %v1341
        %1343 = vrot.lane.b32.xlu0 %v1339, 127
        %v1344 = vpop.permute.xlu0 %1343
        %1345 = vrot.lane.b32.xlu0 %v1342, 127
        %v1346 = vpop.permute.xlu0 %1345
        %v1349 = vadd.f32 %v1279, %v1344
        %v1350 = vadd.f32 %v1280, %v1346
        %1351 = vst.msk [vmem:[%s187] sm:$0xff] %vm416, %v1349
        %1352 = vst.msk [vmem:[%s187 + $0x8] sm:$0xff] %vm416, %v1350
        %v1353 = vsel %vm416, %v1349, 0.0
        %1354 = vadd.xlane.f32.xlu0 %v1353
        %v1355 = vpop.xlane.xlu0 %1354
        %v1356 = vsel %vm416, %v1350, 0.0
        %1357 = vadd.xlane.f32.xlu0 %v1356
        %v1358 = vpop.xlane.xlu0 %1357
        %v1361 = vlaneseq
        %v1362 = vand.u32 %v1361, 127
        %v1363 = vlaneseq
        %v1364 = vshrl.u32 %v1363, 7
        %v1365 = vsub.s32 %v1362, %v1364
        %v1366 = vrot.slane %v1355, %v1365
        %v1367 = vlaneseq
        %v1368 = vshrl.u32 %v1367, 7
        %v1369 = vsub.s32 %v1362, %v1368
        %v1370 = vrot.slane %v1358, %v1369
        %vm1371 = vcmask 1041409
        %v1372 = vsel %vm1371, %v1370, %v1366
        %vm1374 = vcmask 58368
        %v1375 = vsel %vm1374, %v1372, 0.0
        %1376 = vadd.xlane.f32.xlu0 %v1375
        %v1377 = vpop.xlane.xlu0 %1376
        %vm1378 = vcmask 1024
        %1379 = vst.msk [vmem:[%s208] sm:$0x3] %vm1378, %v1377
        %v1380 = vmul.f32 %v1349, %v1349
        %v1381 = vmul.f32 %v1350, %v1350
        %v1382 = vsel %vm416, %v1380, 0.0
        %1383 = vadd.xlane.f32.xlu0 %v1382
        %v1384 = vpop.xlane.xlu0 %1383
        %v1385 = vsel %vm416, %v1381, 0.0
        %1386 = vadd.xlane.f32.xlu0 %v1385
        %v1387 = vpop.xlane.xlu0 %1386
        %v1390 = vlaneseq
        %v1391 = vshrl.u32 %v1390, 7
        %v1392 = vsub.s32 %v1362, %v1391
        %v1393 = vrot.slane %v1384, %v1392
        %v1394 = vlaneseq
        %v1395 = vshrl.u32 %v1394, 7
        %v1396 = vsub.s32 %v1362, %v1395
        %v1397 = vrot.slane %v1387, %v1396
        %v1398 = vsel %vm1371, %v1397, %v1393
        %v1400 = vsel %vm1374, %v1398, 0.0
        %1401 = vadd.xlane.f32.xlu0 %v1400
        %v1402 = vpop.xlane.xlu0 %1401
        %1403 = vst.msk [vmem:[%s212] sm:$0x3] %vm1378, %v1402
        %s1404 = sand.u32 %s71, 1
        %s1405 = sand.u32 %s71, 1
        %s1406 = smul.addr %s1405, 16
        %s1407 = scalar_lea.vmem [#allocation2], %s1406
        %p1408 = scmp.lt.s32.totalorder %s16, 7
        %s1409 = scalar_select %p1408, %s16, 7
        %s1410 = smul.addr %s1409, 2
        %s1411 = scalar_lea.vmem %s3, %s1410
        %p1412 = scmp.lt.s32.totalorder %s16, 7
        %s1413 = scalar_select %p1412, %s16, 7
        %s1414 = smul.addr %s1413, 2
        %s1415 = scalar_lea.vmem %s4, %s1414
        // Predicated region
        $region29: #{residual_block_forward.5} parent=27 // pred_check
          %p1416 = pneg %p81
        $region30: #{residual_block_forward.5} parent=27 // pred_check_branch
          %1418 = sbr.rel (%p1416) target = $region32
        $region31: #{residual_block_forward.5} parent=27 // pred_region
          %s1419 = smul.addr %s16, 8
          %s1420 = scalar_lea.vmem %s2, %s1419
          // Predicated region
          $region33: #{residual_block_forward.5} parent=31 // pred_check
            _
          $region34: #{residual_block_forward.5} parent=31 // pred_check_branch
            %1422 = sbr.rel (0) target = $region36
          $region35: #{residual_block_forward.5} parent=31 // pred_region
            // Predicated region
            $region37: #{residual_block_forward.5} parent=35 // pred_check
              _
            $region38: #{residual_block_forward.5} parent=35 // pred_check_branch
              %1424 = sbr.rel (0) target = $region40
            $region39: #{residual_block_forward.5} parent=35 // pred_region
              // Predicated region
              $region52: #{residual_block_forward.5} parent=39 // pred_check
                _
              $region53: #{residual_block_forward.5} parent=39 // pred_check_branch
                %1442 = sbr.rel (0) target = $region55
              $region54: #{residual_block_forward.5} parent=39 // pred_region
                loop: start=0, step=1, limit=1
                $region56: #{residual_block_forward.5} parent=54 // loop_pre_header
                  _
                $region57: #{residual_block_forward.5} parent=54 // loop_header
                  %s1444 = sphi 0, %s1448
                  %p1445 = scmp.ge.s32.totalorder %s1444, 1
                  %s1449 = sphi %s1407, %s1407
                  %s1450 = sphi %s1420, %s1420
                $region58: #{residual_block_forward.5} parent=54 // loop_header_branch
                  %1447 = sbr.rel (%p1445) target = $region62
                $region59: #{residual_block_forward.5} parent=54 // loop_body
                  %v1451 = vld [vmem:[%s1449] sm:$0xff]
                  %1452 = vst [vmem:[%s1450] sm:$0xff] %v1451
                  %v1453 = vld [vmem:[%s1449 + $0x8] sm:$0xff]
                  %1454 = vst [vmem:[%s1450 + $0x40] sm:$0xff] %v1453
                $region60: #{residual_block_forward.5} parent=54 // loop_footer
                  %s1448 = sadd.s32 1, %s1444
                $region61: #{residual_block_forward.5} parent=54 // loop_footer_branch
                  %1443 = sbr.rel target = $region57
                $region62: #{residual_block_forward.5} parent=54 // loop_exit
                  _
              $region55: #{residual_block_forward.5} parent=39 // pred_fallthru
                _
              // Predicated region
              $region63: #{residual_block_forward.5} parent=39 // pred_check
                _
              $region64: #{residual_block_forward.5} parent=39 // pred_check_branch
                %1456 = sbr.rel target = $region66
              $region65: #{residual_block_forward.5} parent=39 // pred_region
                _
              $region66: #{residual_block_forward.5} parent=39 // pred_fallthru
                _
            $region40: #{residual_block_forward.5} parent=35 // pred_fallthru
              _
            // Predicated region
            $region41: #{residual_block_forward.5} parent=35 // pred_check
              _
            $region42: #{residual_block_forward.5} parent=35 // pred_check_branch
              %1426 = sbr.rel target = $region44
            $region43: #{residual_block_forward.5} parent=35 // pred_region
              %s1428 = ssub.s32 256, 1
              loop: start=0, step=1, limit=1
              $region45: #{residual_block_forward.5} parent=43 // loop_pre_header
                _
              $region46: #{residual_block_forward.5} parent=43 // loop_header
                %s1430 = sphi 0, %s1434
                %p1431 = scmp.ge.s32.totalorder %s1430, 1
                %s1435 = sphi %s1407, %s1407
                %s1436 = sphi %s1420, %s1420
              $region47: #{residual_block_forward.5} parent=43 // loop_header_branch
                %1433 = sbr.rel (%p1431) target = $region51
              $region48: #{residual_block_forward.5} parent=43 // loop_body
                %v1437 = vld [vmem:[%s1435] sm:%s1428]
                %1438 = vst [vmem:[%s1436] sm:%s1428] %v1437
                %v1439 = vld [vmem:[%s1435 + $0x8] sm:%s1428]
                %1440 = vst [vmem:[%s1436 + $0x40] sm:%s1428] %v1439
              $region49: #{residual_block_forward.5} parent=43 // loop_footer
                %s1434 = sadd.s32 1, %s1430
              $region50: #{residual_block_forward.5} parent=43 // loop_footer_branch
                %1429 = sbr.rel target = $region46
              $region51: #{residual_block_forward.5} parent=43 // loop_exit
                _
            $region44: #{residual_block_forward.5} parent=35 // pred_fallthru
              _
          $region36: #{residual_block_forward.5} parent=31 // pred_fallthru
            _
          %1457 = vnop
        $region32: #{residual_block_forward.5} parent=27 // pred_fallthru
          _
        // Predicated region
        $region67: #{residual_block_forward.5} parent=27 // pred_check
          %p1458 = pneg %p107
        $region68: #{residual_block_forward.5} parent=27 // pred_check_branch
          %1460 = sbr.rel (%p1458) target = $region70
        $region69: #{residual_block_forward.5} parent=27 // pred_region
          _
        $region70: #{residual_block_forward.5} parent=27 // pred_fallthru
          _
        // Predicated region
        $region71: #{residual_block_forward.5} parent=27 // pred_check
          %p1461 = pneg %p133
        $region72: #{residual_block_forward.5} parent=27 // pred_check_branch
          %1463 = sbr.rel (%p1461) target = $region74
        $region73: #{residual_block_forward.5} parent=27 // pred_region
          _
        $region74: #{residual_block_forward.5} parent=27 // pred_fallthru
          _
      $region28: #{residual_block_forward.5} parent=5 // pred_fallthru
        _
      %p1464 = scmp.le.s32.totalorder 2, %s11
      // Predicated region
      $region75: #{residual_block_forward.5} parent=5 // pred_check
        %p1465 = pneg %p1464
      $region76: #{residual_block_forward.5} parent=5 // pred_check_branch
        %1467 = sbr.rel (%p1465) target = $region78
      $region77: #{residual_block_forward.5} parent=5 // pred_region
        %s1468 = ssub.s32 %s11, 2
        // Predicated region
        $region79: #{residual_block_forward.5} parent=77 // pred_check
          %p1469 = pneg %p87
        $region80: #{residual_block_forward.5} parent=77 // pred_check_branch
          %1471 = sbr.rel (%p1469) target = $region82
        $region81: #{residual_block_forward.5} parent=77 // pred_region
          %s1472 = sand.u32 %s72, 1
          %s1473 = sand.u32 %s72, 1
          %s1474 = smul.addr %s1473, 16
          %s1475 = scalar_lea.vmem [#allocation2], %s1474
        $region82: #{residual_block_forward.5} parent=77 // pred_fallthru
          _
        // Predicated region
        $region83: #{residual_block_forward.5} parent=77 // pred_check
          %p1476 = pneg %p113
        $region84: #{residual_block_forward.5} parent=77 // pred_check_branch
          %1478 = sbr.rel (%p1476) target = $region86
        $region85: #{residual_block_forward.5} parent=77 // pred_region
          %p1479 = scmp.lt.s32.totalorder %s17, 7
          %s1480 = scalar_select %p1479, %s17, 7
          %s1481 = smul.addr %s1480, 2
          %s1482 = scalar_lea.vmem %s3, %s1481
        $region86: #{residual_block_forward.5} parent=77 // pred_fallthru
          _
        // Predicated region
        $region87: #{residual_block_forward.5} parent=77 // pred_check
          %p1483 = pneg %p139
        $region88: #{residual_block_forward.5} parent=77 // pred_check_branch
          %1485 = sbr.rel (%p1483) target = $region90
        $region89: #{residual_block_forward.5} parent=77 // pred_region
          %p1486 = scmp.lt.s32.totalorder %s17, 7
          %s1487 = scalar_select %p1486, %s17, 7
          %s1488 = smul.addr %s1487, 2
          %s1489 = scalar_lea.vmem %s4, %s1488
        $region90: #{residual_block_forward.5} parent=77 // pred_fallthru
          _
      $region78: #{residual_block_forward.5} parent=5 // pred_fallthru
        _
    $region6: #{residual_block_forward.5} parent=1 // loop_footer
      %s15 = sadd.s32 1, %s11
    $region7: #{residual_block_forward.5} parent=1 // loop_footer_branch
      %10 = sbr.rel target = $region3
    $region8: #{residual_block_forward.5} parent=1 // loop_exit
      _

// kernel: residual_block_forward.7
$region0: #{residual_block_forward.7}
  #allocation0 [shape = 'u32[]', space=smem, size = 0x4, offset = 0x4, fixed_abs, tag = 'smem constant byte address 0x4 - core index']
  #allocation1 [shape = 'u32[144,128]{1,0:T(1,128)}', space=vmem, size = 0x12000, scoped, tag = 'internal scratch']
  %s0 = inlined_call_operand.vmem [shape: f32[8,512], index: 0, kind: input, shape index: {}]
  %s1 = inlined_call_operand.vmem [shape: f32[4,8,512], index: 1, kind: input, shape index: {}]
  %s2 = inlined_call_operand.vmem [shape: f32[8,1], index: 2, kind: input, shape index: {}]
  %s3 = inlined_call_operand.vmem [shape: f32[8,1], index: 3, kind: input, shape index: {}]
  %s4 = inlined_call_operand.vmem [shape: f32[8,1], index: 4, kind: input, shape index: {}]
  %s5 = inlined_call_operand.vmem [shape: f32[8,1], index: 5, kind: input, shape index: {}]
  %s6 = inlined_call_operand.vmem [shape: f32[8,512], index: 6, kind: output, shape index: {}]
  %s7 = sld [smem:[#allocation0]]
  $region34: #{residual_block_forward.7} parent=0
    _
  %s9 = ssub.s32 1, %s7
  %s10 = scalar_select 0, %s9, %s7
  // Predicated region
  $region2: #{residual_block_forward.7} parent=0 // pred_check
    _
  $region3: #{residual_block_forward.7} parent=0 // pred_check_branch
    %12 = sbr.rel (0) target = $region5
  $region4: #{residual_block_forward.7} parent=0 // pred_region
    _
  $region5: #{residual_block_forward.7} parent=0 // pred_fallthru
    _
  // Predicated region
  $region6: #{residual_block_forward.7} parent=0 // pred_check
    _
  $region7: #{residual_block_forward.7} parent=0 // pred_check_branch
    %14 = sbr.rel (0) target = $region9
  $region8: #{residual_block_forward.7} parent=0 // pred_region
    _
  $region9: #{residual_block_forward.7} parent=0 // pred_fallthru
    _
  // Predicated region
  $region10: #{residual_block_forward.7} parent=0 // pred_check
    _
  $region11: #{residual_block_forward.7} parent=0 // pred_check_branch
    %16 = sbr.rel (0) target = $region13
  $region12: #{residual_block_forward.7} parent=0 // pred_region
    _
  $region13: #{residual_block_forward.7} parent=0 // pred_fallthru
    _
  // Predicated region
  $region14: #{residual_block_forward.7} parent=0 // pred_check
    _
  $region15: #{residual_block_forward.7} parent=0 // pred_check_branch
    %18 = sbr.rel (0) target = $region17
  $region16: #{residual_block_forward.7} parent=0 // pred_region
    _
  $region17: #{residual_block_forward.7} parent=0 // pred_fallthru
    _
  // Predicated region
  $region18: #{residual_block_forward.7} parent=0 // pred_check
    _
  $region19: #{residual_block_forward.7} parent=0 // pred_check_branch
    %20 = sbr.rel (0) target = $region21
  $region20: #{residual_block_forward.7} parent=0 // pred_region
    _
  $region21: #{residual_block_forward.7} parent=0 // pred_fallthru
    _
  // Predicated region
  $region22: #{residual_block_forward.7} parent=0 // pred_check
    _
  $region23: #{residual_block_forward.7} parent=0 // pred_check_branch
    %22 = sbr.rel (0) target = $region25
  $region24: #{residual_block_forward.7} parent=0 // pred_region
    _
  $region25: #{residual_block_forward.7} parent=0 // pred_fallthru
    _
  %v23 = vld [vmem:[%s0] sm:$0xff]
  %v24 = vld [vmem:[%s0 + $0x8] sm:$0xff]
  %v25 = vld [vmem:[%s0 + $0x10] sm:$0xff]
  %v26 = vld [vmem:[%s0 + $0x18] sm:$0xff]
  %v27 = vld [vmem:[%s2] sm:$0xff]
  %29 = vset.pattern.permute.xlu0 0
  %30 = vperm.xlu0 %29, %v27
  %v31 = vpop.permute.xlu0 %30
  %v33 = vmul.f32 %v23, %v31
  %v34 = vmul.f32 %v24, %v31
  %v35 = vmul.f32 %v25, %v31
  %v36 = vmul.f32 %v26, %v31
  %v37 = vld [vmem:[%s3] sm:$0xff]
  %39 = vset.pattern.permute.xlu0 0
  %40 = vperm.xlu0 %39, %v37
  %v41 = vpop.permute.xlu0 %40
  %v43 = vadd.f32 %v33, %v41
  %v44 = vadd.f32 %v34, %v41
  %v45 = vadd.f32 %v35, %v41
  %v46 = vadd.f32 %v36, %v41
  %v47 = vsub.f32 0.0, %v43
  %v48 = vsub.f32 0.0, %v44
  %v49 = vsub.f32 0.0, %v45
  %v50 = vsub.f32 0.0, %v46
  %v51 = vmul.f32 %v47, 1.442695
  %v52 = vpow.pop %v51
  %v53 = vmul.f32 %v48, 1.442695
  %v54 = vpow.pop %v53
  %v55 = vmul.f32 %v49, 1.442695
  %v56 = vpow.pop %v55
  %v57 = vmul.f32 %v50, 1.442695
  %v58 = vpow.pop %v57
  %v59 = vadd.f32 %v52, 1.0
  %v60 = vadd.f32 %v54, 1.0
  %v61 = vadd.f32 %v56, 1.0
  %v62 = vadd.f32 %v58, 1.0
  %v63 = vrcp.pop %v59
  %v64 = vrcp.pop %v60
  %v65 = vrcp.pop %v61
  %v66 = vrcp.pop %v62
  %v67 = vmul.f32 %v43, %v63
  %v68 = vmul.f32 %v44, %v64
  %v69 = vmul.f32 %v45, %v65
  %v70 = vmul.f32 %v46, %v66
  %v71 = vld [vmem:[%s1] sm:$0xff]
  %v72 = vld [vmem:[%s1 + $0x8] sm:$0xff]
  %v73 = vld [vmem:[%s1 + $0x10] sm:$0xff]
  %v74 = vld [vmem:[%s1 + $0x18] sm:$0xff]
  %v75 = vld [vmem:[%s1 + $0x20] sm:$0xff]
  %v76 = vld [vmem:[%s1 + $0x28] sm:$0xff]
  %v77 = vld [vmem:[%s1 + $0x30] sm:$0xff]
  %v78 = vld [vmem:[%s1 + $0x38] sm:$0xff]
  %v79 = vld [vmem:[%s1 + $0x40] sm:$0xff]
  %v80 = vld [vmem:[%s1 + $0x48] sm:$0xff]
  %v81 = vld [vmem:[%s1 + $0x50] sm:$0xff]
  %v82 = vld [vmem:[%s1 + $0x58] sm:$0xff]
  %v83 = vld [vmem:[%s1 + $0x60] sm:$0xff]
  %v84 = vld [vmem:[%s1 + $0x68] sm:$0xff]
  %v85 = vld [vmem:[%s1 + $0x70] sm:$0xff]
  %v86 = vld [vmem:[%s1 + $0x78] sm:$0xff]
  %v87 = vld [vmem:[%s4] sm:$0xff]
  %89 = vset.pattern.permute.xlu0 0
  %90 = vperm.xlu0 %89, %v87
  %v91 = vpop.permute.xlu0 %90
  %v93 = vmul.f32 %v71, %v91
  %v94 = vmul.f32 %v72, %v91
  %v95 = vmul.f32 %v73, %v91
  %v96 = vmul.f32 %v74, %v91
  %v97 = vmul.f32 %v75, %v91
  %v98 = vmul.f32 %v76, %v91
  %v99 = vmul.f32 %v77, %v91
  %v100 = vmul.f32 %v78, %v91
  %v101 = vmul.f32 %v79, %v91
  %v102 = vmul.f32 %v80, %v91
  %v103 = vmul.f32 %v81, %v91
  %v104 = vmul.f32 %v82, %v91
  %v105 = vmul.f32 %v83, %v91
  %v106 = vmul.f32 %v84, %v91
  %v107 = vmul.f32 %v85, %v91
  %v108 = vmul.f32 %v86, %v91
  %v109 = vld [vmem:[%s5] sm:$0xff]
  %111 = vset.pattern.permute.xlu0 0
  %112 = vperm.xlu0 %111, %v109
  %v113 = vpop.permute.xlu0 %112
  %v115 = vadd.f32 %v93, %v113
  %v116 = vadd.f32 %v94, %v113
  %v117 = vadd.f32 %v95, %v113
  %v118 = vadd.f32 %v96, %v113
  %v119 = vadd.f32 %v97, %v113
  %v120 = vadd.f32 %v98, %v113
  %v121 = vadd.f32 %v99, %v113
  %v122 = vadd.f32 %v100, %v113
  %v123 = vadd.f32 %v101, %v113
  %v124 = vadd.f32 %v102, %v113
  %v125 = vadd.f32 %v103, %v113
  %v126 = vadd.f32 %v104, %v113
  %v127 = vadd.f32 %v105, %v113
  %v128 = vadd.f32 %v106, %v113
  %v129 = vadd.f32 %v107, %v113
  %v130 = vadd.f32 %v108, %v113
  %v131 = vsub.f32 0.0, %v115
  %v132 = vsub.f32 0.0, %v116
  %v133 = vsub.f32 0.0, %v117
  %v134 = vsub.f32 0.0, %v118
  %v135 = vsub.f32 0.0, %v119
  %v136 = vsub.f32 0.0, %v120
  %v137 = vsub.f32 0.0, %v121
  %v138 = vsub.f32 0.0, %v122
  %v139 = vsub.f32 0.0, %v123
  %v140 = vsub.f32 0.0, %v124
  %v141 = vsub.f32 0.0, %v125
  %v142 = vsub.f32 0.0, %v126
  %v143 = vsub.f32 0.0, %v127
  %v144 = vsub.f32 0.0, %v128
  %v145 = vsub.f32 0.0, %v129
  %v146 = vsub.f32 0.0, %v130
  %v147 = vmul.f32 %v131, 1.442695
  %v148 = vpow.pop %v147
  %v149 = vmul.f32 %v132, 1.442695
  %v150 = vpow.pop %v149
  %v151 = vmul.f32 %v133, 1.442695
  %v152 = vpow.pop %v151
  %v153 = vmul.f32 %v134, 1.442695
  %v154 = vpow.pop %v153
  %v155 = vmul.f32 %v135, 1.442695
  %v156 = vpow.pop %v155
  %v157 = vmul.f32 %v136, 1.442695
  %v158 = vpow.pop %v157
  %v159 = vmul.f32 %v137, 1.442695
  %v160 = vpow.pop %v159
  %v161 = vmul.f32 %v138, 1.442695
  %v162 = vpow.pop %v161
  %v163 = vmul.f32 %v139, 1.442695
  %v164 = vpow.pop %v163
  %v165 = vmul.f32 %v140, 1.442695
  %v166 = vpow.pop %v165
  %v167 = vmul.f32 %v141, 1.442695
  %v168 = vpow.pop %v167
  %v169 = vmul.f32 %v142, 1.442695
  %v170 = vpow.pop %v169
  %v171 = vmul.f32 %v143, 1.442695
  %v172 = vpow.pop %v171
  %v173 = vmul.f32 %v144, 1.442695
  %v174 = vpow.pop %v173
  %v175 = vmul.f32 %v145, 1.442695
  %v176 = vpow.pop %v175
  %v177 = vmul.f32 %v146, 1.442695
  %v178 = vpow.pop %v177
  %v179 = vadd.f32 %v148, 1.0
  %v180 = vadd.f32 %v150, 1.0
  %v181 = vadd.f32 %v152, 1.0
  %v182 = vadd.f32 %v154, 1.0
  %v183 = vadd.f32 %v156, 1.0
  %v184 = vadd.f32 %v158, 1.0
  %v185 = vadd.f32 %v160, 1.0
  %v186 = vadd.f32 %v162, 1.0
  %v187 = vadd.f32 %v164, 1.0
  %v188 = vadd.f32 %v166, 1.0
  %v189 = vadd.f32 %v168, 1.0
  %v190 = vadd.f32 %v170, 1.0
  %v191 = vadd.f32 %v172, 1.0
  %v192 = vadd.f32 %v174, 1.0
  %v193 = vadd.f32 %v176, 1.0
  %v194 = vadd.f32 %v178, 1.0
  %v195 = vrcp.pop %v179
  %v196 = vrcp.pop %v180
  %v197 = vrcp.pop %v181
  %v198 = vrcp.pop %v182
  %v199 = vrcp.pop %v183
  %v200 = vrcp.pop %v184
  %v201 = vrcp.pop %v185
  %v202 = vrcp.pop %v186
  %v203 = vrcp.pop %v187
  %v204 = vrcp.pop %v188
  %v205 = vrcp.pop %v189
  %v206 = vrcp.pop %v190
  %v207 = vrcp.pop %v191
  %v208 = vrcp.pop %v192
  %v209 = vrcp.pop %v193
  %v210 = vrcp.pop %v194
  %v211 = vmul.f32 %v115, %v195
  %v212 = vmul.f32 %v116, %v196
  %v213 = vmul.f32 %v117, %v197
  %v214 = vmul.f32 %v118, %v198
  %v215 = vmul.f32 %v119, %v199
  %v216 = vmul.f32 %v120, %v200
  %v217 = vmul.f32 %v121, %v201
  %v218 = vmul.f32 %v122, %v202
  %v219 = vmul.f32 %v123, %v203
  %v220 = vmul.f32 %v124, %v204
  %v221 = vmul.f32 %v125, %v205
  %v222 = vmul.f32 %v126, %v206
  %v223 = vmul.f32 %v127, %v207
  %v224 = vmul.f32 %v128, %v208
  %v225 = vmul.f32 %v129, %v209
  %v226 = vmul.f32 %v130, %v210
  %v227 = vadd.f32 %v211, %v215
  %v228 = vadd.f32 %v227, %v219
  %v229 = vadd.f32 %v228, %v223
  %v230 = vadd.f32 %v212, %v216
  %v231 = vadd.f32 %v230, %v220
  %v232 = vadd.f32 %v231, %v224
  %v233 = vadd.f32 %v213, %v217
  %v234 = vadd.f32 %v233, %v221
  %v235 = vadd.f32 %v234, %v225
  %v236 = vadd.f32 %v214, %v218
  %v237 = vadd.f32 %v236, %v222
  %v238 = vadd.f32 %v237, %v226
  %v239 = vmul.f32 %v229, 0.25
  %v240 = vmul.f32 %v232, 0.25
  %v241 = vmul.f32 %v235, 0.25
  %v242 = vmul.f32 %v238, 0.25
  %v243 = vadd.f32 %v67, %v239
  %v244 = vadd.f32 %v68, %v240
  %v245 = vadd.f32 %v69, %v241
  %v246 = vadd.f32 %v70, %v242
  %247 = vst [vmem:[%s6] sm:$0xff] %v243
  %248 = vst [vmem:[%s6 + $0x8] sm:$0xff] %v244
  %249 = vst [vmem:[%s6 + $0x10] sm:$0xff] %v245
  %250 = vst [vmem:[%s6 + $0x18] sm:$0xff] %v246
  // Predicated region
  $region26: #{residual_block_forward.7} parent=0 // pred_check
    _
  $region27: #{residual_block_forward.7} parent=0 // pred_check_branch
    %252 = sbr.rel (0) target = $region29
  $region28: #{residual_block_forward.7} parent=0 // pred_region
    _
  $region29: #{residual_block_forward.7} parent=0 // pred_fallthru
    _
  // Predicated region
  $region30: #{residual_block_forward.7} parent=0 // pred_check
    _
  $region31: #{residual_block_forward.7} parent=0 // pred_check_branch
    %254 = sbr.rel (0) target = $region33
  $region32: #{residual_block_forward.7} parent=0 // pred_region
    _
  $region33: #{residual_block_forward.7} parent=0 // pred_fallthru
    _

</llo_original>
